<compile_context>
chip_gen: v6e
topology: v6e:2x2x1
jax: 0.10.0
libtpu: 0.0.40
codegen_flags: <defaults>
</compile_context>

<pallas_src>
import jax
import jax.numpy as jnp
from jax import lax
from jax.experimental import pallas as pl
from jax.experimental.pallas import tpu as pltpu


def _gru2_fc_kernel(x_ref, mask_ref, wih0_ref, bih0_ref, wr_ref, bA_ref,
                    bhh1_ref, wfc_ref, bfc_ref,
                    out_ref,
                    gi0_ref, slab_ref):
    TB = gi0_ref.shape[0]         # T * B
    B = bA_ref.shape[0]
    H = slab_ref.shape[1]
    H2, H3, H6 = 2 * H, 3 * H, 6 * H
    T = TB // B

    # ---- hoisted layer-0 input projection for ALL timesteps (one matmul) ----
    gi0_ref[...] = (jnp.dot(x_ref[...], wih0_ref[...],
                            preferred_element_type=jnp.float32)
                    + bih0_ref[...])

    # biases arrive pre-broadcast to (B, .) -> no per-iteration broadcasts
    bA = bA_ref[...]          # (B, 6H) f32 = [b_ih_l1 | b_hh_l0]
    bhh1 = bhh1_ref[...]      # (B, 3H) f32 = b_hh_l1

    def gru_update(gi, gh, h, m):
        # PyTorch gate order (r, z, n); masked update with short VPU chain:
        #   h_new = h + (m * (1 - z)) * (n - h)
        rz = jax.nn.sigmoid(gi[:, :H2] + gh[:, :H2])
        z = rz[:, H:]
        n = jnp.tanh(gi[:, H2:] + rz[:, :H] * gh[:, H2:])
        return h + (m * (1.0 - z)) * (n - h)

    h1 = jnp.zeros((B, H), jnp.float32)
    h2 = jnp.zeros((B, H), jnp.float32)
    gh1 = bhh1                 # h2_prev = 0  ->  gh1_0 = b_hh_l1

    # ---- preamble: layer-0 step 0 and its wA projection ----
    m = mask_ref[0:B, :]
    h1 = gru_update(gi0_ref[0:B, :], bA[:, H3:], h1, m)   # gh0_0 = b_hh_l0
    A = (jnp.dot(h1.astype(jnp.bfloat16), wr_ref[:, :H6],
                 preferred_element_type=jnp.float32) + bA)  # [gi1_0 | gh0_1]

    # ---- fully unrolled recurrence: ONE fused MXU issue per step ----
    for t in range(T):
        lo = t * B
        gi1 = A[:, :H3]           # layer-1 input gates, step t
        gh0_next = A[:, H3:]      # layer-0 hidden gates, step t+1

        # layer 1, step t
        h2 = gru_update(gi1, gh1, h2, m)
        slab_ref[lo:lo + B, :] = m * h2     # pad_packed zeros at masked rows

        if t + 1 < T:             # last step: no recurrent matmul needed
            lo1 = lo + B
            m_next = mask_ref[lo1:lo1 + B, :]
            # layer 0, step t+1 (gh0_{t+1} already available from A)
            h1 = gru_update(gi0_ref[lo1:lo1 + B, :], gh0_next, h1, m_next)
            # fused recurrent matmul: stacked (2B,H) @ (H,9H)
            #   rows 0:B , cols 0:6H  -> A_{t+1}   = h1_{t+1} @ [Wih1^T|Whh0^T]
            #   rows B:2B, cols 6H:9H -> gh1_{t+1} = h2_t     @ Whh1^T
            lhs = jnp.concatenate([h1, h2], axis=0).astype(jnp.bfloat16)
            R = jnp.dot(lhs, wr_ref[...], preferred_element_type=jnp.float32)
            A = R[:B, :H6] + bA
            gh1 = R[B:, H6:] + bhh1
            m = m_next

    # ---- hoisted FC + tanh: one lane-dense matmul + one dense store ----
    y = (jnp.dot(slab_ref[...].astype(jnp.bfloat16), wfc_ref[...],
                 preferred_element_type=jnp.float32) + bfc_ref[...])
    out_ref[...] = jnp.tanh(y)


def init_params(key, input_dim, hidden_dim, output_dim):
    scale = 1.0 / float(jnp.sqrt(hidden_dim))
    keys = jax.random.split(key, 10)

    def u(k, shape):
        return jax.random.uniform(k, shape, jnp.float32, -scale, scale)

    return dict(
        w_ih_l0=u(keys[0], (3 * hidden_dim, input_dim)),
        w_hh_l0=u(keys[1], (3 * hidden_dim, hidden_dim)),
        b_ih_l0=u(keys[2], (3 * hidden_dim,)),
        b_hh_l0=u(keys[3], (3 * hidden_dim,)),
        w_ih_l1=u(keys[4], (3 * hidden_dim, hidden_dim)),
        w_hh_l1=u(keys[5], (3 * hidden_dim, hidden_dim)),
        b_ih_l1=u(keys[6], (3 * hidden_dim,)),
        b_hh_l1=u(keys[7], (3 * hidden_dim,)),
        w_fc=u(keys[8], (output_dim, hidden_dim)),
        b_fc=u(keys[9], (output_dim,)),
    )


def doa_gru_forward(x, lengths, params, max_sequence_length=5):
    """x: (B, T, I) float32 (batch_first like PyTorch); lengths: (B,) int.

    Returns a static-shape (B, max(T, max_sequence_length), O) array whose
    first max(max(lengths), max_sequence_length) timesteps equal the PyTorch
    module output; any remaining trailing positions are zero (no host sync).
    """
    # TODO(synk): PyTorch pad_packed_sequence returns a dynamic time length
    # (max(lengths)); here the shape is static with zeros past max(lengths).
    B, T, I = x.shape
    H = params["w_hh_l0"].shape[1]
    O = params["w_fc"].shape[0]
    IP = 128     # lane-pad the tiny input-feature dim
    OP = 128     # lane-dense output slab

    # time-major, feature-padded input: row index = t*B + b  (bf16 MXU operand)
    x_t = jnp.transpose(x, (1, 0, 2)).reshape(T * B, I).astype(jnp.float32)
    x_pad = (jnp.zeros((T * B, IP), jnp.float32).at[:, :I].set(x_t)
             ).astype(jnp.bfloat16)

    # validity mask (pack_padded semantics), pre-broadcast to H lanes
    lengths = jnp.asarray(lengths).astype(jnp.int32)
    m_tb = (jnp.arange(T, dtype=jnp.int32)[:, None] < lengths[None, :]
            ).astype(jnp.float32)                                  # (T, B)
    mask = jnp.broadcast_to(m_tb[:, :, None], (T, B, H)).reshape(T * B, H)

    # bf16 weights (once); biases stay f32 (added after the f32-accumulated dot)
    wih0 = (jnp.zeros((IP, 3 * H), jnp.float32).at[:I, :]
            .set(params["w_ih_l0"].T)).astype(jnp.bfloat16)
    bih0 = params["b_ih_l0"].reshape(1, 3 * H)

    # fused recurrent weight: [W_ih_l1^T | W_hh_l0^T | W_hh_l1^T] -> (H, 9H)
    wr = jnp.concatenate([params["w_ih_l1"].T, params["w_hh_l0"].T,
                          params["w_hh_l1"].T], axis=1).astype(jnp.bfloat16)
    bA = jnp.concatenate([params["b_ih_l1"], params["b_hh_l0"]]).reshape(1, 6 * H)
    bA_b = jnp.broadcast_to(bA, (B, 6 * H))
    bhh1_b = jnp.broadcast_to(params["b_hh_l1"].reshape(1, 3 * H), (B, 3 * H))

    wfc = (jnp.zeros((H, OP), jnp.float32).at[:, :O]
           .set(params["w_fc"].T)).astype(jnp.bfloat16)
    bfc = jnp.zeros((1, OP), jnp.float32).at[:, :O].set(
        params["b_fc"].reshape(1, O))

    args = (x_pad, mask, wih0, bih0, wr, bA_b, bhh1_b, wfc, bfc)

    out_flat = pl.pallas_call(
        _gru2_fc_kernel,
        out_shape=jax.ShapeDtypeStruct((T * B, OP), jnp.float32),
        in_specs=[pl.BlockSpec(memory_space=pltpu.MemorySpace.VMEM)
                  for _ in args],
        out_specs=pl.BlockSpec(memory_space=pltpu.MemorySpace.VMEM),
        scratch_shapes=[pltpu.VMEM((T * B, 3 * H), jnp.float32),   # gi0 slab
                        pltpu.VMEM((T * B, H), jnp.float32)],      # h2 slab
    )(*args)

    out = out_flat.reshape(T, B, OP)[:, :, :O]
    out = jnp.transpose(out, (1, 0, 2))                            # (B, T, O)

    # pad_packed_sequence only emits max(lengths) steps; keep a static shape
    # and zero everything past max(lengths) on-device (no device_get sync).
    maxlen = jnp.max(lengths)
    valid = (jnp.arange(T, dtype=jnp.int32)[None, :, None] < maxlen
             ).astype(jnp.float32)
    out = out * valid
    if T < max_sequence_length:
        out = jnp.concatenate(
            [out, jnp.zeros((B, max_sequence_length - T, O), jnp.float32)],
            axis=1)
    return out


def reference_forward(x, lengths, params, max_sequence_length=5):
    """Pure-JAX reference matching the PyTorch module (packed 2-layer GRU +
    fc + tanh).  Uses a host-side max(lengths) only because it is a test."""
    B, T, _ = x.shape
    H = params["w_hh_l0"].shape[1]
    hp = lax.Precision.HIGHEST

    def cell(x_t, h, w_ih, w_hh, b_ih, b_hh):
        gi = jnp.dot(x_t, w_ih.T, precision=hp) + b_ih
        gh = jnp.dot(h, w_hh.T, precision=hp) + b_hh
        r = jax.nn.sigmoid(gi[:, :H] + gh[:, :H])
        z = jax.nn.sigmoid(gi[:, H:2 * H] + gh[:, H:2 * H])
        n = jnp.tanh(gi[:, 2 * H:] + r * gh[:, 2 * H:])
        return (1 - z) * n + z * h

    h1 = jnp.zeros((B, H), jnp.float32)
    h2 = jnp.zeros((B, H), jnp.float32)
    outs = []
    for t in range(T):
        m = (t < lengths).astype(jnp.float32)[:, None]
        h1n = cell(x[:, t], h1, params["w_ih_l0"], params["w_hh_l0"],
                   params["b_ih_l0"], params["b_hh_l0"])
        h1 = m * h1n + (1 - m) * h1
        h2n = cell(h1, h2, params["w_ih_l1"], params["w_hh_l1"],
                   params["b_ih_l1"], params["b_hh_l1"])
        h2 = m * h2n + (1 - m) * h2
        y = jnp.dot(m * h2, params["w_fc"].T, precision=hp) + params["b_fc"]
        outs.append(jnp.tanh(y))
    out = jnp.stack(outs, axis=1)
    t_out = int(jnp.max(lengths))
    out = out[:, :t_out]
    if t_out < max_sequence_length:
        out = jnp.concatenate(
            [out, jnp.zeros((B, max_sequence_length - t_out, out.shape[2]),
                            jnp.float32)], axis=1)
    return out


if __name__ == "__main__":
    B, T, I = 8, 8, 2          # batch, sequence length, input_dim
    H, O = 128, 2              # hidden_dim (module default), output_dim
    MAX_SEQ = 5                # max_sequence_length (module default)

    key = jax.random.PRNGKey(0)
    k_par, k_x, k_len = jax.random.split(key, 3)

    params = init_params(k_par, I, H, O)
    x = jax.random.normal(k_x, (B, T, I), jnp.float32)
    lengths = jax.random.randint(k_len, (B,), 1, T + 1)   # like torch.randint

    fwd = jax.jit(lambda xx, ll: doa_gru_forward(xx, ll, params, MAX_SEQ))
    out = jax.block_until_ready(fwd(x, lengths))

    ref = reference_forward(x, lengths, params, MAX_SEQ)
    L = ref.shape[1]
    assert out.shape[0] == B and out.shape[2] == O and out.shape[1] >= L, \
        (out.shape, ref.shape)
    # bf16 MXU operands (f32 accumulate) vs. f32-HIGHEST reference:
    # observed error is ~1e-2 scale on tanh-bounded outputs.
    err = float(jnp.max(jnp.abs(out[:, :L, :] - ref)))
    assert err < 3e-2, err
    if out.shape[1] > L:       # trailing static padding must be exactly zero
        assert float(jnp.max(jnp.abs(out[:, L:, :]))) == 0.0

    print("KERNEL_OK")
</pallas_src>

<mosaic_0001>
module attributes {stable_mosaic.version = 11 : i64} {
  func.func @_gru2_fc_kernel(%arg0: memref<64x128xbf16, #tpu.memory_space<vmem>>, %arg1: memref<64x128xf32, #tpu.memory_space<vmem>>, %arg2: memref<128x384xbf16, #tpu.memory_space<vmem>>, %arg3: memref<1x384xf32, #tpu.memory_space<vmem>>, %arg4: memref<128x1152xbf16, #tpu.memory_space<vmem>>, %arg5: memref<8x768xf32, #tpu.memory_space<vmem>>, %arg6: memref<8x384xf32, #tpu.memory_space<vmem>>, %arg7: memref<128x128xbf16, #tpu.memory_space<vmem>>, %arg8: memref<1x128xf32, #tpu.memory_space<vmem>>, %arg9: memref<64x128xf32, #tpu.memory_space<vmem>>, %arg10: memref<64x384xf32, #tpu.memory_space<vmem>>, %arg11: memref<64x128xf32, #tpu.memory_space<vmem>>) attributes {dimension_semantics = [], scalar_prefetch = 0 : i64, scratch_operands = 2 : i64, tpu.core_type = #tpu.core_type<tc>} {
    %c0 = arith.constant 0 : index
    %c0_0 = arith.constant 0 : index
    %0 = vector.load %arg0[%c0, %c0_0] : memref<64x128xbf16, #tpu.memory_space<vmem>>, vector<64x128xbf16>
    %c0_1 = arith.constant 0 : index
    %c0_2 = arith.constant 0 : index
    %1 = vector.load %arg2[%c0_1, %c0_2] : memref<128x384xbf16, #tpu.memory_space<vmem>>, vector<128x384xbf16>
    %cst = arith.constant dense<0.000000e+00> : vector<64x384xf32>
    %2 = tpu.matmul %0, %1, %cst {dimension_numbers = #tpu.dot_dimension_numbers<[1], [0], [0], [1], [0, 0, 1, 1], [], []>} : vector<64x128xbf16>, vector<128x384xbf16>, vector<64x384xf32> -> vector<64x384xf32>
    %c0_3 = arith.constant 0 : index
    %c0_4 = arith.constant 0 : index
    %3 = vector.load %arg3[%c0_3, %c0_4] : memref<1x384xf32, #tpu.memory_space<vmem>>, vector<1x384xf32>
    %4 = vector.broadcast %3 : vector<1x384xf32> to vector<64x384xf32>
    %5 = arith.addf %2, %4 : vector<64x384xf32>
    %c0_5 = arith.constant 0 : index
    %c0_6 = arith.constant 0 : index
    %6 = vector.load %arg10[%c0_5, %c0_6] : memref<64x384xf32, #tpu.memory_space<vmem>>, vector<64x384xf32>
    tpu.vector_store %arg10[%c0_5, %c0_6], %5 {strides = array<i32>} : memref<64x384xf32, #tpu.memory_space<vmem>>, vector<64x384xf32>,
    %c0_7 = arith.constant 0 : index
    %c0_8 = arith.constant 0 : index
    %7 = vector.load %arg5[%c0_7, %c0_8] : memref<8x768xf32, #tpu.memory_space<vmem>>, vector<8x768xf32>
    %c0_9 = arith.constant 0 : index
    %c0_10 = arith.constant 0 : index
    %8 = vector.load %arg6[%c0_9, %c0_10] : memref<8x384xf32, #tpu.memory_space<vmem>>, vector<8x384xf32>
    %cst_11 = arith.constant 0.000000e+00 : f32
    %9 = vector.broadcast %cst_11 : f32 to vector<8x128xf32>
    %cst_12 = arith.constant 0.000000e+00 : f32
    %10 = vector.broadcast %cst_12 : f32 to vector<8x128xf32>
    %c0_13 = arith.constant 0 : index
    %c0_14 = arith.constant 0 : index
    %11 = vector.load %arg1[%c0_13, %c0_14] : memref<64x128xf32, #tpu.memory_space<vmem>>, vector<8x128xf32>
    %c0_15 = arith.constant 0 : index
    %c0_16 = arith.constant 0 : index
    %12 = vector.load %arg10[%c0_15, %c0_16] : memref<64x384xf32, #tpu.memory_space<vmem>>, vector<8x384xf32>
    %13 = vector.extract_strided_slice %7 {offsets = [0, 384], sizes = [8, 384], strides = [1, 1]} : vector<8x768xf32> to vector<8x384xf32>
    %14 = vector.extract_strided_slice %12 {offsets = [0, 0], sizes = [8, 256], strides = [1, 1]} : vector<8x384xf32> to vector<8x256xf32>
    %15 = vector.extract_strided_slice %13 {offsets = [0, 0], sizes = [8, 256], strides = [1, 1]} : vector<8x384xf32> to vector<8x256xf32>
    %16 = arith.addf %14, %15 : vector<8x256xf32>
    %17 = arith.negf %16 : vector<8x256xf32>
    %18 = math.exp %17 : vector<8x256xf32>
    %cst_17 = arith.constant 1.000000e+00 : f32
    %19 = vector.broadcast %cst_17 : f32 to vector<8x256xf32>
    %20 = arith.addf %19, %18 : vector<8x256xf32>
    %21 = arith.divf %19, %20 : vector<8x256xf32>
    %22 = vector.extract_strided_slice %21 {offsets = [0, 128], sizes = [8, 128], strides = [1, 1]} : vector<8x256xf32> to vector<8x128xf32>
    %23 = vector.extract_strided_slice %12 {offsets = [0, 256], sizes = [8, 128], strides = [1, 1]} : vector<8x384xf32> to vector<8x128xf32>
    %24 = vector.extract_strided_slice %21 {offsets = [0, 0], sizes = [8, 128], strides = [1, 1]} : vector<8x256xf32> to vector<8x128xf32>
    %25 = vector.extract_strided_slice %13 {offsets = [0, 256], sizes = [8, 128], strides = [1, 1]} : vector<8x384xf32> to vector<8x128xf32>
    %26 = arith.mulf %24, %25 : vector<8x128xf32>
    %27 = arith.addf %23, %26 : vector<8x128xf32>
    %28 = math.tanh %27 : vector<8x128xf32>
    %cst_18 = arith.constant 1.000000e+00 : f32
    %29 = vector.broadcast %cst_18 : f32 to vector<8x128xf32>
    %30 = arith.subf %29, %22 : vector<8x128xf32>
    %31 = arith.mulf %11, %30 : vector<8x128xf32>
    %32 = arith.subf %28, %9 : vector<8x128xf32>
    %33 = arith.mulf %31, %32 : vector<8x128xf32>
    %34 = arith.addf %9, %33 : vector<8x128xf32>
    %35 = arith.truncf %34 : vector<8x128xf32> to vector<8x128xbf16>
    %c0_19 = arith.constant 0 : index
    %c0_20 = arith.constant 0 : index
    %36 = vector.load %arg4[%c0_19, %c0_20] : memref<128x1152xbf16, #tpu.memory_space<vmem>>, vector<128x768xbf16>
    %cst_21 = arith.constant dense<0.000000e+00> : vector<8x768xf32>
    %37 = tpu.matmul %35, %36, %cst_21 {dimension_numbers = #tpu.dot_dimension_numbers<[1], [0], [0], [1], [0, 0, 1, 1], [], []>} : vector<8x128xbf16>, vector<128x768xbf16>, vector<8x768xf32> -> vector<8x768xf32>
    %38 = arith.addf %37, %7 : vector<8x768xf32>
    %39 = vector.extract_strided_slice %38 {offsets = [0, 0], sizes = [8, 384], strides = [1, 1]} : vector<8x768xf32> to vector<8x384xf32>
    %40 = vector.extract_strided_slice %38 {offsets = [0, 384], sizes = [8, 384], strides = [1, 1]} : vector<8x768xf32> to vector<8x384xf32>
    %41 = vector.extract_strided_slice %39 {offsets = [0, 0], sizes = [8, 256], strides = [1, 1]} : vector<8x384xf32> to vector<8x256xf32>
    %42 = vector.extract_strided_slice %8 {offsets = [0, 0], sizes = [8, 256], strides = [1, 1]} : vector<8x384xf32> to vector<8x256xf32>
    %43 = arith.addf %41, %42 : vector<8x256xf32>
    %44 = arith.negf %43 : vector<8x256xf32>
    %45 = math.exp %44 : vector<8x256xf32>
    %cst_22 = arith.constant 1.000000e+00 : f32
    %46 = vector.broadcast %cst_22 : f32 to vector<8x256xf32>
    %47 = arith.addf %46, %45 : vector<8x256xf32>
    %48 = arith.divf %46, %47 : vector<8x256xf32>
    %49 = vector.extract_strided_slice %48 {offsets = [0, 128], sizes = [8, 128], strides = [1, 1]} : vector<8x256xf32> to vector<8x128xf32>
    %50 = vector.extract_strided_slice %39 {offsets = [0, 256], sizes = [8, 128], strides = [1, 1]} : vector<8x384xf32> to vector<8x128xf32>
    %51 = vector.extract_strided_slice %48 {offsets = [0, 0], sizes = [8, 128], strides = [1, 1]} : vector<8x256xf32> to vector<8x128xf32>
    %52 = vector.extract_strided_slice %8 {offsets = [0, 256], sizes = [8, 128], strides = [1, 1]} : vector<8x384xf32> to vector<8x128xf32>
    %53 = arith.mulf %51, %52 : vector<8x128xf32>
    %54 = arith.addf %50, %53 : vector<8x128xf32>
    %55 = math.tanh %54 : vector<8x128xf32>
    %cst_23 = arith.constant 1.000000e+00 : f32
    %56 = vector.broadcast %cst_23 : f32 to vector<8x128xf32>
    %57 = arith.subf %56, %49 : vector<8x128xf32>
    %58 = arith.mulf %11, %57 : vector<8x128xf32>
    %59 = arith.subf %55, %10 : vector<8x128xf32>
    %60 = arith.mulf %58, %59 : vector<8x128xf32>
    %61 = arith.addf %10, %60 : vector<8x128xf32>
    %62 = arith.mulf %11, %61 : vector<8x128xf32>
    %c0_24 = arith.constant 0 : index
    %c0_25 = arith.constant 0 : index
    %63 = vector.load %arg11[%c0_24, %c0_25] : memref<64x128xf32, #tpu.memory_space<vmem>>, vector<8x128xf32>
    tpu.vector_store %arg11[%c0_24, %c0_25], %62 {strides = array<i32>} : memref<64x128xf32, #tpu.memory_space<vmem>>, vector<8x128xf32>,
    %c8 = arith.constant 8 : index
    %c0_26 = arith.constant 0 : index
    %64 = vector.load %arg1[%c8, %c0_26] : memref<64x128xf32, #tpu.memory_space<vmem>>, vector<8x128xf32>
    %c8_27 = arith.constant 8 : index
    %c0_28 = arith.constant 0 : index
    %65 = vector.load %arg10[%c8_27, %c0_28] : memref<64x384xf32, #tpu.memory_space<vmem>>, vector<8x384xf32>
    %66 = vector.extract_strided_slice %65 {offsets = [0, 0], sizes = [8, 256], strides = [1, 1]} : vector<8x384xf32> to vector<8x256xf32>
    %67 = vector.extract_strided_slice %40 {offsets = [0, 0], sizes = [8, 256], strides = [1, 1]} : vector<8x384xf32> to vector<8x256xf32>
    %68 = arith.addf %66, %67 : vector<8x256xf32>
    %69 = arith.negf %68 : vector<8x256xf32>
    %70 = math.exp %69 : vector<8x256xf32>
    %cst_29 = arith.constant 1.000000e+00 : f32
    %71 = vector.broadcast %cst_29 : f32 to vector<8x256xf32>
    %72 = arith.addf %71, %70 : vector<8x256xf32>
    %73 = arith.divf %71, %72 : vector<8x256xf32>
    %74 = vector.extract_strided_slice %73 {offsets = [0, 128], sizes = [8, 128], strides = [1, 1]} : vector<8x256xf32> to vector<8x128xf32>
    %75 = vector.extract_strided_slice %65 {offsets = [0, 256], sizes = [8, 128], strides = [1, 1]} : vector<8x384xf32> to vector<8x128xf32>
    %76 = vector.extract_strided_slice %73 {offsets = [0, 0], sizes = [8, 128], strides = [1, 1]} : vector<8x256xf32> to vector<8x128xf32>
    %77 = vector.extract_strided_slice %40 {offsets = [0, 256], sizes = [8, 128], strides = [1, 1]} : vector<8x384xf32> to vector<8x128xf32>
    %78 = arith.mulf %76, %77 : vector<8x128xf32>
    %79 = arith.addf %75, %78 : vector<8x128xf32>
    %80 = math.tanh %79 : vector<8x128xf32>
    %cst_30 = arith.constant 1.000000e+00 : f32
    %81 = vector.broadcast %cst_30 : f32 to vector<8x128xf32>
    %82 = arith.subf %81, %74 : vector<8x128xf32>
    %83 = arith.mulf %64, %82 : vector<8x128xf32>
    %84 = arith.subf %80, %34 : vector<8x128xf32>
    %85 = arith.mulf %83, %84 : vector<8x128xf32>
    %86 = arith.addf %34, %85 : vector<8x128xf32>
    %87 = tpu.concatenate %86, %61 in 0 : vector<8x128xf32>, vector<8x128xf32> -> vector<16x128xf32>
    %88 = arith.truncf %87 : vector<16x128xf32> to vector<16x128xbf16>
    %c0_31 = arith.constant 0 : index
    %c0_32 = arith.constant 0 : index
    %89 = vector.load %arg4[%c0_31, %c0_32] : memref<128x1152xbf16, #tpu.memory_space<vmem>>, vector<128x1152xbf16>
    %cst_33 = arith.constant dense<0.000000e+00> : vector<16x1152xf32>
    %90 = tpu.matmul %88, %89, %cst_33 {dimension_numbers = #tpu.dot_dimension_numbers<[1], [0], [0], [1], [0, 0, 1, 1], [], []>} : vector<16x128xbf16>, vector<128x1152xbf16>, vector<16x1152xf32> -> vector<16x1152xf32>
    %91 = vector.extract_strided_slice %90 {offsets = [0, 0], sizes = [8, 768], strides = [1, 1]} : vector<16x1152xf32> to vector<8x768xf32>
    %92 = arith.addf %91, %7 : vector<8x768xf32>
    %93 = vector.extract_strided_slice %90 {offsets = [8, 768], sizes = [8, 384], strides = [1, 1]} : vector<16x1152xf32> to vector<8x384xf32>
    %94 = arith.addf %93, %8 : vector<8x384xf32>
    %95 = vector.extract_strided_slice %92 {offsets = [0, 0], sizes = [8, 384], strides = [1, 1]} : vector<8x768xf32> to vector<8x384xf32>
    %96 = vector.extract_strided_slice %92 {offsets = [0, 384], sizes = [8, 384], strides = [1, 1]} : vector<8x768xf32> to vector<8x384xf32>
    %97 = vector.extract_strided_slice %95 {offsets = [0, 0], sizes = [8, 256], strides = [1, 1]} : vector<8x384xf32> to vector<8x256xf32>
    %98 = vector.extract_strided_slice %94 {offsets = [0, 0], sizes = [8, 256], strides = [1, 1]} : vector<8x384xf32> to vector<8x256xf32>
    %99 = arith.addf %97, %98 : vector<8x256xf32>
    %100 = arith.negf %99 : vector<8x256xf32>
    %101 = math.exp %100 : vector<8x256xf32>
    %cst_34 = arith.constant 1.000000e+00 : f32
    %102 = vector.broadcast %cst_34 : f32 to vector<8x256xf32>
    %103 = arith.addf %102, %101 : vector<8x256xf32>
    %104 = arith.divf %102, %103 : vector<8x256xf32>
    %105 = vector.extract_strided_slice %104 {offsets = [0, 128], sizes = [8, 128], strides = [1, 1]} : vector<8x256xf32> to vector<8x128xf32>
    %106 = vector.extract_strided_slice %95 {offsets = [0, 256], sizes = [8, 128], strides = [1, 1]} : vector<8x384xf32> to vector<8x128xf32>
    %107 = vector.extract_strided_slice %104 {offsets = [0, 0], sizes = [8, 128], strides = [1, 1]} : vector<8x256xf32> to vector<8x128xf32>
    %108 = vector.extract_strided_slice %94 {offsets = [0, 256], sizes = [8, 128], strides = [1, 1]} : vector<8x384xf32> to vector<8x128xf32>
    %109 = arith.mulf %107, %108 : vector<8x128xf32>
    %110 = arith.addf %106, %109 : vector<8x128xf32>
    %111 = math.tanh %110 : vector<8x128xf32>
    %cst_35 = arith.constant 1.000000e+00 : f32
    %112 = vector.broadcast %cst_35 : f32 to vector<8x128xf32>
    %113 = arith.subf %112, %105 : vector<8x128xf32>
    %114 = arith.mulf %64, %113 : vector<8x128xf32>
    %115 = arith.subf %111, %61 : vector<8x128xf32>
    %116 = arith.mulf %114, %115 : vector<8x128xf32>
    %117 = arith.addf %61, %116 : vector<8x128xf32>
    %118 = arith.mulf %64, %117 : vector<8x128xf32>
    %c8_36 = arith.constant 8 : index
    %c0_37 = arith.constant 0 : index
    %119 = vector.load %arg11[%c8_36, %c0_37] : memref<64x128xf32, #tpu.memory_space<vmem>>, vector<8x128xf32>
    tpu.vector_store %arg11[%c8_36, %c0_37], %118 {strides = array<i32>} : memref<64x128xf32, #tpu.memory_space<vmem>>, vector<8x128xf32>,
    %c16 = arith.constant 16 : index
    %c0_38 = arith.constant 0 : index
    %120 = vector.load %arg1[%c16, %c0_38] : memref<64x128xf32, #tpu.memory_space<vmem>>, vector<8x128xf32>
    %c16_39 = arith.constant 16 : index
    %c0_40 = arith.constant 0 : index
    %121 = vector.load %arg10[%c16_39, %c0_40] : memref<64x384xf32, #tpu.memory_space<vmem>>, vector<8x384xf32>
    %122 = vector.extract_strided_slice %121 {offsets = [0, 0], sizes = [8, 256], strides = [1, 1]} : vector<8x384xf32> to vector<8x256xf32>
    %123 = vector.extract_strided_slice %96 {offsets = [0, 0], sizes = [8, 256], strides = [1, 1]} : vector<8x384xf32> to vector<8x256xf32>
    %124 = arith.addf %122, %123 : vector<8x256xf32>
    %125 = arith.negf %124 : vector<8x256xf32>
    %126 = math.exp %125 : vector<8x256xf32>
    %cst_41 = arith.constant 1.000000e+00 : f32
    %127 = vector.broadcast %cst_41 : f32 to vector<8x256xf32>
    %128 = arith.addf %127, %126 : vector<8x256xf32>
    %129 = arith.divf %127, %128 : vector<8x256xf32>
    %130 = vector.extract_strided_slice %129 {offsets = [0, 128], sizes = [8, 128], strides = [1, 1]} : vector<8x256xf32> to vector<8x128xf32>
    %131 = vector.extract_strided_slice %121 {offsets = [0, 256], sizes = [8, 128], strides = [1, 1]} : vector<8x384xf32> to vector<8x128xf32>
    %132 = vector.extract_strided_slice %129 {offsets = [0, 0], sizes = [8, 128], strides = [1, 1]} : vector<8x256xf32> to vector<8x128xf32>
    %133 = vector.extract_strided_slice %96 {offsets = [0, 256], sizes = [8, 128], strides = [1, 1]} : vector<8x384xf32> to vector<8x128xf32>
    %134 = arith.mulf %132, %133 : vector<8x128xf32>
    %135 = arith.addf %131, %134 : vector<8x128xf32>
    %136 = math.tanh %135 : vector<8x128xf32>
    %cst_42 = arith.constant 1.000000e+00 : f32
    %137 = vector.broadcast %cst_42 : f32 to vector<8x128xf32>
    %138 = arith.subf %137, %130 : vector<8x128xf32>
    %139 = arith.mulf %120, %138 : vector<8x128xf32>
    %140 = arith.subf %136, %86 : vector<8x128xf32>
    %141 = arith.mulf %139, %140 : vector<8x128xf32>
    %142 = arith.addf %86, %141 : vector<8x128xf32>
    %143 = tpu.concatenate %142, %117 in 0 : vector<8x128xf32>, vector<8x128xf32> -> vector<16x128xf32>
    %144 = arith.truncf %143 : vector<16x128xf32> to vector<16x128xbf16>
    %c0_43 = arith.constant 0 : index
    %c0_44 = arith.constant 0 : index
    %145 = vector.load %arg4[%c0_43, %c0_44] : memref<128x1152xbf16, #tpu.memory_space<vmem>>, vector<128x1152xbf16>
    %cst_45 = arith.constant dense<0.000000e+00> : vector<16x1152xf32>
    %146 = tpu.matmul %144, %145, %cst_45 {dimension_numbers = #tpu.dot_dimension_numbers<[1], [0], [0], [1], [0, 0, 1, 1], [], []>} : vector<16x128xbf16>, vector<128x1152xbf16>, vector<16x1152xf32> -> vector<16x1152xf32>
    %147 = vector.extract_strided_slice %146 {offsets = [0, 0], sizes = [8, 768], strides = [1, 1]} : vector<16x1152xf32> to vector<8x768xf32>
    %148 = arith.addf %147, %7 : vector<8x768xf32>
    %149 = vector.extract_strided_slice %146 {offsets = [8, 768], sizes = [8, 384], strides = [1, 1]} : vector<16x1152xf32> to vector<8x384xf32>
    %150 = arith.addf %149, %8 : vector<8x384xf32>
    %151 = vector.extract_strided_slice %148 {offsets = [0, 0], sizes = [8, 384], strides = [1, 1]} : vector<8x768xf32> to vector<8x384xf32>
    %152 = vector.extract_strided_slice %148 {offsets = [0, 384], sizes = [8, 384], strides = [1, 1]} : vector<8x768xf32> to vector<8x384xf32>
    %153 = vector.extract_strided_slice %151 {offsets = [0, 0], sizes = [8, 256], strides = [1, 1]} : vector<8x384xf32> to vector<8x256xf32>
    %154 = vector.extract_strided_slice %150 {offsets = [0, 0], sizes = [8, 256], strides = [1, 1]} : vector<8x384xf32> to vector<8x256xf32>
    %155 = arith.addf %153, %154 : vector<8x256xf32>
    %156 = arith.negf %155 : vector<8x256xf32>
    %157 = math.exp %156 : vector<8x256xf32>
    %cst_46 = arith.constant 1.000000e+00 : f32
    %158 = vector.broadcast %cst_46 : f32 to vector<8x256xf32>
    %159 = arith.addf %158, %157 : vector<8x256xf32>
    %160 = arith.divf %158, %159 : vector<8x256xf32>
    %161 = vector.extract_strided_slice %160 {offsets = [0, 128], sizes = [8, 128], strides = [1, 1]} : vector<8x256xf32> to vector<8x128xf32>
    %162 = vector.extract_strided_slice %151 {offsets = [0, 256], sizes = [8, 128], strides = [1, 1]} : vector<8x384xf32> to vector<8x128xf32>
    %163 = vector.extract_strided_slice %160 {offsets = [0, 0], sizes = [8, 128], strides = [1, 1]} : vector<8x256xf32> to vector<8x128xf32>
    %164 = vector.extract_strided_slice %150 {offsets = [0, 256], sizes = [8, 128], strides = [1, 1]} : vector<8x384xf32> to vector<8x128xf32>
    %165 = arith.mulf %163, %164 : vector<8x128xf32>
    %166 = arith.addf %162, %165 : vector<8x128xf32>
    %167 = math.tanh %166 : vector<8x128xf32>
    %cst_47 = arith.constant 1.000000e+00 : f32
    %168 = vector.broadcast %cst_47 : f32 to vector<8x128xf32>
    %169 = arith.subf %168, %161 : vector<8x128xf32>
    %170 = arith.mulf %120, %169 : vector<8x128xf32>
    %171 = arith.subf %167, %117 : vector<8x128xf32>
    %172 = arith.mulf %170, %171 : vector<8x128xf32>
    %173 = arith.addf %117, %172 : vector<8x128xf32>
    %174 = arith.mulf %120, %173 : vector<8x128xf32>
    %c16_48 = arith.constant 16 : index
    %c0_49 = arith.constant 0 : index
    %175 = vector.load %arg11[%c16_48, %c0_49] : memref<64x128xf32, #tpu.memory_space<vmem>>, vector<8x128xf32>
    tpu.vector_store %arg11[%c16_48, %c0_49], %174 {strides = array<i32>} : memref<64x128xf32, #tpu.memory_space<vmem>>, vector<8x128xf32>,
    %c24 = arith.constant 24 : index
    %c0_50 = arith.constant 0 : index
    %176 = vector.load %arg1[%c24, %c0_50] : memref<64x128xf32, #tpu.memory_space<vmem>>, vector<8x128xf32>
    %c24_51 = arith.constant 24 : index
    %c0_52 = arith.constant 0 : index
    %177 = vector.load %arg10[%c24_51, %c0_52] : memref<64x384xf32, #tpu.memory_space<vmem>>, vector<8x384xf32>
    %178 = vector.extract_strided_slice %177 {offsets = [0, 0], sizes = [8, 256], strides = [1, 1]} : vector<8x384xf32> to vector<8x256xf32>
    %179 = vector.extract_strided_slice %152 {offsets = [0, 0], sizes = [8, 256], strides = [1, 1]} : vector<8x384xf32> to vector<8x256xf32>
    %180 = arith.addf %178, %179 : vector<8x256xf32>
    %181 = arith.negf %180 : vector<8x256xf32>
    %182 = math.exp %181 : vector<8x256xf32>
    %cst_53 = arith.constant 1.000000e+00 : f32
    %183 = vector.broadcast %cst_53 : f32 to vector<8x256xf32>
    %184 = arith.addf %183, %182 : vector<8x256xf32>
    %185 = arith.divf %183, %184 : vector<8x256xf32>
    %186 = vector.extract_strided_slice %185 {offsets = [0, 128], sizes = [8, 128], strides = [1, 1]} : vector<8x256xf32> to vector<8x128xf32>
    %187 = vector.extract_strided_slice %177 {offsets = [0, 256], sizes = [8, 128], strides = [1, 1]} : vector<8x384xf32> to vector<8x128xf32>
    %188 = vector.extract_strided_slice %185 {offsets = [0, 0], sizes = [8, 128], strides = [1, 1]} : vector<8x256xf32> to vector<8x128xf32>
    %189 = vector.extract_strided_slice %152 {offsets = [0, 256], sizes = [8, 128], strides = [1, 1]} : vector<8x384xf32> to vector<8x128xf32>
    %190 = arith.mulf %188, %189 : vector<8x128xf32>
    %191 = arith.addf %187, %190 : vector<8x128xf32>
    %192 = math.tanh %191 : vector<8x128xf32>
    %cst_54 = arith.constant 1.000000e+00 : f32
    %193 = vector.broadcast %cst_54 : f32 to vector<8x128xf32>
    %194 = arith.subf %193, %186 : vector<8x128xf32>
    %195 = arith.mulf %176, %194 : vector<8x128xf32>
    %196 = arith.subf %192, %142 : vector<8x128xf32>
    %197 = arith.mulf %195, %196 : vector<8x128xf32>
    %198 = arith.addf %142, %197 : vector<8x128xf32>
    %199 = tpu.concatenate %198, %173 in 0 : vector<8x128xf32>, vector<8x128xf32> -> vector<16x128xf32>
    %200 = arith.truncf %199 : vector<16x128xf32> to vector<16x128xbf16>
    %c0_55 = arith.constant 0 : index
    %c0_56 = arith.constant 0 : index
    %201 = vector.load %arg4[%c0_55, %c0_56] : memref<128x1152xbf16, #tpu.memory_space<vmem>>, vector<128x1152xbf16>
    %cst_57 = arith.constant dense<0.000000e+00> : vector<16x1152xf32>
    %202 = tpu.matmul %200, %201, %cst_57 {dimension_numbers = #tpu.dot_dimension_numbers<[1], [0], [0], [1], [0, 0, 1, 1], [], []>} : vector<16x128xbf16>, vector<128x1152xbf16>, vector<16x1152xf32> -> vector<16x1152xf32>
    %203 = vector.extract_strided_slice %202 {offsets = [0, 0], sizes = [8, 768], strides = [1, 1]} : vector<16x1152xf32> to vector<8x768xf32>
    %204 = arith.addf %203, %7 : vector<8x768xf32>
    %205 = vector.extract_strided_slice %202 {offsets = [8, 768], sizes = [8, 384], strides = [1, 1]} : vector<16x1152xf32> to vector<8x384xf32>
    %206 = arith.addf %205, %8 : vector<8x384xf32>
    %207 = vector.extract_strided_slice %204 {offsets = [0, 0], sizes = [8, 384], strides = [1, 1]} : vector<8x768xf32> to vector<8x384xf32>
    %208 = vector.extract_strided_slice %204 {offsets = [0, 384], sizes = [8, 384], strides = [1, 1]} : vector<8x768xf32> to vector<8x384xf32>
    %209 = vector.extract_strided_slice %207 {offsets = [0, 0], sizes = [8, 256], strides = [1, 1]} : vector<8x384xf32> to vector<8x256xf32>
    %210 = vector.extract_strided_slice %206 {offsets = [0, 0], sizes = [8, 256], strides = [1, 1]} : vector<8x384xf32> to vector<8x256xf32>
    %211 = arith.addf %209, %210 : vector<8x256xf32>
    %212 = arith.negf %211 : vector<8x256xf32>
    %213 = math.exp %212 : vector<8x256xf32>
    %cst_58 = arith.constant 1.000000e+00 : f32
    %214 = vector.broadcast %cst_58 : f32 to vector<8x256xf32>
    %215 = arith.addf %214, %213 : vector<8x256xf32>
    %216 = arith.divf %214, %215 : vector<8x256xf32>
    %217 = vector.extract_strided_slice %216 {offsets = [0, 128], sizes = [8, 128], strides = [1, 1]} : vector<8x256xf32> to vector<8x128xf32>
    %218 = vector.extract_strided_slice %207 {offsets = [0, 256], sizes = [8, 128], strides = [1, 1]} : vector<8x384xf32> to vector<8x128xf32>
    %219 = vector.extract_strided_slice %216 {offsets = [0, 0], sizes = [8, 128], strides = [1, 1]} : vector<8x256xf32> to vector<8x128xf32>
    %220 = vector.extract_strided_slice %206 {offsets = [0, 256], sizes = [8, 128], strides = [1, 1]} : vector<8x384xf32> to vector<8x128xf32>
    %221 = arith.mulf %219, %220 : vector<8x128xf32>
    %222 = arith.addf %218, %221 : vector<8x128xf32>
    %223 = math.tanh %222 : vector<8x128xf32>
    %cst_59 = arith.constant 1.000000e+00 : f32
    %224 = vector.broadcast %cst_59 : f32 to vector<8x128xf32>
    %225 = arith.subf %224, %217 : vector<8x128xf32>
    %226 = arith.mulf %176, %225 : vector<8x128xf32>
    %227 = arith.subf %223, %173 : vector<8x128xf32>
    %228 = arith.mulf %226, %227 : vector<8x128xf32>
    %229 = arith.addf %173, %228 : vector<8x128xf32>
    %230 = arith.mulf %176, %229 : vector<8x128xf32>
    %c24_60 = arith.constant 24 : index
    %c0_61 = arith.constant 0 : index
    %231 = vector.load %arg11[%c24_60, %c0_61] : memref<64x128xf32, #tpu.memory_space<vmem>>, vector<8x128xf32>
    tpu.vector_store %arg11[%c24_60, %c0_61], %230 {strides = array<i32>} : memref<64x128xf32, #tpu.memory_space<vmem>>, vector<8x128xf32>,
    %c32 = arith.constant 32 : index
    %c0_62 = arith.constant 0 : index
    %232 = vector.load %arg1[%c32, %c0_62] : memref<64x128xf32, #tpu.memory_space<vmem>>, vector<8x128xf32>
    %c32_63 = arith.constant 32 : index
    %c0_64 = arith.constant 0 : index
    %233 = vector.load %arg10[%c32_63, %c0_64] : memref<64x384xf32, #tpu.memory_space<vmem>>, vector<8x384xf32>
    %234 = vector.extract_strided_slice %233 {offsets = [0, 0], sizes = [8, 256], strides = [1, 1]} : vector<8x384xf32> to vector<8x256xf32>
    %235 = vector.extract_strided_slice %208 {offsets = [0, 0], sizes = [8, 256], strides = [1, 1]} : vector<8x384xf32> to vector<8x256xf32>
    %236 = arith.addf %234, %235 : vector<8x256xf32>
    %237 = arith.negf %236 : vector<8x256xf32>
    %238 = math.exp %237 : vector<8x256xf32>
    %cst_65 = arith.constant 1.000000e+00 : f32
    %239 = vector.broadcast %cst_65 : f32 to vector<8x256xf32>
    %240 = arith.addf %239, %238 : vector<8x256xf32>
    %241 = arith.divf %239, %240 : vector<8x256xf32>
    %242 = vector.extract_strided_slice %241 {offsets = [0, 128], sizes = [8, 128], strides = [1, 1]} : vector<8x256xf32> to vector<8x128xf32>
    %243 = vector.extract_strided_slice %233 {offsets = [0, 256], sizes = [8, 128], strides = [1, 1]} : vector<8x384xf32> to vector<8x128xf32>
    %244 = vector.extract_strided_slice %241 {offsets = [0, 0], sizes = [8, 128], strides = [1, 1]} : vector<8x256xf32> to vector<8x128xf32>
    %245 = vector.extract_strided_slice %208 {offsets = [0, 256], sizes = [8, 128], strides = [1, 1]} : vector<8x384xf32> to vector<8x128xf32>
    %246 = arith.mulf %244, %245 : vector<8x128xf32>
    %247 = arith.addf %243, %246 : vector<8x128xf32>
    %248 = math.tanh %247 : vector<8x128xf32>
    %cst_66 = arith.constant 1.000000e+00 : f32
    %249 = vector.broadcast %cst_66 : f32 to vector<8x128xf32>
    %250 = arith.subf %249, %242 : vector<8x128xf32>
    %251 = arith.mulf %232, %250 : vector<8x128xf32>
    %252 = arith.subf %248, %198 : vector<8x128xf32>
    %253 = arith.mulf %251, %252 : vector<8x128xf32>
    %254 = arith.addf %198, %253 : vector<8x128xf32>
    %255 = tpu.concatenate %254, %229 in 0 : vector<8x128xf32>, vector<8x128xf32> -> vector<16x128xf32>
    %256 = arith.truncf %255 : vector<16x128xf32> to vector<16x128xbf16>
    %c0_67 = arith.constant 0 : index
    %c0_68 = arith.constant 0 : index
    %257 = vector.load %arg4[%c0_67, %c0_68] : memref<128x1152xbf16, #tpu.memory_space<vmem>>, vector<128x1152xbf16>
    %cst_69 = arith.constant dense<0.000000e+00> : vector<16x1152xf32>
    %258 = tpu.matmul %256, %257, %cst_69 {dimension_numbers = #tpu.dot_dimension_numbers<[1], [0], [0], [1], [0, 0, 1, 1], [], []>} : vector<16x128xbf16>, vector<128x1152xbf16>, vector<16x1152xf32> -> vector<16x1152xf32>
    %259 = vector.extract_strided_slice %258 {offsets = [0, 0], sizes = [8, 768], strides = [1, 1]} : vector<16x1152xf32> to vector<8x768xf32>
    %260 = arith.addf %259, %7 : vector<8x768xf32>
    %261 = vector.extract_strided_slice %258 {offsets = [8, 768], sizes = [8, 384], strides = [1, 1]} : vector<16x1152xf32> to vector<8x384xf32>
    %262 = arith.addf %261, %8 : vector<8x384xf32>
    %263 = vector.extract_strided_slice %260 {offsets = [0, 0], sizes = [8, 384], strides = [1, 1]} : vector<8x768xf32> to vector<8x384xf32>
    %264 = vector.extract_strided_slice %260 {offsets = [0, 384], sizes = [8, 384], strides = [1, 1]} : vector<8x768xf32> to vector<8x384xf32>
    %265 = vector.extract_strided_slice %263 {offsets = [0, 0], sizes = [8, 256], strides = [1, 1]} : vector<8x384xf32> to vector<8x256xf32>
    %266 = vector.extract_strided_slice %262 {offsets = [0, 0], sizes = [8, 256], strides = [1, 1]} : vector<8x384xf32> to vector<8x256xf32>
    %267 = arith.addf %265, %266 : vector<8x256xf32>
    %268 = arith.negf %267 : vector<8x256xf32>
    %269 = math.exp %268 : vector<8x256xf32>
    %cst_70 = arith.constant 1.000000e+00 : f32
    %270 = vector.broadcast %cst_70 : f32 to vector<8x256xf32>
    %271 = arith.addf %270, %269 : vector<8x256xf32>
    %272 = arith.divf %270, %271 : vector<8x256xf32>
    %273 = vector.extract_strided_slice %272 {offsets = [0, 128], sizes = [8, 128], strides = [1, 1]} : vector<8x256xf32> to vector<8x128xf32>
    %274 = vector.extract_strided_slice %263 {offsets = [0, 256], sizes = [8, 128], strides = [1, 1]} : vector<8x384xf32> to vector<8x128xf32>
    %275 = vector.extract_strided_slice %272 {offsets = [0, 0], sizes = [8, 128], strides = [1, 1]} : vector<8x256xf32> to vector<8x128xf32>
    %276 = vector.extract_strided_slice %262 {offsets = [0, 256], sizes = [8, 128], strides = [1, 1]} : vector<8x384xf32> to vector<8x128xf32>
    %277 = arith.mulf %275, %276 : vector<8x128xf32>
    %278 = arith.addf %274, %277 : vector<8x128xf32>
    %279 = math.tanh %278 : vector<8x128xf32>
    %cst_71 = arith.constant 1.000000e+00 : f32
    %280 = vector.broadcast %cst_71 : f32 to vector<8x128xf32>
    %281 = arith.subf %280, %273 : vector<8x128xf32>
    %282 = arith.mulf %232, %281 : vector<8x128xf32>
    %283 = arith.subf %279, %229 : vector<8x128xf32>
    %284 = arith.mulf %282, %283 : vector<8x128xf32>
    %285 = arith.addf %229, %284 : vector<8x128xf32>
    %286 = arith.mulf %232, %285 : vector<8x128xf32>
    %c32_72 = arith.constant 32 : index
    %c0_73 = arith.constant 0 : index
    %287 = vector.load %arg11[%c32_72, %c0_73] : memref<64x128xf32, #tpu.memory_space<vmem>>, vector<8x128xf32>
    tpu.vector_store %arg11[%c32_72, %c0_73], %286 {strides = array<i32>} : memref<64x128xf32, #tpu.memory_space<vmem>>, vector<8x128xf32>,
    %c40 = arith.constant 40 : index
    %c0_74 = arith.constant 0 : index
    %288 = vector.load %arg1[%c40, %c0_74] : memref<64x128xf32, #tpu.memory_space<vmem>>, vector<8x128xf32>
    %c40_75 = arith.constant 40 : index
    %c0_76 = arith.constant 0 : index
    %289 = vector.load %arg10[%c40_75, %c0_76] : memref<64x384xf32, #tpu.memory_space<vmem>>, vector<8x384xf32>
    %290 = vector.extract_strided_slice %289 {offsets = [0, 0], sizes = [8, 256], strides = [1, 1]} : vector<8x384xf32> to vector<8x256xf32>
    %291 = vector.extract_strided_slice %264 {offsets = [0, 0], sizes = [8, 256], strides = [1, 1]} : vector<8x384xf32> to vector<8x256xf32>
    %292 = arith.addf %290, %291 : vector<8x256xf32>
    %293 = arith.negf %292 : vector<8x256xf32>
    %294 = math.exp %293 : vector<8x256xf32>
    %cst_77 = arith.constant 1.000000e+00 : f32
    %295 = vector.broadcast %cst_77 : f32 to vector<8x256xf32>
    %296 = arith.addf %295, %294 : vector<8x256xf32>
    %297 = arith.divf %295, %296 : vector<8x256xf32>
    %298 = vector.extract_strided_slice %297 {offsets = [0, 128], sizes = [8, 128], strides = [1, 1]} : vector<8x256xf32> to vector<8x128xf32>
    %299 = vector.extract_strided_slice %289 {offsets = [0, 256], sizes = [8, 128], strides = [1, 1]} : vector<8x384xf32> to vector<8x128xf32>
    %300 = vector.extract_strided_slice %297 {offsets = [0, 0], sizes = [8, 128], strides = [1, 1]} : vector<8x256xf32> to vector<8x128xf32>
    %301 = vector.extract_strided_slice %264 {offsets = [0, 256], sizes = [8, 128], strides = [1, 1]} : vector<8x384xf32> to vector<8x128xf32>
    %302 = arith.mulf %300, %301 : vector<8x128xf32>
    %303 = arith.addf %299, %302 : vector<8x128xf32>
    %304 = math.tanh %303 : vector<8x128xf32>
    %cst_78 = arith.constant 1.000000e+00 : f32
    %305 = vector.broadcast %cst_78 : f32 to vector<8x128xf32>
    %306 = arith.subf %305, %298 : vector<8x128xf32>
    %307 = arith.mulf %288, %306 : vector<8x128xf32>
    %308 = arith.subf %304, %254 : vector<8x128xf32>
    %309 = arith.mulf %307, %308 : vector<8x128xf32>
    %310 = arith.addf %254, %309 : vector<8x128xf32>
    %311 = tpu.concatenate %310, %285 in 0 : vector<8x128xf32>, vector<8x128xf32> -> vector<16x128xf32>
    %312 = arith.truncf %311 : vector<16x128xf32> to vector<16x128xbf16>
    %c0_79 = arith.constant 0 : index
    %c0_80 = arith.constant 0 : index
    %313 = vector.load %arg4[%c0_79, %c0_80] : memref<128x1152xbf16, #tpu.memory_space<vmem>>, vector<128x1152xbf16>
    %cst_81 = arith.constant dense<0.000000e+00> : vector<16x1152xf32>
    %314 = tpu.matmul %312, %313, %cst_81 {dimension_numbers = #tpu.dot_dimension_numbers<[1], [0], [0], [1], [0, 0, 1, 1], [], []>} : vector<16x128xbf16>, vector<128x1152xbf16>, vector<16x1152xf32> -> vector<16x1152xf32>
    %315 = vector.extract_strided_slice %314 {offsets = [0, 0], sizes = [8, 768], strides = [1, 1]} : vector<16x1152xf32> to vector<8x768xf32>
    %316 = arith.addf %315, %7 : vector<8x768xf32>
    %317 = vector.extract_strided_slice %314 {offsets = [8, 768], sizes = [8, 384], strides = [1, 1]} : vector<16x1152xf32> to vector<8x384xf32>
    %318 = arith.addf %317, %8 : vector<8x384xf32>
    %319 = vector.extract_strided_slice %316 {offsets = [0, 0], sizes = [8, 384], strides = [1, 1]} : vector<8x768xf32> to vector<8x384xf32>
    %320 = vector.extract_strided_slice %316 {offsets = [0, 384], sizes = [8, 384], strides = [1, 1]} : vector<8x768xf32> to vector<8x384xf32>
    %321 = vector.extract_strided_slice %319 {offsets = [0, 0], sizes = [8, 256], strides = [1, 1]} : vector<8x384xf32> to vector<8x256xf32>
    %322 = vector.extract_strided_slice %318 {offsets = [0, 0], sizes = [8, 256], strides = [1, 1]} : vector<8x384xf32> to vector<8x256xf32>
    %323 = arith.addf %321, %322 : vector<8x256xf32>
    %324 = arith.negf %323 : vector<8x256xf32>
    %325 = math.exp %324 : vector<8x256xf32>
    %cst_82 = arith.constant 1.000000e+00 : f32
    %326 = vector.broadcast %cst_82 : f32 to vector<8x256xf32>
    %327 = arith.addf %326, %325 : vector<8x256xf32>
    %328 = arith.divf %326, %327 : vector<8x256xf32>
    %329 = vector.extract_strided_slice %328 {offsets = [0, 128], sizes = [8, 128], strides = [1, 1]} : vector<8x256xf32> to vector<8x128xf32>
    %330 = vector.extract_strided_slice %319 {offsets = [0, 256], sizes = [8, 128], strides = [1, 1]} : vector<8x384xf32> to vector<8x128xf32>
    %331 = vector.extract_strided_slice %328 {offsets = [0, 0], sizes = [8, 128], strides = [1, 1]} : vector<8x256xf32> to vector<8x128xf32>
    %332 = vector.extract_strided_slice %318 {offsets = [0, 256], sizes = [8, 128], strides = [1, 1]} : vector<8x384xf32> to vector<8x128xf32>
    %333 = arith.mulf %331, %332 : vector<8x128xf32>
    %334 = arith.addf %330, %333 : vector<8x128xf32>
    %335 = math.tanh %334 : vector<8x128xf32>
    %cst_83 = arith.constant 1.000000e+00 : f32
    %336 = vector.broadcast %cst_83 : f32 to vector<8x128xf32>
    %337 = arith.subf %336, %329 : vector<8x128xf32>
    %338 = arith.mulf %288, %337 : vector<8x128xf32>
    %339 = arith.subf %335, %285 : vector<8x128xf32>
    %340 = arith.mulf %338, %339 : vector<8x128xf32>
    %341 = arith.addf %285, %340 : vector<8x128xf32>
    %342 = arith.mulf %288, %341 : vector<8x128xf32>
    %c40_84 = arith.constant 40 : index
    %c0_85 = arith.constant 0 : index
    %343 = vector.load %arg11[%c40_84, %c0_85] : memref<64x128xf32, #tpu.memory_space<vmem>>, vector<8x128xf32>
    tpu.vector_store %arg11[%c40_84, %c0_85], %342 {strides = array<i32>} : memref<64x128xf32, #tpu.memory_space<vmem>>, vector<8x128xf32>,
    %c48 = arith.constant 48 : index
    %c0_86 = arith.constant 0 : index
    %344 = vector.load %arg1[%c48, %c0_86] : memref<64x128xf32, #tpu.memory_space<vmem>>, vector<8x128xf32>
    %c48_87 = arith.constant 48 : index
    %c0_88 = arith.constant 0 : index
    %345 = vector.load %arg10[%c48_87, %c0_88] : memref<64x384xf32, #tpu.memory_space<vmem>>, vector<8x384xf32>
    %346 = vector.extract_strided_slice %345 {offsets = [0, 0], sizes = [8, 256], strides = [1, 1]} : vector<8x384xf32> to vector<8x256xf32>
    %347 = vector.extract_strided_slice %320 {offsets = [0, 0], sizes = [8, 256], strides = [1, 1]} : vector<8x384xf32> to vector<8x256xf32>
    %348 = arith.addf %346, %347 : vector<8x256xf32>
    %349 = arith.negf %348 : vector<8x256xf32>
    %350 = math.exp %349 : vector<8x256xf32>
    %cst_89 = arith.constant 1.000000e+00 : f32
    %351 = vector.broadcast %cst_89 : f32 to vector<8x256xf32>
    %352 = arith.addf %351, %350 : vector<8x256xf32>
    %353 = arith.divf %351, %352 : vector<8x256xf32>
    %354 = vector.extract_strided_slice %353 {offsets = [0, 128], sizes = [8, 128], strides = [1, 1]} : vector<8x256xf32> to vector<8x128xf32>
    %355 = vector.extract_strided_slice %345 {offsets = [0, 256], sizes = [8, 128], strides = [1, 1]} : vector<8x384xf32> to vector<8x128xf32>
    %356 = vector.extract_strided_slice %353 {offsets = [0, 0], sizes = [8, 128], strides = [1, 1]} : vector<8x256xf32> to vector<8x128xf32>
    %357 = vector.extract_strided_slice %320 {offsets = [0, 256], sizes = [8, 128], strides = [1, 1]} : vector<8x384xf32> to vector<8x128xf32>
    %358 = arith.mulf %356, %357 : vector<8x128xf32>
    %359 = arith.addf %355, %358 : vector<8x128xf32>
    %360 = math.tanh %359 : vector<8x128xf32>
    %cst_90 = arith.constant 1.000000e+00 : f32
    %361 = vector.broadcast %cst_90 : f32 to vector<8x128xf32>
    %362 = arith.subf %361, %354 : vector<8x128xf32>
    %363 = arith.mulf %344, %362 : vector<8x128xf32>
    %364 = arith.subf %360, %310 : vector<8x128xf32>
    %365 = arith.mulf %363, %364 : vector<8x128xf32>
    %366 = arith.addf %310, %365 : vector<8x128xf32>
    %367 = tpu.concatenate %366, %341 in 0 : vector<8x128xf32>, vector<8x128xf32> -> vector<16x128xf32>
    %368 = arith.truncf %367 : vector<16x128xf32> to vector<16x128xbf16>
    %c0_91 = arith.constant 0 : index
    %c0_92 = arith.constant 0 : index
    %369 = vector.load %arg4[%c0_91, %c0_92] : memref<128x1152xbf16, #tpu.memory_space<vmem>>, vector<128x1152xbf16>
    %cst_93 = arith.constant dense<0.000000e+00> : vector<16x1152xf32>
    %370 = tpu.matmul %368, %369, %cst_93 {dimension_numbers = #tpu.dot_dimension_numbers<[1], [0], [0], [1], [0, 0, 1, 1], [], []>} : vector<16x128xbf16>, vector<128x1152xbf16>, vector<16x1152xf32> -> vector<16x1152xf32>
    %371 = vector.extract_strided_slice %370 {offsets = [0, 0], sizes = [8, 768], strides = [1, 1]} : vector<16x1152xf32> to vector<8x768xf32>
    %372 = arith.addf %371, %7 : vector<8x768xf32>
    %373 = vector.extract_strided_slice %370 {offsets = [8, 768], sizes = [8, 384], strides = [1, 1]} : vector<16x1152xf32> to vector<8x384xf32>
    %374 = arith.addf %373, %8 : vector<8x384xf32>
    %375 = vector.extract_strided_slice %372 {offsets = [0, 0], sizes = [8, 384], strides = [1, 1]} : vector<8x768xf32> to vector<8x384xf32>
    %376 = vector.extract_strided_slice %372 {offsets = [0, 384], sizes = [8, 384], strides = [1, 1]} : vector<8x768xf32> to vector<8x384xf32>
    %377 = vector.extract_strided_slice %375 {offsets = [0, 0], sizes = [8, 256], strides = [1, 1]} : vector<8x384xf32> to vector<8x256xf32>
    %378 = vector.extract_strided_slice %374 {offsets = [0, 0], sizes = [8, 256], strides = [1, 1]} : vector<8x384xf32> to vector<8x256xf32>
    %379 = arith.addf %377, %378 : vector<8x256xf32>
    %380 = arith.negf %379 : vector<8x256xf32>
    %381 = math.exp %380 : vector<8x256xf32>
    %cst_94 = arith.constant 1.000000e+00 : f32
    %382 = vector.broadcast %cst_94 : f32 to vector<8x256xf32>
    %383 = arith.addf %382, %381 : vector<8x256xf32>
    %384 = arith.divf %382, %383 : vector<8x256xf32>
    %385 = vector.extract_strided_slice %384 {offsets = [0, 128], sizes = [8, 128], strides = [1, 1]} : vector<8x256xf32> to vector<8x128xf32>
    %386 = vector.extract_strided_slice %375 {offsets = [0, 256], sizes = [8, 128], strides = [1, 1]} : vector<8x384xf32> to vector<8x128xf32>
    %387 = vector.extract_strided_slice %384 {offsets = [0, 0], sizes = [8, 128], strides = [1, 1]} : vector<8x256xf32> to vector<8x128xf32>
    %388 = vector.extract_strided_slice %374 {offsets = [0, 256], sizes = [8, 128], strides = [1, 1]} : vector<8x384xf32> to vector<8x128xf32>
    %389 = arith.mulf %387, %388 : vector<8x128xf32>
    %390 = arith.addf %386, %389 : vector<8x128xf32>
    %391 = math.tanh %390 : vector<8x128xf32>
    %cst_95 = arith.constant 1.000000e+00 : f32
    %392 = vector.broadcast %cst_95 : f32 to vector<8x128xf32>
    %393 = arith.subf %392, %385 : vector<8x128xf32>
    %394 = arith.mulf %344, %393 : vector<8x128xf32>
    %395 = arith.subf %391, %341 : vector<8x128xf32>
    %396 = arith.mulf %394, %395 : vector<8x128xf32>
    %397 = arith.addf %341, %396 : vector<8x128xf32>
    %398 = arith.mulf %344, %397 : vector<8x128xf32>
    %c48_96 = arith.constant 48 : index
    %c0_97 = arith.constant 0 : index
    %399 = vector.load %arg11[%c48_96, %c0_97] : memref<64x128xf32, #tpu.memory_space<vmem>>, vector<8x128xf32>
    tpu.vector_store %arg11[%c48_96, %c0_97], %398 {strides = array<i32>} : memref<64x128xf32, #tpu.memory_space<vmem>>, vector<8x128xf32>,
    %c56 = arith.constant 56 : index
    %c0_98 = arith.constant 0 : index
    %400 = vector.load %arg1[%c56, %c0_98] : memref<64x128xf32, #tpu.memory_space<vmem>>, vector<8x128xf32>
    %c56_99 = arith.constant 56 : index
    %c0_100 = arith.constant 0 : index
    %401 = vector.load %arg10[%c56_99, %c0_100] : memref<64x384xf32, #tpu.memory_space<vmem>>, vector<8x384xf32>
    %402 = vector.extract_strided_slice %401 {offsets = [0, 0], sizes = [8, 256], strides = [1, 1]} : vector<8x384xf32> to vector<8x256xf32>
    %403 = vector.extract_strided_slice %376 {offsets = [0, 0], sizes = [8, 256], strides = [1, 1]} : vector<8x384xf32> to vector<8x256xf32>
    %404 = arith.addf %402, %403 : vector<8x256xf32>
    %405 = arith.negf %404 : vector<8x256xf32>
    %406 = math.exp %405 : vector<8x256xf32>
    %cst_101 = arith.constant 1.000000e+00 : f32
    %407 = vector.broadcast %cst_101 : f32 to vector<8x256xf32>
    %408 = arith.addf %407, %406 : vector<8x256xf32>
    %409 = arith.divf %407, %408 : vector<8x256xf32>
    %410 = vector.extract_strided_slice %409 {offsets = [0, 128], sizes = [8, 128], strides = [1, 1]} : vector<8x256xf32> to vector<8x128xf32>
    %411 = vector.extract_strided_slice %401 {offsets = [0, 256], sizes = [8, 128], strides = [1, 1]} : vector<8x384xf32> to vector<8x128xf32>
    %412 = vector.extract_strided_slice %409 {offsets = [0, 0], sizes = [8, 128], strides = [1, 1]} : vector<8x256xf32> to vector<8x128xf32>
    %413 = vector.extract_strided_slice %376 {offsets = [0, 256], sizes = [8, 128], strides = [1, 1]} : vector<8x384xf32> to vector<8x128xf32>
    %414 = arith.mulf %412, %413 : vector<8x128xf32>
    %415 = arith.addf %411, %414 : vector<8x128xf32>
    %416 = math.tanh %415 : vector<8x128xf32>
    %cst_102 = arith.constant 1.000000e+00 : f32
    %417 = vector.broadcast %cst_102 : f32 to vector<8x128xf32>
    %418 = arith.subf %417, %410 : vector<8x128xf32>
    %419 = arith.mulf %400, %418 : vector<8x128xf32>
    %420 = arith.subf %416, %366 : vector<8x128xf32>
    %421 = arith.mulf %419, %420 : vector<8x128xf32>
    %422 = arith.addf %366, %421 : vector<8x128xf32>
    %423 = tpu.concatenate %422, %397 in 0 : vector<8x128xf32>, vector<8x128xf32> -> vector<16x128xf32>
    %424 = arith.truncf %423 : vector<16x128xf32> to vector<16x128xbf16>
    %c0_103 = arith.constant 0 : index
    %c0_104 = arith.constant 0 : index
    %425 = vector.load %arg4[%c0_103, %c0_104] : memref<128x1152xbf16, #tpu.memory_space<vmem>>, vector<128x1152xbf16>
    %cst_105 = arith.constant dense<0.000000e+00> : vector<16x1152xf32>
    %426 = tpu.matmul %424, %425, %cst_105 {dimension_numbers = #tpu.dot_dimension_numbers<[1], [0], [0], [1], [0, 0, 1, 1], [], []>} : vector<16x128xbf16>, vector<128x1152xbf16>, vector<16x1152xf32> -> vector<16x1152xf32>
    %427 = vector.extract_strided_slice %426 {offsets = [0, 0], sizes = [8, 768], strides = [1, 1]} : vector<16x1152xf32> to vector<8x768xf32>
    %428 = arith.addf %427, %7 : vector<8x768xf32>
    %429 = vector.extract_strided_slice %426 {offsets = [8, 768], sizes = [8, 384], strides = [1, 1]} : vector<16x1152xf32> to vector<8x384xf32>
    %430 = arith.addf %429, %8 : vector<8x384xf32>
    %431 = vector.extract_strided_slice %428 {offsets = [0, 0], sizes = [8, 384], strides = [1, 1]} : vector<8x768xf32> to vector<8x384xf32>
    %432 = vector.extract_strided_slice %431 {offsets = [0, 0], sizes = [8, 256], strides = [1, 1]} : vector<8x384xf32> to vector<8x256xf32>
    %433 = vector.extract_strided_slice %430 {offsets = [0, 0], sizes = [8, 256], strides = [1, 1]} : vector<8x384xf32> to vector<8x256xf32>
    %434 = arith.addf %432, %433 : vector<8x256xf32>
    %435 = arith.negf %434 : vector<8x256xf32>
    %436 = math.exp %435 : vector<8x256xf32>
    %cst_106 = arith.constant 1.000000e+00 : f32
    %437 = vector.broadcast %cst_106 : f32 to vector<8x256xf32>
    %438 = arith.addf %437, %436 : vector<8x256xf32>
    %439 = arith.divf %437, %438 : vector<8x256xf32>
    %440 = vector.extract_strided_slice %439 {offsets = [0, 128], sizes = [8, 128], strides = [1, 1]} : vector<8x256xf32> to vector<8x128xf32>
    %441 = vector.extract_strided_slice %431 {offsets = [0, 256], sizes = [8, 128], strides = [1, 1]} : vector<8x384xf32> to vector<8x128xf32>
    %442 = vector.extract_strided_slice %439 {offsets = [0, 0], sizes = [8, 128], strides = [1, 1]} : vector<8x256xf32> to vector<8x128xf32>
    %443 = vector.extract_strided_slice %430 {offsets = [0, 256], sizes = [8, 128], strides = [1, 1]} : vector<8x384xf32> to vector<8x128xf32>
    %444 = arith.mulf %442, %443 : vector<8x128xf32>
    %445 = arith.addf %441, %444 : vector<8x128xf32>
    %446 = math.tanh %445 : vector<8x128xf32>
    %cst_107 = arith.constant 1.000000e+00 : f32
    %447 = vector.broadcast %cst_107 : f32 to vector<8x128xf32>
    %448 = arith.subf %447, %440 : vector<8x128xf32>
    %449 = arith.mulf %400, %448 : vector<8x128xf32>
    %450 = arith.subf %446, %397 : vector<8x128xf32>
    %451 = arith.mulf %449, %450 : vector<8x128xf32>
    %452 = arith.addf %397, %451 : vector<8x128xf32>
    %453 = arith.mulf %400, %452 : vector<8x128xf32>
    %c56_108 = arith.constant 56 : index
    %c0_109 = arith.constant 0 : index
    %454 = vector.load %arg11[%c56_108, %c0_109] : memref<64x128xf32, #tpu.memory_space<vmem>>, vector<8x128xf32>
    tpu.vector_store %arg11[%c56_108, %c0_109], %453 {strides = array<i32>} : memref<64x128xf32, #tpu.memory_space<vmem>>, vector<8x128xf32>,
    %c0_110 = arith.constant 0 : index
    %c0_111 = arith.constant 0 : index
    %455 = vector.load %arg11[%c0_110, %c0_111] : memref<64x128xf32, #tpu.memory_space<vmem>>, vector<64x128xf32>
    %456 = arith.truncf %455 : vector<64x128xf32> to vector<64x128xbf16>
    %c0_112 = arith.constant 0 : index
    %c0_113 = arith.constant 0 : index
    %457 = vector.load %arg7[%c0_112, %c0_113] : memref<128x128xbf16, #tpu.memory_space<vmem>>, vector<128x128xbf16>
    %cst_114 = arith.constant dense<0.000000e+00> : vector<64x128xf32>
    %458 = tpu.matmul %456, %457, %cst_114 {dimension_numbers = #tpu.dot_dimension_numbers<[1], [0], [0], [1], [0, 0, 1, 1], [], []>} : vector<64x128xbf16>, vector<128x128xbf16>, vector<64x128xf32> -> vector<64x128xf32>
    %c0_115 = arith.constant 0 : index
    %c0_116 = arith.constant 0 : index
    %459 = vector.load %arg8[%c0_115, %c0_116] : memref<1x128xf32, #tpu.memory_space<vmem>>, vector<1x128xf32>
    %460 = vector.broadcast %459 : vector<1x128xf32> to vector<64x128xf32>
    %461 = arith.addf %458, %460 : vector<64x128xf32>
    %462 = math.tanh %461 : vector<64x128xf32>
    %c0_117 = arith.constant 0 : index
    %c0_118 = arith.constant 0 : index
    %463 = vector.load %arg9[%c0_117, %c0_118] : memref<64x128xf32, #tpu.memory_space<vmem>>, vector<64x128xf32>
    tpu.vector_store %arg9[%c0_117, %c0_118], %462 {strides = array<i32>} : memref<64x128xf32, #tpu.memory_space<vmem>>, vector<64x128xf32>,
    return
  }
}

</mosaic_0001>

<llo_original>
// kernel: _lambda_.1
$region0: #{_lambda_.1}
  #allocation0 [shape = 'u32[]', space=smem, size = 0x4, offset = 0x4, fixed_abs, tag = 'smem constant byte address 0x4 - core index']
  #allocation1 [shape = 'u32[144,128]{1,0:T(1,128)}', space=vmem, size = 0x12000, scoped, tag = 'internal scratch']
  #allocation2 [shape = 'f32[64,384]{1,0:T(8,128)}', space=vmem, size = 0x18000, scoped, tag = 'scratch operand']
  #allocation3 [shape = 'f32[64,128]{1,0:T(8,128)}', space=vmem, size = 0x8000, scoped, tag = 'scratch operand']
  %s0 = inlined_call_operand.vmem [shape: bf16[64,128], index: 0, kind: input, shape index: {}]
  %s1 = inlined_call_operand.vmem [shape: f32[64,128], index: 1, kind: input, shape index: {}]
  %s2 = inlined_call_operand.hbm [shape: bf16[128,384], index: 2, kind: input, shape index: {}]
  %s3 = inlined_call_operand.vmem [shape: f32[1,384], index: 3, kind: input, shape index: {}]
  %s4 = inlined_call_operand.vmem [shape: bf16[128,1152], index: 4, kind: input, shape index: {}]
  %s5 = inlined_call_operand.vmem [shape: f32[8,768], index: 5, kind: input, shape index: {}]
  %s6 = inlined_call_operand.vmem [shape: f32[8,384], index: 6, kind: input, shape index: {}]
  %s7 = inlined_call_operand.vmem [shape: bf16[128,128], index: 7, kind: input, shape index: {}]
  %s8 = inlined_call_operand.vmem [shape: f32[1,128], index: 8, kind: input, shape index: {}]
  %s9 = inlined_call_operand.vmem [shape: f32[64,128], index: 9, kind: output, shape index: {}]
  %s10 = sld [smem:[#allocation0]]
  $region50: #{_lambda_.1} parent=0
    _
  %s12 = ssub.s32 1, %s10
  %s13 = scalar_select 0, %s12, %s10
  $region1: #{_lambda_.1} parent=0
    #allocation4 [shape = 'u8[98304]{0}', space=vmem, size = 0x18000, scoped, tag = 'input window, operand 2, single buffered']
    #allocation5 [shape = 's32[1]{0}', space=sflag, size = 0x4, scoped, tag = 'scoped memory for _lambda_.1']
    %14 = vsyncpa [#allocation5], 0
    // Predicated region
    $region2: #{_lambda_.1} parent=1 // pred_check
      _
    $region3: #{_lambda_.1} parent=1 // pred_check_branch
      %16 = sbr.rel (0) target = $region5
    $region4: #{_lambda_.1} parent=1 // pred_region
      _
    $region5: #{_lambda_.1} parent=1 // pred_fallthru
      _
    // Predicated region
    $region6: #{_lambda_.1} parent=1 // pred_check
      _
    $region7: #{_lambda_.1} parent=1 // pred_check_branch
      %18 = sbr.rel (0) target = $region9
    $region8: #{_lambda_.1} parent=1 // pred_region
      _
    $region9: #{_lambda_.1} parent=1 // pred_fallthru
      _
    // Predicated region
    $region10: #{_lambda_.1} parent=1 // pred_check
      _
    $region11: #{_lambda_.1} parent=1 // pred_check_branch
      %20 = sbr.rel (0) target = $region13
    $region12: #{_lambda_.1} parent=1 // pred_region
      %s22 = ssub.s32 3072, 3072
      %23 = vsyncadd [#allocation5], %s22
      %s24 = sshll.u32 [#allocation4], 4
      %s25 = int_to_ptr.vmem [resolvable:$true] %s24
      %30 = dma.hbm_to_vmem [thread:$0]  %s2, 3072, %s25, [#allocation5], 192, 192, 12
    $region13: #{_lambda_.1} parent=1 // pred_fallthru
      _
    // Predicated region
    $region14: #{_lambda_.1} parent=1 // pred_check
      _
    $region15: #{_lambda_.1} parent=1 // pred_check_branch
      %32 = sbr.rel (0) target = $region17
    $region16: #{_lambda_.1} parent=1 // pred_region
      _
    $region17: #{_lambda_.1} parent=1 // pred_fallthru
      _
    // Predicated region
    $region18: #{_lambda_.1} parent=1 // pred_check
      _
    $region19: #{_lambda_.1} parent=1 // pred_check_branch
      %34 = sbr.rel (0) target = $region21
    $region20: #{_lambda_.1} parent=1 // pred_region
      _
    $region21: #{_lambda_.1} parent=1 // pred_fallthru
      _
    // Predicated region
    $region22: #{_lambda_.1} parent=1 // pred_check
      _
    $region23: #{_lambda_.1} parent=1 // pred_check_branch
      %36 = sbr.rel (0) target = $region25
    $region24: #{_lambda_.1} parent=1 // pred_region
      _
    $region25: #{_lambda_.1} parent=1 // pred_fallthru
      _
    // Predicated region
    $region26: #{_lambda_.1} parent=1 // pred_check
      _
    $region27: #{_lambda_.1} parent=1 // pred_check_branch
      %38 = sbr.rel (0) target = $region29
    $region28: #{_lambda_.1} parent=1 // pred_region
      _
    $region29: #{_lambda_.1} parent=1 // pred_fallthru
      _
    // Predicated region
    $region30: #{_lambda_.1} parent=1 // pred_check
      _
    $region31: #{_lambda_.1} parent=1 // pred_check_branch
      %40 = sbr.rel (0) target = $region33
    $region32: #{_lambda_.1} parent=1 // pred_region
      _
    $region33: #{_lambda_.1} parent=1 // pred_fallthru
      _
    // Predicated region
    $region34: #{_lambda_.1} parent=1 // pred_check
      _
    $region35: #{_lambda_.1} parent=1 // pred_check_branch
      %42 = sbr.rel (0) target = $region37
    $region36: #{_lambda_.1} parent=1 // pred_region
      _
    $region37: #{_lambda_.1} parent=1 // pred_fallthru
      _
    // Predicated region
    $region38: #{_lambda_.1} parent=1 // pred_check
      _
    $region39: #{_lambda_.1} parent=1 // pred_check_branch
      %44 = sbr.rel (0) target = $region41
    $region40: #{_lambda_.1} parent=1 // pred_region
      %45 = dma.done [#allocation5], 3072
    $region41: #{_lambda_.1} parent=1 // pred_fallthru
      _
    %v47 = vld [vmem:[%s0] sm:$0xf]
    %v48 = vld [vmem:[%s0 + $0x4] sm:$0xf]
    %v49 = vld [vmem:[%s0 + $0x8] sm:$0xf]
    %v50 = vld [vmem:[%s0 + $0xc] sm:$0xf]
    %v51 = vld [vmem:[%s0 + $0x10] sm:$0xf]
    %v52 = vld [vmem:[%s0 + $0x14] sm:$0xf]
    %v53 = vld [vmem:[%s0 + $0x18] sm:$0xf]
    %v54 = vld [vmem:[%s0 + $0x1c] sm:$0xf]
    %v55 = vld [vmem:[#allocation4] sm:$0xff]
    %v56 = vld [vmem:[#allocation4 + $0x8] sm:$0xf]
    %v57 = vld [vmem:[#allocation4 + $0xc] sm:$0xff]
    %v58 = vld [vmem:[#allocation4 + $0x14] sm:$0xf]
    %v59 = vld [vmem:[#allocation4 + $0x18] sm:$0xff]
    %v60 = vld [vmem:[#allocation4 + $0x20] sm:$0xf]
    %v61 = vld [vmem:[#allocation4 + $0x24] sm:$0xff]
    %v62 = vld [vmem:[#allocation4 + $0x2c] sm:$0xf]
    %v63 = vld [vmem:[#allocation4 + $0x30] sm:$0xff]
    %v64 = vld [vmem:[#allocation4 + $0x38] sm:$0xf]
    %v65 = vld [vmem:[#allocation4 + $0x3c] sm:$0xff]
    %v66 = vld [vmem:[#allocation4 + $0x44] sm:$0xf]
    %v67 = vld [vmem:[#allocation4 + $0x48] sm:$0xff]
    %v68 = vld [vmem:[#allocation4 + $0x50] sm:$0xf]
    %v69 = vld [vmem:[#allocation4 + $0x54] sm:$0xff]
    %v70 = vld [vmem:[#allocation4 + $0x5c] sm:$0xf]
    %v71 = vld [vmem:[#allocation4 + $0x60] sm:$0xff]
    %v72 = vld [vmem:[#allocation4 + $0x68] sm:$0xf]
    %v73 = vld [vmem:[#allocation4 + $0x6c] sm:$0xff]
    %v74 = vld [vmem:[#allocation4 + $0x74] sm:$0xf]
    %v75 = vld [vmem:[#allocation4 + $0x78] sm:$0xff]
    %v76 = vld [vmem:[#allocation4 + $0x80] sm:$0xf]
    %v77 = vld [vmem:[#allocation4 + $0x84] sm:$0xff]
    %v78 = vld [vmem:[#allocation4 + $0x8c] sm:$0xf]
    %v79 = vld [vmem:[#allocation4 + $0x90] sm:$0xff]
    %v80 = vld [vmem:[#allocation4 + $0x98] sm:$0xf]
    %v81 = vld [vmem:[#allocation4 + $0x9c] sm:$0xff]
    %v82 = vld [vmem:[#allocation4 + $0xa4] sm:$0xf]
    %v83 = vld [vmem:[#allocation4 + $0xa8] sm:$0xff]
    %v84 = vld [vmem:[#allocation4 + $0xb0] sm:$0xf]
    %v85 = vld [vmem:[#allocation4 + $0xb4] sm:$0xff]
    %v86 = vld [vmem:[#allocation4 + $0xbc] sm:$0xf]
    %v87 = vld [vmem:[%s3] sm:$0x7]
    %v89 = vlaneseq
    %v90 = vshrl.u32 %v89, 7
    %v91 = vsub.s32 0, %v90
    %v92 = vrot.slane %v87, %v91
    %v93 = vlaneseq
    %v94 = vshrl.u32 %v93, 7
    %v95 = vsub.s32 1, %v94
    %v96 = vrot.slane %v87, %v95
    %v97 = vlaneseq
    %v98 = vshrl.u32 %v97, 7
    %v99 = vsub.s32 2, %v98
    %v100 = vrot.slane %v87, %v99
    %v112 = vunpack.c.l.b16 %v47
    %v113 = vunpack.c.l.b16 %v48
    %v114 = vunpack.c.l.b16 %v49
    %v115 = vunpack.c.l.b16 %v50
    %v116 = vunpack.c.l.b16 %v51
    %v117 = vunpack.c.l.b16 %v52
    %v118 = vunpack.c.l.b16 %v53
    %v119 = vunpack.c.l.b16 %v54
    %v120 = vpack.c.b16 %v113, %v112
    %v121 = vpack.c.b16 %v115, %v114
    %v122 = vpack.c.b16 %v117, %v116
    %v123 = vpack.c.b16 %v119, %v118
    %v160 = vunpack.c.l.b16 %v55
    %v161 = vunpack.c.h.b16 %v55
    %v162 = vunpack.c.l.b16 %v56
    %v163 = vunpack.c.l.b16 %v57
    %v164 = vunpack.c.h.b16 %v57
    %v165 = vunpack.c.l.b16 %v58
    %v166 = vunpack.c.l.b16 %v59
    %v167 = vunpack.c.h.b16 %v59
    %v168 = vunpack.c.l.b16 %v60
    %v169 = vunpack.c.l.b16 %v61
    %v170 = vunpack.c.h.b16 %v61
    %v171 = vunpack.c.l.b16 %v62
    %v172 = vunpack.c.l.b16 %v63
    %v173 = vunpack.c.h.b16 %v63
    %v174 = vunpack.c.l.b16 %v64
    %v175 = vunpack.c.l.b16 %v65
    %v176 = vunpack.c.h.b16 %v65
    %v177 = vunpack.c.l.b16 %v66
    %v178 = vunpack.c.l.b16 %v67
    %v179 = vunpack.c.h.b16 %v67
    %v180 = vunpack.c.l.b16 %v68
    %v181 = vunpack.c.l.b16 %v69
    %v182 = vunpack.c.h.b16 %v69
    %v183 = vunpack.c.l.b16 %v70
    %v184 = vunpack.c.l.b16 %v71
    %v185 = vunpack.c.h.b16 %v71
    %v186 = vunpack.c.l.b16 %v72
    %v187 = vunpack.c.l.b16 %v73
    %v188 = vunpack.c.h.b16 %v73
    %v189 = vunpack.c.l.b16 %v74
    %v190 = vunpack.c.l.b16 %v75
    %v191 = vunpack.c.h.b16 %v75
    %v192 = vunpack.c.l.b16 %v76
    %v193 = vunpack.c.l.b16 %v77
    %v194 = vunpack.c.h.b16 %v77
    %v195 = vunpack.c.l.b16 %v78
    %v196 = vunpack.c.l.b16 %v79
    %v197 = vunpack.c.h.b16 %v79
    %v198 = vunpack.c.l.b16 %v80
    %v199 = vunpack.c.l.b16 %v81
    %v200 = vunpack.c.h.b16 %v81
    %v201 = vunpack.c.l.b16 %v82
    %v202 = vunpack.c.l.b16 %v83
    %v203 = vunpack.c.h.b16 %v83
    %v204 = vunpack.c.l.b16 %v84
    %v205 = vunpack.c.l.b16 %v85
    %v206 = vunpack.c.h.b16 %v85
    %v207 = vunpack.c.l.b16 %v86
    %v208 = vpack.c.b16 %v163, %v160
    %v209 = vpack.c.b16 %v164, %v161
    %v210 = vpack.c.b16 %v165, %v162
    %v211 = vpack.c.b16 %v169, %v166
    %v212 = vpack.c.b16 %v170, %v167
    %v213 = vpack.c.b16 %v171, %v168
    %v214 = vpack.c.b16 %v175, %v172
    %v215 = vpack.c.b16 %v176, %v173
    %v216 = vpack.c.b16 %v177, %v174
    %v217 = vpack.c.b16 %v181, %v178
    %v218 = vpack.c.b16 %v182, %v179
    %v219 = vpack.c.b16 %v183, %v180
    %v220 = vpack.c.b16 %v187, %v184
    %v221 = vpack.c.b16 %v188, %v185
    %v222 = vpack.c.b16 %v189, %v186
    %v223 = vpack.c.b16 %v193, %v190
    %v224 = vpack.c.b16 %v194, %v191
    %v225 = vpack.c.b16 %v195, %v192
    %v226 = vpack.c.b16 %v199, %v196
    %v227 = vpack.c.b16 %v200, %v197
    %v228 = vpack.c.b16 %v201, %v198
    %v229 = vpack.c.b16 %v205, %v202
    %v230 = vpack.c.b16 %v206, %v203
    %v231 = vpack.c.b16 %v207, %v204
    %256 = vmatprep.subr.bf16.mxu0 %v230
    %257 = vmatpush1.bf16.msra.mxu0 %v229
    %258 = vmatprep.subr.bf16.mxu0 %v227
    %259 = vmatpush1.bf16.msra.mxu0 %v226
    %260 = vmatprep.subr.bf16.mxu0 %v224
    %261 = vmatpush1.bf16.msra.mxu0 %v223
    %262 = vmatprep.subr.bf16.mxu0 %v221
    %263 = vmatpush1.bf16.msra.mxu0 %v220
    %264 = vmatprep.subr.bf16.mxu0 %v218
    %265 = vmatpush1.bf16.msra.mxu0 %v217
    %266 = vmatprep.subr.bf16.mxu0 %v215
    %267 = vmatpush1.bf16.msra.mxu0 %v214
    %268 = vmatprep.subr.bf16.mxu0 %v212
    %269 = vmatpush1.bf16.msra.mxu0 %v211
    %270 = vmatprep.subr.bf16.mxu0 %v209
    %271 = vmatpush1.bf16.msra.mxu0 %v208
    %272 = vmatprep.subr.bf16.mxu0 0
    %273 = vmatpush2.bf16.msra.mxu0 0
    %274 = vmatprep.subr.bf16.mxu0 0
    %275 = vmatpush2.bf16.msra.mxu0 0
    %276 = vmatprep.subr.bf16.mxu0 0
    %277 = vmatpush2.bf16.msra.mxu0 0
    %278 = vmatprep.subr.bf16.mxu0 0
    %279 = vmatpush2.bf16.msra.mxu0 0
    %280 = vmatprep.subr.bf16.mxu0 0
    %281 = vmatpush2.bf16.msra.mxu0 0
    %282 = vmatprep.subr.bf16.mxu0 0
    %283 = vmatpush2.bf16.msra.mxu0 0
    %284 = vmatprep.subr.bf16.mxu0 0
    %285 = vmatpush2.bf16.msra.mxu0 0
    %286 = vmatprep.subr.bf16.mxu0 0
    %287 = vmatpush2.bf16.msra.mxu0 0
    %288 = vmatprep.mubr.bf16.mxu0 0
    %289 = vmatmul.mubr.bf16.gmra.mxu0 %v120
    %v290 = vpop.f32.mrf.mxu0
    %v291 = vadd.f32 %v92, %v290
    %v292 = vpop.f32.mrf.mxu0
    %v293 = vadd.f32 %v96, %v292
    %v294 = vpop.f32.mrf.mxu0
    %v295 = vadd.f32 %v92, %v294
    %v296 = vpop.f32.mrf.mxu0
    %v297 = vadd.f32 %v96, %v296
    %298 = vmatprep.mubr.bf16.mxu0 0
    %299 = vmatmul.mubr.bf16.gmra.mxu0 %v121
    %v300 = vpop.f32.mrf.mxu0
    %v301 = vadd.f32 %v92, %v300
    %v302 = vpop.f32.mrf.mxu0
    %v303 = vadd.f32 %v96, %v302
    %v304 = vpop.f32.mrf.mxu0
    %v305 = vadd.f32 %v92, %v304
    %v306 = vpop.f32.mrf.mxu0
    %v307 = vadd.f32 %v96, %v306
    %308 = vmatprep.mubr.bf16.mxu0 0
    %309 = vmatmul.mubr.bf16.gmra.mxu0 %v122
    %v310 = vpop.f32.mrf.mxu0
    %v311 = vadd.f32 %v92, %v310
    %v312 = vpop.f32.mrf.mxu0
    %v313 = vadd.f32 %v96, %v312
    %v314 = vpop.f32.mrf.mxu0
    %v315 = vadd.f32 %v92, %v314
    %v316 = vpop.f32.mrf.mxu0
    %v317 = vadd.f32 %v96, %v316
    %318 = vmatprep.mubr.bf16.mxu0 0
    %319 = vmatmul.mubr.bf16.gmra.mxu0 %v123
    %v320 = vpop.f32.mrf.mxu0
    %v321 = vadd.f32 %v92, %v320
    %v322 = vpop.f32.mrf.mxu0
    %v323 = vadd.f32 %v96, %v322
    %v324 = vpop.f32.mrf.mxu0
    %v325 = vadd.f32 %v92, %v324
    %v326 = vpop.f32.mrf.mxu0
    %v327 = vadd.f32 %v96, %v326
    %328 = vdwg.mxu0
    %329 = vmatprep.subr.bf16.mxu0 0
    %330 = vmatpush1.bf16.msra.mxu0 %v231
    %331 = vmatprep.subr.bf16.mxu0 0
    %332 = vmatpush1.bf16.msra.mxu0 %v228
    %333 = vmatprep.subr.bf16.mxu0 0
    %334 = vmatpush1.bf16.msra.mxu0 %v225
    %335 = vmatprep.subr.bf16.mxu0 0
    %336 = vmatpush1.bf16.msra.mxu0 %v222
    %337 = vmatprep.subr.bf16.mxu0 0
    %338 = vmatpush1.bf16.msra.mxu0 %v219
    %339 = vmatprep.subr.bf16.mxu0 0
    %340 = vmatpush1.bf16.msra.mxu0 %v216
    %341 = vmatprep.subr.bf16.mxu0 0
    %342 = vmatpush1.bf16.msra.mxu0 %v213
    %343 = vmatprep.subr.bf16.mxu0 0
    %344 = vmatpush1.bf16.msra.mxu0 %v210
    %345 = vmatprep.subr.bf16.mxu0 0
    %346 = vmatpush2.bf16.msra.mxu0 0
    %347 = vmatprep.subr.bf16.mxu0 0
    %348 = vmatpush2.bf16.msra.mxu0 0
    %349 = vmatprep.subr.bf16.mxu0 0
    %350 = vmatpush2.bf16.msra.mxu0 0
    %351 = vmatprep.subr.bf16.mxu0 0
    %352 = vmatpush2.bf16.msra.mxu0 0
    %353 = vmatprep.subr.bf16.mxu0 0
    %354 = vmatpush2.bf16.msra.mxu0 0
    %355 = vmatprep.subr.bf16.mxu0 0
    %356 = vmatpush2.bf16.msra.mxu0 0
    %357 = vmatprep.subr.bf16.mxu0 0
    %358 = vmatpush2.bf16.msra.mxu0 0
    %359 = vmatprep.subr.bf16.mxu0 0
    %360 = vmatpush2.bf16.msra.mxu0 0
    %361 = vmatprep.mubr.bf16.mxu0 0
    %362 = vmatmul.mubr.bf16.gmra.mxu0 %v120
    %v363 = vpop.f32.mrf.mxu0
    %v364 = vadd.f32 %v100, %v363
    %v365 = vpop.f32.mrf.mxu0
    %v366 = vpop.f32.mrf.mxu0
    %v367 = vadd.f32 %v100, %v366
    %v368 = vpop.f32.mrf.mxu0
    %369 = vmatprep.mubr.bf16.mxu0 0
    %370 = vmatmul.mubr.bf16.gmra.mxu0 %v121
    %v371 = vpop.f32.mrf.mxu0
    %v372 = vadd.f32 %v100, %v371
    %v373 = vpop.f32.mrf.mxu0
    %v374 = vpop.f32.mrf.mxu0
    %v375 = vadd.f32 %v100, %v374
    %v376 = vpop.f32.mrf.mxu0
    %377 = vmatprep.mubr.bf16.mxu0 0
    %378 = vmatmul.mubr.bf16.gmra.mxu0 %v122
    %v379 = vpop.f32.mrf.mxu0
    %v380 = vadd.f32 %v100, %v379
    %v381 = vpop.f32.mrf.mxu0
    %v382 = vpop.f32.mrf.mxu0
    %v383 = vadd.f32 %v100, %v382
    %v384 = vpop.f32.mrf.mxu0
    %385 = vmatprep.mubr.bf16.mxu0 0
    %386 = vmatmul.mubr.bf16.gmra.mxu0 %v123
    %v387 = vpop.f32.mrf.mxu0
    %v388 = vadd.f32 %v100, %v387
    %v389 = vpop.f32.mrf.mxu0
    %v390 = vpop.f32.mrf.mxu0
    %v391 = vadd.f32 %v100, %v390
    %v392 = vpop.f32.mrf.mxu0
    %393 = vdwg.mxu0
    %394 = vst [vmem:[#allocation2] sm:$0xff] %v291
    %395 = vst [vmem:[#allocation2 + $0x8] sm:$0xff] %v293
    %396 = vst [vmem:[#allocation2 + $0x10] sm:$0xff] %v364
    %397 = vst [vmem:[#allocation2 + $0x18] sm:$0xff] %v295
    %398 = vst [vmem:[#allocation2 + $0x20] sm:$0xff] %v297
    %399 = vst [vmem:[#allocation2 + $0x28] sm:$0xff] %v367
    %400 = vst [vmem:[#allocation2 + $0x30] sm:$0xff] %v301
    %401 = vst [vmem:[#allocation2 + $0x38] sm:$0xff] %v303
    %402 = vst [vmem:[#allocation2 + $0x40] sm:$0xff] %v372
    %403 = vst [vmem:[#allocation2 + $0x48] sm:$0xff] %v305
    %404 = vst [vmem:[#allocation2 + $0x50] sm:$0xff] %v307
    %405 = vst [vmem:[#allocation2 + $0x58] sm:$0xff] %v375
    %406 = vst [vmem:[#allocation2 + $0x60] sm:$0xff] %v311
    %407 = vst [vmem:[#allocation2 + $0x68] sm:$0xff] %v313
    %408 = vst [vmem:[#allocation2 + $0x70] sm:$0xff] %v380
    %409 = vst [vmem:[#allocation2 + $0x78] sm:$0xff] %v315
    %410 = vst [vmem:[#allocation2 + $0x80] sm:$0xff] %v317
    %411 = vst [vmem:[#allocation2 + $0x88] sm:$0xff] %v383
    %412 = vst [vmem:[#allocation2 + $0x90] sm:$0xff] %v321
    %413 = vst [vmem:[#allocation2 + $0x98] sm:$0xff] %v323
    %414 = vst [vmem:[#allocation2 + $0xa0] sm:$0xff] %v388
    %415 = vst [vmem:[#allocation2 + $0xa8] sm:$0xff] %v325
    %416 = vst [vmem:[#allocation2 + $0xb0] sm:$0xff] %v327
    %417 = vst [vmem:[#allocation2 + $0xb8] sm:$0xff] %v391
    %v418 = vld [vmem:[%s5] sm:$0xff]
    %v419 = vld [vmem:[%s5 + $0x8] sm:$0xff]
    %v420 = vld [vmem:[%s5 + $0x10] sm:$0xff]
    %v421 = vld [vmem:[%s5 + $0x18] sm:$0xff]
    %v422 = vld [vmem:[%s5 + $0x20] sm:$0xff]
    %v423 = vld [vmem:[%s5 + $0x28] sm:$0xff]
    %v424 = vld [vmem:[%s6] sm:$0xff]
    %v425 = vld [vmem:[%s6 + $0x8] sm:$0xff]
    %v426 = vld [vmem:[%s6 + $0x10] sm:$0xff]
    %v427 = vld [vmem:[%s1] sm:$0xff]
    %v428 = vld [vmem:[#allocation2] sm:$0xff]
    %v429 = vld [vmem:[#allocation2 + $0x8] sm:$0xff]
    %v430 = vld [vmem:[#allocation2 + $0x10] sm:$0xff]
    %v431 = vadd.f32 %v428, %v421
    %v432 = vadd.f32 %v429, %v422
    %v433 = vxor.u32 %v431, 2147483648
    %v434 = vxor.u32 %v432, 2147483648
    %v435 = vmul.f32 %v433, 1.442695
    %v436 = vpow.pop %v435
    %v437 = vmul.f32 %v434, 1.442695
    %v438 = vpow.pop %v437
    %v439 = vadd.f32 %v436, 1.0
    %v440 = vadd.f32 %v438, 1.0
    %v441 = vrcp.pop %v439
    %v442 = vmul.f32 1.0, %v441
    %v443 = vrcp.pop %v440
    %v444 = vmul.f32 1.0, %v443
    %v445 = vmul.f32 %v442, %v423
    %v446 = vadd.f32 %v430, %v445
    %v447 = vtanh.pop %v446
    %v448 = vsub.f32 1.0, %v444
    %v449 = vmul.f32 %v427, %v448
    %v450 = vmul.f32 %v449, %v447
    %v451 = vadd.f32 %v450, 0.0
    %v452 = vpack.c.bf16 %v451, %v451
    %v453 = vld [vmem:[%s4] sm:$0xff]
    %v454 = vld [vmem:[%s4 + $0x8] sm:$0xff]
    %v455 = vld [vmem:[%s4 + $0x10] sm:$0xff]
    %v456 = vld [vmem:[%s4 + $0x24] sm:$0xff]
    %v457 = vld [vmem:[%s4 + $0x2c] sm:$0xff]
    %v458 = vld [vmem:[%s4 + $0x34] sm:$0xff]
    %v459 = vld [vmem:[%s4 + $0x48] sm:$0xff]
    %v460 = vld [vmem:[%s4 + $0x50] sm:$0xff]
    %v461 = vld [vmem:[%s4 + $0x58] sm:$0xff]
    %v462 = vld [vmem:[%s4 + $0x6c] sm:$0xff]
    %v463 = vld [vmem:[%s4 + $0x74] sm:$0xff]
    %v464 = vld [vmem:[%s4 + $0x7c] sm:$0xff]
    %v465 = vld [vmem:[%s4 + $0x90] sm:$0xff]
    %v466 = vld [vmem:[%s4 + $0x98] sm:$0xff]
    %v467 = vld [vmem:[%s4 + $0xa0] sm:$0xff]
    %v468 = vld [vmem:[%s4 + $0xb4] sm:$0xff]
    %v469 = vld [vmem:[%s4 + $0xbc] sm:$0xff]
    %v470 = vld [vmem:[%s4 + $0xc4] sm:$0xff]
    %v471 = vld [vmem:[%s4 + $0xd8] sm:$0xff]
    %v472 = vld [vmem:[%s4 + $0xe0] sm:$0xff]
    %v473 = vld [vmem:[%s4 + $0xe8] sm:$0xff]
    %v474 = vld [vmem:[%s4 + $0xfc] sm:$0xff]
    %v475 = vld [vmem:[%s4 + $0x104] sm:$0xff]
    %v476 = vld [vmem:[%s4 + $0x10c] sm:$0xff]
    %v477 = vld [vmem:[%s4 + $0x120] sm:$0xff]
    %v478 = vld [vmem:[%s4 + $0x128] sm:$0xff]
    %v479 = vld [vmem:[%s4 + $0x130] sm:$0xff]
    %v480 = vld [vmem:[%s4 + $0x144] sm:$0xff]
    %v481 = vld [vmem:[%s4 + $0x14c] sm:$0xff]
    %v482 = vld [vmem:[%s4 + $0x154] sm:$0xff]
    %v483 = vld [vmem:[%s4 + $0x168] sm:$0xff]
    %v484 = vld [vmem:[%s4 + $0x170] sm:$0xff]
    %v485 = vld [vmem:[%s4 + $0x178] sm:$0xff]
    %v486 = vld [vmem:[%s4 + $0x18c] sm:$0xff]
    %v487 = vld [vmem:[%s4 + $0x194] sm:$0xff]
    %v488 = vld [vmem:[%s4 + $0x19c] sm:$0xff]
    %v489 = vld [vmem:[%s4 + $0x1b0] sm:$0xff]
    %v490 = vld [vmem:[%s4 + $0x1b8] sm:$0xff]
    %v491 = vld [vmem:[%s4 + $0x1c0] sm:$0xff]
    %v492 = vld [vmem:[%s4 + $0x1d4] sm:$0xff]
    %v493 = vld [vmem:[%s4 + $0x1dc] sm:$0xff]
    %v494 = vld [vmem:[%s4 + $0x1e4] sm:$0xff]
    %v495 = vld [vmem:[%s4 + $0x1f8] sm:$0xff]
    %v496 = vld [vmem:[%s4 + $0x200] sm:$0xff]
    %v497 = vld [vmem:[%s4 + $0x208] sm:$0xff]
    %v498 = vld [vmem:[%s4 + $0x21c] sm:$0xff]
    %v499 = vld [vmem:[%s4 + $0x224] sm:$0xff]
    %v500 = vld [vmem:[%s4 + $0x22c] sm:$0xff]
    %v549 = vunpack.c.l.b16 %v453
    %v550 = vunpack.c.h.b16 %v453
    %v551 = vunpack.c.l.b16 %v454
    %v552 = vunpack.c.h.b16 %v454
    %v553 = vunpack.c.l.b16 %v455
    %v554 = vunpack.c.h.b16 %v455
    %v555 = vunpack.c.l.b16 %v456
    %v556 = vunpack.c.h.b16 %v456
    %v557 = vunpack.c.l.b16 %v457
    %v558 = vunpack.c.h.b16 %v457
    %v559 = vunpack.c.l.b16 %v458
    %v560 = vunpack.c.h.b16 %v458
    %v561 = vunpack.c.l.b16 %v459
    %v562 = vunpack.c.h.b16 %v459
    %v563 = vunpack.c.l.b16 %v460
    %v564 = vunpack.c.h.b16 %v460
    %v565 = vunpack.c.l.b16 %v461
    %v566 = vunpack.c.h.b16 %v461
    %v567 = vunpack.c.l.b16 %v462
    %v568 = vunpack.c.h.b16 %v462
    %v569 = vunpack.c.l.b16 %v463
    %v570 = vunpack.c.h.b16 %v463
    %v571 = vunpack.c.l.b16 %v464
    %v572 = vunpack.c.h.b16 %v464
    %v573 = vunpack.c.l.b16 %v465
    %v574 = vunpack.c.h.b16 %v465
    %v575 = vunpack.c.l.b16 %v466
    %v576 = vunpack.c.h.b16 %v466
    %v577 = vunpack.c.l.b16 %v467
    %v578 = vunpack.c.h.b16 %v467
    %v579 = vunpack.c.l.b16 %v468
    %v580 = vunpack.c.h.b16 %v468
    %v581 = vunpack.c.l.b16 %v469
    %v582 = vunpack.c.h.b16 %v469
    %v583 = vunpack.c.l.b16 %v470
    %v584 = vunpack.c.h.b16 %v470
    %v585 = vunpack.c.l.b16 %v471
    %v586 = vunpack.c.h.b16 %v471
    %v587 = vunpack.c.l.b16 %v472
    %v588 = vunpack.c.h.b16 %v472
    %v589 = vunpack.c.l.b16 %v473
    %v590 = vunpack.c.h.b16 %v473
    %v591 = vunpack.c.l.b16 %v474
    %v592 = vunpack.c.h.b16 %v474
    %v593 = vunpack.c.l.b16 %v475
    %v594 = vunpack.c.h.b16 %v475
    %v595 = vunpack.c.l.b16 %v476
    %v596 = vunpack.c.h.b16 %v476
    %v597 = vunpack.c.l.b16 %v477
    %v598 = vunpack.c.h.b16 %v477
    %v599 = vunpack.c.l.b16 %v478
    %v600 = vunpack.c.h.b16 %v478
    %v601 = vunpack.c.l.b16 %v479
    %v602 = vunpack.c.h.b16 %v479
    %v603 = vunpack.c.l.b16 %v480
    %v604 = vunpack.c.h.b16 %v480
    %v605 = vunpack.c.l.b16 %v481
    %v606 = vunpack.c.h.b16 %v481
    %v607 = vunpack.c.l.b16 %v482
    %v608 = vunpack.c.h.b16 %v482
    %v609 = vunpack.c.l.b16 %v483
    %v610 = vunpack.c.h.b16 %v483
    %v611 = vunpack.c.l.b16 %v484
    %v612 = vunpack.c.h.b16 %v484
    %v613 = vunpack.c.l.b16 %v485
    %v614 = vunpack.c.h.b16 %v485
    %v615 = vunpack.c.l.b16 %v486
    %v616 = vunpack.c.h.b16 %v486
    %v617 = vunpack.c.l.b16 %v487
    %v618 = vunpack.c.h.b16 %v487
    %v619 = vunpack.c.l.b16 %v488
    %v620 = vunpack.c.h.b16 %v488
    %v621 = vunpack.c.l.b16 %v489
    %v622 = vunpack.c.h.b16 %v489
    %v623 = vunpack.c.l.b16 %v490
    %v624 = vunpack.c.h.b16 %v490
    %v625 = vunpack.c.l.b16 %v491
    %v626 = vunpack.c.h.b16 %v491
    %v627 = vunpack.c.l.b16 %v492
    %v628 = vunpack.c.h.b16 %v492
    %v629 = vunpack.c.l.b16 %v493
    %v630 = vunpack.c.h.b16 %v493
    %v631 = vunpack.c.l.b16 %v494
    %v632 = vunpack.c.h.b16 %v494
    %v633 = vunpack.c.l.b16 %v495
    %v634 = vunpack.c.h.b16 %v495
    %v635 = vunpack.c.l.b16 %v496
    %v636 = vunpack.c.h.b16 %v496
    %v637 = vunpack.c.l.b16 %v497
    %v638 = vunpack.c.h.b16 %v497
    %v639 = vunpack.c.l.b16 %v498
    %v640 = vunpack.c.h.b16 %v498
    %v641 = vunpack.c.l.b16 %v499
    %v642 = vunpack.c.h.b16 %v499
    %v643 = vunpack.c.l.b16 %v500
    %v644 = vunpack.c.h.b16 %v500
    %v645 = vpack.c.b16 %v555, %v549
    %v646 = vpack.c.b16 %v556, %v550
    %v647 = vpack.c.b16 %v557, %v551
    %v648 = vpack.c.b16 %v558, %v552
    %v649 = vpack.c.b16 %v559, %v553
    %v650 = vpack.c.b16 %v560, %v554
    %v651 = vpack.c.b16 %v567, %v561
    %v652 = vpack.c.b16 %v568, %v562
    %v653 = vpack.c.b16 %v569, %v563
    %v654 = vpack.c.b16 %v570, %v564
    %v655 = vpack.c.b16 %v571, %v565
    %v656 = vpack.c.b16 %v572, %v566
    %v657 = vpack.c.b16 %v579, %v573
    %v658 = vpack.c.b16 %v580, %v574
    %v659 = vpack.c.b16 %v581, %v575
    %v660 = vpack.c.b16 %v582, %v576
    %v661 = vpack.c.b16 %v583, %v577
    %v662 = vpack.c.b16 %v584, %v578
    %v663 = vpack.c.b16 %v591, %v585
    %v664 = vpack.c.b16 %v592, %v586
    %v665 = vpack.c.b16 %v593, %v587
    %v666 = vpack.c.b16 %v594, %v588
    %v667 = vpack.c.b16 %v595, %v589
    %v668 = vpack.c.b16 %v596, %v590
    %v669 = vpack.c.b16 %v603, %v597
    %v670 = vpack.c.b16 %v604, %v598
    %v671 = vpack.c.b16 %v605, %v599
    %v672 = vpack.c.b16 %v606, %v600
    %v673 = vpack.c.b16 %v607, %v601
    %v674 = vpack.c.b16 %v608, %v602
    %v675 = vpack.c.b16 %v615, %v609
    %v676 = vpack.c.b16 %v616, %v610
    %v677 = vpack.c.b16 %v617, %v611
    %v678 = vpack.c.b16 %v618, %v612
    %v679 = vpack.c.b16 %v619, %v613
    %v680 = vpack.c.b16 %v620, %v614
    %v681 = vpack.c.b16 %v627, %v621
    %v682 = vpack.c.b16 %v628, %v622
    %v683 = vpack.c.b16 %v629, %v623
    %v684 = vpack.c.b16 %v630, %v624
    %v685 = vpack.c.b16 %v631, %v625
    %v686 = vpack.c.b16 %v632, %v626
    %v687 = vpack.c.b16 %v639, %v633
    %v688 = vpack.c.b16 %v640, %v634
    %v689 = vpack.c.b16 %v641, %v635
    %v690 = vpack.c.b16 %v642, %v636
    %v691 = vpack.c.b16 %v643, %v637
    %v692 = vpack.c.b16 %v644, %v638
    %741 = vmatprep.subr.bf16.mxu0 %v688
    %742 = vmatpush1.bf16.msra.mxu0 %v687
    %743 = vmatprep.subr.bf16.mxu0 %v682
    %744 = vmatpush1.bf16.msra.mxu0 %v681
    %745 = vmatprep.subr.bf16.mxu0 %v676
    %746 = vmatpush1.bf16.msra.mxu0 %v675
    %747 = vmatprep.subr.bf16.mxu0 %v670
    %748 = vmatpush1.bf16.msra.mxu0 %v669
    %749 = vmatprep.subr.bf16.mxu0 %v664
    %750 = vmatpush1.bf16.msra.mxu0 %v663
    %751 = vmatprep.subr.bf16.mxu0 %v658
    %752 = vmatpush1.bf16.msra.mxu0 %v657
    %753 = vmatprep.subr.bf16.mxu0 %v652
    %754 = vmatpush1.bf16.msra.mxu0 %v651
    %755 = vmatprep.subr.bf16.mxu0 %v646
    %756 = vmatpush1.bf16.msra.mxu0 %v645
    %757 = vmatprep.subr.bf16.mxu0 0
    %758 = vmatpush2.bf16.msra.mxu0 0
    %759 = vmatprep.subr.bf16.mxu0 0
    %760 = vmatpush2.bf16.msra.mxu0 0
    %761 = vmatprep.subr.bf16.mxu0 0
    %762 = vmatpush2.bf16.msra.mxu0 0
    %763 = vmatprep.subr.bf16.mxu0 0
    %764 = vmatpush2.bf16.msra.mxu0 0
    %765 = vmatprep.subr.bf16.mxu0 0
    %766 = vmatpush2.bf16.msra.mxu0 0
    %767 = vmatprep.subr.bf16.mxu0 0
    %768 = vmatpush2.bf16.msra.mxu0 0
    %769 = vmatprep.subr.bf16.mxu0 0
    %770 = vmatpush2.bf16.msra.mxu0 0
    %771 = vmatprep.subr.bf16.mxu0 0
    %772 = vmatpush2.bf16.msra.mxu0 0
    %773 = vmatprep.mubr.bf16.mxu0 0
    %774 = vmatmul.mubr.bf16.gmra.mxu0 %v452
    %v775 = vpop.f32.mrf.mxu0
    %v776 = vadd.f32 %v418, %v775
    %v777 = vpop.f32.mrf.mxu0
    %v778 = vadd.f32 %v419, %v777
    %v779 = vpop.f32.mrf.mxu0
    %v780 = vpop.f32.mrf.mxu0
    %781 = vdwg.mxu0
    %782 = vmatprep.subr.bf16.mxu0 %v690
    %783 = vmatpush1.bf16.msra.mxu0 %v689
    %784 = vmatprep.subr.bf16.mxu0 %v684
    %785 = vmatpush1.bf16.msra.mxu0 %v683
    %786 = vmatprep.subr.bf16.mxu0 %v678
    %787 = vmatpush1.bf16.msra.mxu0 %v677
    %788 = vmatprep.subr.bf16.mxu0 %v672
    %789 = vmatpush1.bf16.msra.mxu0 %v671
    %790 = vmatprep.subr.bf16.mxu0 %v666
    %791 = vmatpush1.bf16.msra.mxu0 %v665
    %792 = vmatprep.subr.bf16.mxu0 %v660
    %793 = vmatpush1.bf16.msra.mxu0 %v659
    %794 = vmatprep.subr.bf16.mxu0 %v654
    %795 = vmatpush1.bf16.msra.mxu0 %v653
    %796 = vmatprep.subr.bf16.mxu0 %v648
    %797 = vmatpush1.bf16.msra.mxu0 %v647
    %798 = vmatprep.subr.bf16.mxu0 0
    %799 = vmatpush2.bf16.msra.mxu0 0
    %800 = vmatprep.subr.bf16.mxu0 0
    %801 = vmatpush2.bf16.msra.mxu0 0
    %802 = vmatprep.subr.bf16.mxu0 0
    %803 = vmatpush2.bf16.msra.mxu0 0
    %804 = vmatprep.subr.bf16.mxu0 0
    %805 = vmatpush2.bf16.msra.mxu0 0
    %806 = vmatprep.subr.bf16.mxu0 0
    %807 = vmatpush2.bf16.msra.mxu0 0
    %808 = vmatprep.subr.bf16.mxu0 0
    %809 = vmatpush2.bf16.msra.mxu0 0
    %810 = vmatprep.subr.bf16.mxu0 0
    %811 = vmatpush2.bf16.msra.mxu0 0
    %812 = vmatprep.subr.bf16.mxu0 0
    %813 = vmatpush2.bf16.msra.mxu0 0
    %814 = vmatprep.mubr.bf16.mxu0 0
    %815 = vmatmul.mubr.bf16.gmra.mxu0 %v452
    %v816 = vpop.f32.mrf.mxu0
    %v817 = vadd.f32 %v420, %v816
    %v818 = vpop.f32.mrf.mxu0
    %v819 = vadd.f32 %v421, %v818
    %v820 = vpop.f32.mrf.mxu0
    %v821 = vpop.f32.mrf.mxu0
    %822 = vdwg.mxu0
    %823 = vmatprep.subr.bf16.mxu0 %v692
    %824 = vmatpush1.bf16.msra.mxu0 %v691
    %825 = vmatprep.subr.bf16.mxu0 %v686
    %826 = vmatpush1.bf16.msra.mxu0 %v685
    %827 = vmatprep.subr.bf16.mxu0 %v680
    %828 = vmatpush1.bf16.msra.mxu0 %v679
    %829 = vmatprep.subr.bf16.mxu0 %v674
    %830 = vmatpush1.bf16.msra.mxu0 %v673
    %831 = vmatprep.subr.bf16.mxu0 %v668
    %832 = vmatpush1.bf16.msra.mxu0 %v667
    %833 = vmatprep.subr.bf16.mxu0 %v662
    %834 = vmatpush1.bf16.msra.mxu0 %v661
    %835 = vmatprep.subr.bf16.mxu0 %v656
    %836 = vmatpush1.bf16.msra.mxu0 %v655
    %837 = vmatprep.subr.bf16.mxu0 %v650
    %838 = vmatpush1.bf16.msra.mxu0 %v649
    %839 = vmatprep.subr.bf16.mxu0 0
    %840 = vmatpush2.bf16.msra.mxu0 0
    %841 = vmatprep.subr.bf16.mxu0 0
    %842 = vmatpush2.bf16.msra.mxu0 0
    %843 = vmatprep.subr.bf16.mxu0 0
    %844 = vmatpush2.bf16.msra.mxu0 0
    %845 = vmatprep.subr.bf16.mxu0 0
    %846 = vmatpush2.bf16.msra.mxu0 0
    %847 = vmatprep.subr.bf16.mxu0 0
    %848 = vmatpush2.bf16.msra.mxu0 0
    %849 = vmatprep.subr.bf16.mxu0 0
    %850 = vmatpush2.bf16.msra.mxu0 0
    %851 = vmatprep.subr.bf16.mxu0 0
    %852 = vmatpush2.bf16.msra.mxu0 0
    %853 = vmatprep.subr.bf16.mxu0 0
    %854 = vmatpush2.bf16.msra.mxu0 0
    %855 = vmatprep.mubr.bf16.mxu0 0
    %856 = vmatmul.mubr.bf16.gmra.mxu0 %v452
    %v857 = vpop.f32.mrf.mxu0
    %v858 = vadd.f32 %v422, %v857
    %v859 = vpop.f32.mrf.mxu0
    %v860 = vadd.f32 %v423, %v859
    %v861 = vpop.f32.mrf.mxu0
    %v862 = vpop.f32.mrf.mxu0
    %863 = vdwg.mxu0
    %v864 = vadd.f32 %v776, %v424
    %v865 = vadd.f32 %v778, %v425
    %v866 = vxor.u32 %v864, 2147483648
    %v867 = vxor.u32 %v865, 2147483648
    %v868 = vmul.f32 %v866, 1.442695
    %v869 = vpow.pop %v868
    %v870 = vmul.f32 %v867, 1.442695
    %v871 = vpow.pop %v870
    %v872 = vadd.f32 %v869, 1.0
    %v873 = vadd.f32 %v871, 1.0
    %v874 = vrcp.pop %v872
    %v875 = vmul.f32 1.0, %v874
    %v876 = vrcp.pop %v873
    %v877 = vmul.f32 1.0, %v876
    %v878 = vmul.f32 %v875, %v426
    %v879 = vadd.f32 %v817, %v878
    %v880 = vtanh.pop %v879
    %v881 = vsub.f32 1.0, %v877
    %v882 = vmul.f32 %v427, %v881
    %v883 = vmul.f32 %v882, %v880
    %v884 = vadd.f32 %v883, 0.0
    %v885 = vmul.f32 %v427, %v884
    %886 = vst [vmem:[#allocation3] sm:$0xff] %v885
    %v887 = vld [vmem:[%s1 + $0x8] sm:$0xff]
    %v888 = vld [vmem:[#allocation2 + $0x18] sm:$0xff]
    %v889 = vld [vmem:[#allocation2 + $0x20] sm:$0xff]
    %v890 = vld [vmem:[#allocation2 + $0x28] sm:$0xff]
    %v891 = vadd.f32 %v888, %v819
    %v892 = vadd.f32 %v889, %v858
    %v893 = vxor.u32 %v891, 2147483648
    %v894 = vxor.u32 %v892, 2147483648
    %v895 = vmul.f32 %v893, 1.442695
    %v896 = vpow.pop %v895
    %v897 = vmul.f32 %v894, 1.442695
    %v898 = vpow.pop %v897
    %v899 = vadd.f32 %v896, 1.0
    %v900 = vadd.f32 %v898, 1.0
    %v901 = vrcp.pop %v899
    %v902 = vmul.f32 1.0, %v901
    %v903 = vrcp.pop %v900
    %v904 = vmul.f32 1.0, %v903
    %v905 = vmul.f32 %v902, %v860
    %v906 = vadd.f32 %v890, %v905
    %v907 = vtanh.pop %v906
    %v908 = vsub.f32 1.0, %v904
    %v909 = vmul.f32 %v887, %v908
    %v910 = vsub.f32 %v907, %v451
    %v911 = vmul.f32 %v909, %v910
    %v912 = vadd.f32 %v451, %v911
    %v913 = vpack.c.bf16 %v884, %v912
    %v914 = vld [vmem:[%s4] sm:$0xff]
    %v915 = vld [vmem:[%s4 + $0x8] sm:$0xff]
    %v916 = vld [vmem:[%s4 + $0x10] sm:$0xff]
    %v917 = vld [vmem:[%s4 + $0x18] sm:$0xff]
    %v918 = vld [vmem:[%s4 + $0x20] sm:$0xf]
    %v919 = vld [vmem:[%s4 + $0x24] sm:$0xff]
    %v920 = vld [vmem:[%s4 + $0x2c] sm:$0xff]
    %v921 = vld [vmem:[%s4 + $0x34] sm:$0xff]
    %v922 = vld [vmem:[%s4 + $0x3c] sm:$0xff]
    %v923 = vld [vmem:[%s4 + $0x44] sm:$0xf]
    %v924 = vld [vmem:[%s4 + $0x48] sm:$0xff]
    %v925 = vld [vmem:[%s4 + $0x50] sm:$0xff]
    %v926 = vld [vmem:[%s4 + $0x58] sm:$0xff]
    %v927 = vld [vmem:[%s4 + $0x60] sm:$0xff]
    %v928 = vld [vmem:[%s4 + $0x68] sm:$0xf]
    %v929 = vld [vmem:[%s4 + $0x6c] sm:$0xff]
    %v930 = vld [vmem:[%s4 + $0x74] sm:$0xff]
    %v931 = vld [vmem:[%s4 + $0x7c] sm:$0xff]
    %v932 = vld [vmem:[%s4 + $0x84] sm:$0xff]
    %v933 = vld [vmem:[%s4 + $0x8c] sm:$0xf]
    %v934 = vld [vmem:[%s4 + $0x90] sm:$0xff]
    %v935 = vld [vmem:[%s4 + $0x98] sm:$0xff]
    %v936 = vld [vmem:[%s4 + $0xa0] sm:$0xff]
    %v937 = vld [vmem:[%s4 + $0xa8] sm:$0xff]
    %v938 = vld [vmem:[%s4 + $0xb0] sm:$0xf]
    %v939 = vld [vmem:[%s4 + $0xb4] sm:$0xff]
    %v940 = vld [vmem:[%s4 + $0xbc] sm:$0xff]
    %v941 = vld [vmem:[%s4 + $0xc4] sm:$0xff]
    %v942 = vld [vmem:[%s4 + $0xcc] sm:$0xff]
    %v943 = vld [vmem:[%s4 + $0xd4] sm:$0xf]
    %v944 = vld [vmem:[%s4 + $0xd8] sm:$0xff]
    %v945 = vld [vmem:[%s4 + $0xe0] sm:$0xff]
    %v946 = vld [vmem:[%s4 + $0xe8] sm:$0xff]
    %v947 = vld [vmem:[%s4 + $0xf0] sm:$0xff]
    %v948 = vld [vmem:[%s4 + $0xf8] sm:$0xf]
    %v949 = vld [vmem:[%s4 + $0xfc] sm:$0xff]
    %v950 = vld [vmem:[%s4 + $0x104] sm:$0xff]
    %v951 = vld [vmem:[%s4 + $0x10c] sm:$0xff]
    %v952 = vld [vmem:[%s4 + $0x114] sm:$0xff]
    %v953 = vld [vmem:[%s4 + $0x11c] sm:$0xf]
    %v954 = vld [vmem:[%s4 + $0x120] sm:$0xff]
    %v955 = vld [vmem:[%s4 + $0x128] sm:$0xff]
    %v956 = vld [vmem:[%s4 + $0x130] sm:$0xff]
    %v957 = vld [vmem:[%s4 + $0x138] sm:$0xff]
    %v958 = vld [vmem:[%s4 + $0x140] sm:$0xf]
    %v959 = vld [vmem:[%s4 + $0x144] sm:$0xff]
    %v960 = vld [vmem:[%s4 + $0x14c] sm:$0xff]
    %v961 = vld [vmem:[%s4 + $0x154] sm:$0xff]
    %v962 = vld [vmem:[%s4 + $0x15c] sm:$0xff]
    %v963 = vld [vmem:[%s4 + $0x164] sm:$0xf]
    %v964 = vld [vmem:[%s4 + $0x168] sm:$0xff]
    %v965 = vld [vmem:[%s4 + $0x170] sm:$0xff]
    %v966 = vld [vmem:[%s4 + $0x178] sm:$0xff]
    %v967 = vld [vmem:[%s4 + $0x180] sm:$0xff]
    %v968 = vld [vmem:[%s4 + $0x188] sm:$0xf]
    %v969 = vld [vmem:[%s4 + $0x18c] sm:$0xff]
    %v970 = vld [vmem:[%s4 + $0x194] sm:$0xff]
    %v971 = vld [vmem:[%s4 + $0x19c] sm:$0xff]
    %v972 = vld [vmem:[%s4 + $0x1a4] sm:$0xff]
    %v973 = vld [vmem:[%s4 + $0x1ac] sm:$0xf]
    %v974 = vld [vmem:[%s4 + $0x1b0] sm:$0xff]
    %v975 = vld [vmem:[%s4 + $0x1b8] sm:$0xff]
    %v976 = vld [vmem:[%s4 + $0x1c0] sm:$0xff]
    %v977 = vld [vmem:[%s4 + $0x1c8] sm:$0xff]
    %v978 = vld [vmem:[%s4 + $0x1d0] sm:$0xf]
    %v979 = vld [vmem:[%s4 + $0x1d4] sm:$0xff]
    %v980 = vld [vmem:[%s4 + $0x1dc] sm:$0xff]
    %v981 = vld [vmem:[%s4 + $0x1e4] sm:$0xff]
    %v982 = vld [vmem:[%s4 + $0x1ec] sm:$0xff]
    %v983 = vld [vmem:[%s4 + $0x1f4] sm:$0xf]
    %v984 = vld [vmem:[%s4 + $0x1f8] sm:$0xff]
    %v985 = vld [vmem:[%s4 + $0x200] sm:$0xff]
    %v986 = vld [vmem:[%s4 + $0x208] sm:$0xff]
    %v987 = vld [vmem:[%s4 + $0x210] sm:$0xff]
    %v988 = vld [vmem:[%s4 + $0x218] sm:$0xf]
    %v989 = vld [vmem:[%s4 + $0x21c] sm:$0xff]
    %v990 = vld [vmem:[%s4 + $0x224] sm:$0xff]
    %v991 = vld [vmem:[%s4 + $0x22c] sm:$0xff]
    %v992 = vld [vmem:[%s4 + $0x234] sm:$0xff]
    %v993 = vld [vmem:[%s4 + $0x23c] sm:$0xf]
    %v1074 = vunpack.c.l.b16 %v914
    %v1075 = vunpack.c.h.b16 %v914
    %v1076 = vunpack.c.l.b16 %v915
    %v1077 = vunpack.c.h.b16 %v915
    %v1078 = vunpack.c.l.b16 %v916
    %v1079 = vunpack.c.h.b16 %v916
    %v1080 = vunpack.c.l.b16 %v917
    %v1081 = vunpack.c.h.b16 %v917
    %v1082 = vunpack.c.l.b16 %v918
    %v1083 = vunpack.c.l.b16 %v919
    %v1084 = vunpack.c.h.b16 %v919
    %v1085 = vunpack.c.l.b16 %v920
    %v1086 = vunpack.c.h.b16 %v920
    %v1087 = vunpack.c.l.b16 %v921
    %v1088 = vunpack.c.h.b16 %v921
    %v1089 = vunpack.c.l.b16 %v922
    %v1090 = vunpack.c.h.b16 %v922
    %v1091 = vunpack.c.l.b16 %v923
    %v1092 = vunpack.c.l.b16 %v924
    %v1093 = vunpack.c.h.b16 %v924
    %v1094 = vunpack.c.l.b16 %v925
    %v1095 = vunpack.c.h.b16 %v925
    %v1096 = vunpack.c.l.b16 %v926
    %v1097 = vunpack.c.h.b16 %v926
    %v1098 = vunpack.c.l.b16 %v927
    %v1099 = vunpack.c.h.b16 %v927
    %v1100 = vunpack.c.l.b16 %v928
    %v1101 = vunpack.c.l.b16 %v929
    %v1102 = vunpack.c.h.b16 %v929
    %v1103 = vunpack.c.l.b16 %v930
    %v1104 = vunpack.c.h.b16 %v930
    %v1105 = vunpack.c.l.b16 %v931
    %v1106 = vunpack.c.h.b16 %v931
    %v1107 = vunpack.c.l.b16 %v932
    %v1108 = vunpack.c.h.b16 %v932
    %v1109 = vunpack.c.l.b16 %v933
    %v1110 = vunpack.c.l.b16 %v934
    %v1111 = vunpack.c.h.b16 %v934
    %v1112 = vunpack.c.l.b16 %v935
    %v1113 = vunpack.c.h.b16 %v935
    %v1114 = vunpack.c.l.b16 %v936
    %v1115 = vunpack.c.h.b16 %v936
    %v1116 = vunpack.c.l.b16 %v937
    %v1117 = vunpack.c.h.b16 %v937
    %v1118 = vunpack.c.l.b16 %v938
    %v1119 = vunpack.c.l.b16 %v939
    %v1120 = vunpack.c.h.b16 %v939
    %v1121 = vunpack.c.l.b16 %v940
    %v1122 = vunpack.c.h.b16 %v940
    %v1123 = vunpack.c.l.b16 %v941
    %v1124 = vunpack.c.h.b16 %v941
    %v1125 = vunpack.c.l.b16 %v942
    %v1126 = vunpack.c.h.b16 %v942
    %v1127 = vunpack.c.l.b16 %v943
    %v1128 = vunpack.c.l.b16 %v944
    %v1129 = vunpack.c.h.b16 %v944
    %v1130 = vunpack.c.l.b16 %v945
    %v1131 = vunpack.c.h.b16 %v945
    %v1132 = vunpack.c.l.b16 %v946
    %v1133 = vunpack.c.h.b16 %v946
    %v1134 = vunpack.c.l.b16 %v947
    %v1135 = vunpack.c.h.b16 %v947
    %v1136 = vunpack.c.l.b16 %v948
    %v1137 = vunpack.c.l.b16 %v949
    %v1138 = vunpack.c.h.b16 %v949
    %v1139 = vunpack.c.l.b16 %v950
    %v1140 = vunpack.c.h.b16 %v950
    %v1141 = vunpack.c.l.b16 %v951
    %v1142 = vunpack.c.h.b16 %v951
    %v1143 = vunpack.c.l.b16 %v952
    %v1144 = vunpack.c.h.b16 %v952
    %v1145 = vunpack.c.l.b16 %v953
    %v1146 = vunpack.c.l.b16 %v954
    %v1147 = vunpack.c.h.b16 %v954
    %v1148 = vunpack.c.l.b16 %v955
    %v1149 = vunpack.c.h.b16 %v955
    %v1150 = vunpack.c.l.b16 %v956
    %v1151 = vunpack.c.h.b16 %v956
    %v1152 = vunpack.c.l.b16 %v957
    %v1153 = vunpack.c.h.b16 %v957
    %v1154 = vunpack.c.l.b16 %v958
    %v1155 = vunpack.c.l.b16 %v959
    %v1156 = vunpack.c.h.b16 %v959
    %v1157 = vunpack.c.l.b16 %v960
    %v1158 = vunpack.c.h.b16 %v960
    %v1159 = vunpack.c.l.b16 %v961
    %v1160 = vunpack.c.h.b16 %v961
    %v1161 = vunpack.c.l.b16 %v962
    %v1162 = vunpack.c.h.b16 %v962
    %v1163 = vunpack.c.l.b16 %v963
    %v1164 = vunpack.c.l.b16 %v964
    %v1165 = vunpack.c.h.b16 %v964
    %v1166 = vunpack.c.l.b16 %v965
    %v1167 = vunpack.c.h.b16 %v965
    %v1168 = vunpack.c.l.b16 %v966
    %v1169 = vunpack.c.h.b16 %v966
    %v1170 = vunpack.c.l.b16 %v967
    %v1171 = vunpack.c.h.b16 %v967
    %v1172 = vunpack.c.l.b16 %v968
    %v1173 = vunpack.c.l.b16 %v969
    %v1174 = vunpack.c.h.b16 %v969
    %v1175 = vunpack.c.l.b16 %v970
    %v1176 = vunpack.c.h.b16 %v970
    %v1177 = vunpack.c.l.b16 %v971
    %v1178 = vunpack.c.h.b16 %v971
    %v1179 = vunpack.c.l.b16 %v972
    %v1180 = vunpack.c.h.b16 %v972
    %v1181 = vunpack.c.l.b16 %v973
    %v1182 = vunpack.c.l.b16 %v974
    %v1183 = vunpack.c.h.b16 %v974
    %v1184 = vunpack.c.l.b16 %v975
    %v1185 = vunpack.c.h.b16 %v975
    %v1186 = vunpack.c.l.b16 %v976
    %v1187 = vunpack.c.h.b16 %v976
    %v1188 = vunpack.c.l.b16 %v977
    %v1189 = vunpack.c.h.b16 %v977
    %v1190 = vunpack.c.l.b16 %v978
    %v1191 = vunpack.c.l.b16 %v979
    %v1192 = vunpack.c.h.b16 %v979
    %v1193 = vunpack.c.l.b16 %v980
    %v1194 = vunpack.c.h.b16 %v980
    %v1195 = vunpack.c.l.b16 %v981
    %v1196 = vunpack.c.h.b16 %v981
    %v1197 = vunpack.c.l.b16 %v982
    %v1198 = vunpack.c.h.b16 %v982
    %v1199 = vunpack.c.l.b16 %v983
    %v1200 = vunpack.c.l.b16 %v984
    %v1201 = vunpack.c.h.b16 %v984
    %v1202 = vunpack.c.l.b16 %v985
    %v1203 = vunpack.c.h.b16 %v985
    %v1204 = vunpack.c.l.b16 %v986
    %v1205 = vunpack.c.h.b16 %v986
    %v1206 = vunpack.c.l.b16 %v987
    %v1207 = vunpack.c.h.b16 %v987
    %v1208 = vunpack.c.l.b16 %v988
    %v1209 = vunpack.c.l.b16 %v989
    %v1210 = vunpack.c.h.b16 %v989
    %v1211 = vunpack.c.l.b16 %v990
    %v1212 = vunpack.c.h.b16 %v990
    %v1213 = vunpack.c.l.b16 %v991
    %v1214 = vunpack.c.h.b16 %v991
    %v1215 = vunpack.c.l.b16 %v992
    %v1216 = vunpack.c.h.b16 %v992
    %v1217 = vunpack.c.l.b16 %v993
    %v1218 = vpack.c.b16 %v1083, %v1074
    %v1219 = vpack.c.b16 %v1084, %v1075
    %v1220 = vpack.c.b16 %v1085, %v1076
    %v1221 = vpack.c.b16 %v1086, %v1077
    %v1222 = vpack.c.b16 %v1087, %v1078
    %v1223 = vpack.c.b16 %v1088, %v1079
    %v1224 = vpack.c.b16 %v1089, %v1080
    %v1225 = vpack.c.b16 %v1090, %v1081
    %v1226 = vpack.c.b16 %v1091, %v1082
    %v1227 = vpack.c.b16 %v1101, %v1092
    %v1228 = vpack.c.b16 %v1102, %v1093
    %v1229 = vpack.c.b16 %v1103, %v1094
    %v1230 = vpack.c.b16 %v1104, %v1095
    %v1231 = vpack.c.b16 %v1105, %v1096
    %v1232 = vpack.c.b16 %v1106, %v1097
    %v1233 = vpack.c.b16 %v1107, %v1098
    %v1234 = vpack.c.b16 %v1108, %v1099
    %v1235 = vpack.c.b16 %v1109, %v1100
    %v1236 = vpack.c.b16 %v1119, %v1110
    %v1237 = vpack.c.b16 %v1120, %v1111
    %v1238 = vpack.c.b16 %v1121, %v1112
    %v1239 = vpack.c.b16 %v1122, %v1113
    %v1240 = vpack.c.b16 %v1123, %v1114
    %v1241 = vpack.c.b16 %v1124, %v1115
    %v1242 = vpack.c.b16 %v1125, %v1116
    %v1243 = vpack.c.b16 %v1126, %v1117
    %v1244 = vpack.c.b16 %v1127, %v1118
    %v1245 = vpack.c.b16 %v1137, %v1128
    %v1246 = vpack.c.b16 %v1138, %v1129
    %v1247 = vpack.c.b16 %v1139, %v1130
    %v1248 = vpack.c.b16 %v1140, %v1131
    %v1249 = vpack.c.b16 %v1141, %v1132
    %v1250 = vpack.c.b16 %v1142, %v1133
    %v1251 = vpack.c.b16 %v1143, %v1134
    %v1252 = vpack.c.b16 %v1144, %v1135
    %v1253 = vpack.c.b16 %v1145, %v1136
    %v1254 = vpack.c.b16 %v1155, %v1146
    %v1255 = vpack.c.b16 %v1156, %v1147
    %v1256 = vpack.c.b16 %v1157, %v1148
    %v1257 = vpack.c.b16 %v1158, %v1149
    %v1258 = vpack.c.b16 %v1159, %v1150
    %v1259 = vpack.c.b16 %v1160, %v1151
    %v1260 = vpack.c.b16 %v1161, %v1152
    %v1261 = vpack.c.b16 %v1162, %v1153
    %v1262 = vpack.c.b16 %v1163, %v1154
    %v1263 = vpack.c.b16 %v1173, %v1164
    %v1264 = vpack.c.b16 %v1174, %v1165
    %v1265 = vpack.c.b16 %v1175, %v1166
    %v1266 = vpack.c.b16 %v1176, %v1167
    %v1267 = vpack.c.b16 %v1177, %v1168
    %v1268 = vpack.c.b16 %v1178, %v1169
    %v1269 = vpack.c.b16 %v1179, %v1170
    %v1270 = vpack.c.b16 %v1180, %v1171
    %v1271 = vpack.c.b16 %v1181, %v1172
    %v1272 = vpack.c.b16 %v1191, %v1182
    %v1273 = vpack.c.b16 %v1192, %v1183
    %v1274 = vpack.c.b16 %v1193, %v1184
    %v1275 = vpack.c.b16 %v1194, %v1185
    %v1276 = vpack.c.b16 %v1195, %v1186
    %v1277 = vpack.c.b16 %v1196, %v1187
    %v1278 = vpack.c.b16 %v1197, %v1188
    %v1279 = vpack.c.b16 %v1198, %v1189
    %v1280 = vpack.c.b16 %v1199, %v1190
    %v1281 = vpack.c.b16 %v1209, %v1200
    %v1282 = vpack.c.b16 %v1210, %v1201
    %v1283 = vpack.c.b16 %v1211, %v1202
    %v1284 = vpack.c.b16 %v1212, %v1203
    %v1285 = vpack.c.b16 %v1213, %v1204
    %v1286 = vpack.c.b16 %v1214, %v1205
    %v1287 = vpack.c.b16 %v1215, %v1206
    %v1288 = vpack.c.b16 %v1216, %v1207
    %v1289 = vpack.c.b16 %v1217, %v1208
    %1362 = vmatprep.subr.bf16.mxu0 %v1282
    %1363 = vmatpush1.bf16.msra.mxu0 %v1281
    %1364 = vmatprep.subr.bf16.mxu0 %v1273
    %1365 = vmatpush1.bf16.msra.mxu0 %v1272
    %1366 = vmatprep.subr.bf16.mxu0 %v1264
    %1367 = vmatpush1.bf16.msra.mxu0 %v1263
    %1368 = vmatprep.subr.bf16.mxu0 %v1255
    %1369 = vmatpush1.bf16.msra.mxu0 %v1254
    %1370 = vmatprep.subr.bf16.mxu0 %v1246
    %1371 = vmatpush1.bf16.msra.mxu0 %v1245
    %1372 = vmatprep.subr.bf16.mxu0 %v1237
    %1373 = vmatpush1.bf16.msra.mxu0 %v1236
    %1374 = vmatprep.subr.bf16.mxu0 %v1228
    %1375 = vmatpush1.bf16.msra.mxu0 %v1227
    %1376 = vmatprep.subr.bf16.mxu0 %v1219
    %1377 = vmatpush1.bf16.msra.mxu0 %v1218
    %1378 = vmatprep.subr.bf16.mxu0 0
    %1379 = vmatpush2.bf16.msra.mxu0 0
    %1380 = vmatprep.subr.bf16.mxu0 0
    %1381 = vmatpush2.bf16.msra.mxu0 0
    %1382 = vmatprep.subr.bf16.mxu0 0
    %1383 = vmatpush2.bf16.msra.mxu0 0
    %1384 = vmatprep.subr.bf16.mxu0 0
    %1385 = vmatpush2.bf16.msra.mxu0 0
    %1386 = vmatprep.subr.bf16.mxu0 0
    %1387 = vmatpush2.bf16.msra.mxu0 0
    %1388 = vmatprep.subr.bf16.mxu0 0
    %1389 = vmatpush2.bf16.msra.mxu0 0
    %1390 = vmatprep.subr.bf16.mxu0 0
    %1391 = vmatpush2.bf16.msra.mxu0 0
    %1392 = vmatprep.subr.bf16.mxu0 0
    %1393 = vmatpush2.bf16.msra.mxu0 0
    %1394 = vmatprep.mubr.bf16.mxu0 0
    %1395 = vmatmul.mubr.bf16.gmra.mxu0 %v913
    %v1396 = vpop.f32.mrf.mxu0
    %v1397 = vadd.f32 0.0, %v1396
    %v1398 = vpop.f32.mrf.mxu0
    %v1399 = vadd.f32 0.0, %v1398
    %v1400 = vpop.f32.mrf.mxu0
    %v1401 = vpop.f32.mrf.mxu0
    %1402 = vdwg.mxu0
    %1403 = vmatprep.subr.bf16.mxu0 %v1284
    %1404 = vmatpush1.bf16.msra.mxu0 %v1283
    %1405 = vmatprep.subr.bf16.mxu0 %v1275
    %1406 = vmatpush1.bf16.msra.mxu0 %v1274
    %1407 = vmatprep.subr.bf16.mxu0 %v1266
    %1408 = vmatpush1.bf16.msra.mxu0 %v1265
    %1409 = vmatprep.subr.bf16.mxu0 %v1257
    %1410 = vmatpush1.bf16.msra.mxu0 %v1256
    %1411 = vmatprep.subr.bf16.mxu0 %v1248
    %1412 = vmatpush1.bf16.msra.mxu0 %v1247
    %1413 = vmatprep.subr.bf16.mxu0 %v1239
    %1414 = vmatpush1.bf16.msra.mxu0 %v1238
    %1415 = vmatprep.subr.bf16.mxu0 %v1230
    %1416 = vmatpush1.bf16.msra.mxu0 %v1229
    %1417 = vmatprep.subr.bf16.mxu0 %v1221
    %1418 = vmatpush1.bf16.msra.mxu0 %v1220
    %1419 = vmatprep.subr.bf16.mxu0 0
    %1420 = vmatpush2.bf16.msra.mxu0 0
    %1421 = vmatprep.subr.bf16.mxu0 0
    %1422 = vmatpush2.bf16.msra.mxu0 0
    %1423 = vmatprep.subr.bf16.mxu0 0
    %1424 = vmatpush2.bf16.msra.mxu0 0
    %1425 = vmatprep.subr.bf16.mxu0 0
    %1426 = vmatpush2.bf16.msra.mxu0 0
    %1427 = vmatprep.subr.bf16.mxu0 0
    %1428 = vmatpush2.bf16.msra.mxu0 0
    %1429 = vmatprep.subr.bf16.mxu0 0
    %1430 = vmatpush2.bf16.msra.mxu0 0
    %1431 = vmatprep.subr.bf16.mxu0 0
    %1432 = vmatpush2.bf16.msra.mxu0 0
    %1433 = vmatprep.subr.bf16.mxu0 0
    %1434 = vmatpush2.bf16.msra.mxu0 0
    %1435 = vmatprep.mubr.bf16.mxu0 0
    %1436 = vmatmul.mubr.bf16.gmra.mxu0 %v913
    %v1437 = vpop.f32.mrf.mxu0
    %v1438 = vadd.f32 0.0, %v1437
    %v1439 = vpop.f32.mrf.mxu0
    %v1440 = vadd.f32 0.0, %v1439
    %v1441 = vpop.f32.mrf.mxu0
    %v1442 = vpop.f32.mrf.mxu0
    %1443 = vdwg.mxu0
    %1444 = vmatprep.subr.bf16.mxu0 %v1286
    %1445 = vmatpush1.bf16.msra.mxu0 %v1285
    %1446 = vmatprep.subr.bf16.mxu0 %v1277
    %1447 = vmatpush1.bf16.msra.mxu0 %v1276
    %1448 = vmatprep.subr.bf16.mxu0 %v1268
    %1449 = vmatpush1.bf16.msra.mxu0 %v1267
    %1450 = vmatprep.subr.bf16.mxu0 %v1259
    %1451 = vmatpush1.bf16.msra.mxu0 %v1258
    %1452 = vmatprep.subr.bf16.mxu0 %v1250
    %1453 = vmatpush1.bf16.msra.mxu0 %v1249
    %1454 = vmatprep.subr.bf16.mxu0 %v1241
    %1455 = vmatpush1.bf16.msra.mxu0 %v1240
    %1456 = vmatprep.subr.bf16.mxu0 %v1232
    %1457 = vmatpush1.bf16.msra.mxu0 %v1231
    %1458 = vmatprep.subr.bf16.mxu0 %v1223
    %1459 = vmatpush1.bf16.msra.mxu0 %v1222
    %1460 = vmatprep.subr.bf16.mxu0 0
    %1461 = vmatpush2.bf16.msra.mxu0 0
    %1462 = vmatprep.subr.bf16.mxu0 0
    %1463 = vmatpush2.bf16.msra.mxu0 0
    %1464 = vmatprep.subr.bf16.mxu0 0
    %1465 = vmatpush2.bf16.msra.mxu0 0
    %1466 = vmatprep.subr.bf16.mxu0 0
    %1467 = vmatpush2.bf16.msra.mxu0 0
    %1468 = vmatprep.subr.bf16.mxu0 0
    %1469 = vmatpush2.bf16.msra.mxu0 0
    %1470 = vmatprep.subr.bf16.mxu0 0
    %1471 = vmatpush2.bf16.msra.mxu0 0
    %1472 = vmatprep.subr.bf16.mxu0 0
    %1473 = vmatpush2.bf16.msra.mxu0 0
    %1474 = vmatprep.subr.bf16.mxu0 0
    %1475 = vmatpush2.bf16.msra.mxu0 0
    %1476 = vmatprep.mubr.bf16.mxu0 0
    %1477 = vmatmul.mubr.bf16.gmra.mxu0 %v913
    %v1478 = vpop.f32.mrf.mxu0
    %v1479 = vadd.f32 0.0, %v1478
    %v1480 = vpop.f32.mrf.mxu0
    %v1481 = vadd.f32 0.0, %v1480
    %v1482 = vpop.f32.mrf.mxu0
    %v1483 = vpop.f32.mrf.mxu0
    %1484 = vdwg.mxu0
    %1485 = vmatprep.subr.bf16.mxu0 %v1288
    %1486 = vmatpush1.bf16.msra.mxu0 %v1287
    %1487 = vmatprep.subr.bf16.mxu0 %v1279
    %1488 = vmatpush1.bf16.msra.mxu0 %v1278
    %1489 = vmatprep.subr.bf16.mxu0 %v1270
    %1490 = vmatpush1.bf16.msra.mxu0 %v1269
    %1491 = vmatprep.subr.bf16.mxu0 %v1261
    %1492 = vmatpush1.bf16.msra.mxu0 %v1260
    %1493 = vmatprep.subr.bf16.mxu0 %v1252
    %1494 = vmatpush1.bf16.msra.mxu0 %v1251
    %1495 = vmatprep.subr.bf16.mxu0 %v1243
    %1496 = vmatpush1.bf16.msra.mxu0 %v1242
    %1497 = vmatprep.subr.bf16.mxu0 %v1234
    %1498 = vmatpush1.bf16.msra.mxu0 %v1233
    %1499 = vmatprep.subr.bf16.mxu0 %v1225
    %1500 = vmatpush1.bf16.msra.mxu0 %v1224
    %1501 = vmatprep.subr.bf16.mxu0 0
    %1502 = vmatpush2.bf16.msra.mxu0 0
    %1503 = vmatprep.subr.bf16.mxu0 0
    %1504 = vmatpush2.bf16.msra.mxu0 0
    %1505 = vmatprep.subr.bf16.mxu0 0
    %1506 = vmatpush2.bf16.msra.mxu0 0
    %1507 = vmatprep.subr.bf16.mxu0 0
    %1508 = vmatpush2.bf16.msra.mxu0 0
    %1509 = vmatprep.subr.bf16.mxu0 0
    %1510 = vmatpush2.bf16.msra.mxu0 0
    %1511 = vmatprep.subr.bf16.mxu0 0
    %1512 = vmatpush2.bf16.msra.mxu0 0
    %1513 = vmatprep.subr.bf16.mxu0 0
    %1514 = vmatpush2.bf16.msra.mxu0 0
    %1515 = vmatprep.subr.bf16.mxu0 0
    %1516 = vmatpush2.bf16.msra.mxu0 0
    %1517 = vmatprep.mubr.bf16.mxu0 0
    %1518 = vmatmul.mubr.bf16.gmra.mxu0 %v913
    %v1519 = vpop.f32.mrf.mxu0
    %v1520 = vpop.f32.mrf.mxu0
    %v1521 = vpop.f32.mrf.mxu0
    %v1522 = vadd.f32 0.0, %v1521
    %v1523 = vpop.f32.mrf.mxu0
    %v1524 = vadd.f32 0.0, %v1523
    %1525 = vdwg.mxu0
    %1526 = vmatprep.subr.bf16.mxu0 0
    %1527 = vmatpush1.bf16.msra.mxu0 %v1289
    %1528 = vmatprep.subr.bf16.mxu0 0
    %1529 = vmatpush1.bf16.msra.mxu0 %v1280
    %1530 = vmatprep.subr.bf16.mxu0 0
    %1531 = vmatpush1.bf16.msra.mxu0 %v1271
    %1532 = vmatprep.subr.bf16.mxu0 0
    %1533 = vmatpush1.bf16.msra.mxu0 %v1262
    %1534 = vmatprep.subr.bf16.mxu0 0
    %1535 = vmatpush1.bf16.msra.mxu0 %v1253
    %1536 = vmatprep.subr.bf16.mxu0 0
    %1537 = vmatpush1.bf16.msra.mxu0 %v1244
    %1538 = vmatprep.subr.bf16.mxu0 0
    %1539 = vmatpush1.bf16.msra.mxu0 %v1235
    %1540 = vmatprep.subr.bf16.mxu0 0
    %1541 = vmatpush1.bf16.msra.mxu0 %v1226
    %1542 = vmatprep.subr.bf16.mxu0 0
    %1543 = vmatpush2.bf16.msra.mxu0 0
    %1544 = vmatprep.subr.bf16.mxu0 0
    %1545 = vmatpush2.bf16.msra.mxu0 0
    %1546 = vmatprep.subr.bf16.mxu0 0
    %1547 = vmatpush2.bf16.msra.mxu0 0
    %1548 = vmatprep.subr.bf16.mxu0 0
    %1549 = vmatpush2.bf16.msra.mxu0 0
    %1550 = vmatprep.subr.bf16.mxu0 0
    %1551 = vmatpush2.bf16.msra.mxu0 0
    %1552 = vmatprep.subr.bf16.mxu0 0
    %1553 = vmatpush2.bf16.msra.mxu0 0
    %1554 = vmatprep.subr.bf16.mxu0 0
    %1555 = vmatpush2.bf16.msra.mxu0 0
    %1556 = vmatprep.subr.bf16.mxu0 0
    %1557 = vmatpush2.bf16.msra.mxu0 0
    %1558 = vmatprep.mubr.bf16.mxu0 0
    %1559 = vmatmul.mubr.bf16.gmra.mxu0 %v913
    %v1560 = vpop.f32.mrf.mxu0
    %v1561 = vpop.f32.mrf.mxu0
    %v1562 = vpop.f32.mrf.mxu0
    %v1563 = vadd.f32 0.0, %v1562
    %v1564 = vpop.f32.mrf.mxu0
    %1565 = vdwg.mxu0
    %v1566 = vadd.f32 %v1397, %v418
    %v1567 = vadd.f32 %v1399, %v419
    %v1568 = vadd.f32 %v1438, %v420
    %v1569 = vadd.f32 %v1440, %v421
    %v1570 = vadd.f32 %v1479, %v422
    %v1571 = vadd.f32 %v1481, %v423
    %v1572 = vadd.f32 %v1522, %v424
    %v1573 = vadd.f32 %v1524, %v425
    %v1574 = vadd.f32 %v1563, %v426
    %v1575 = vadd.f32 %v1566, %v1572
    %v1576 = vadd.f32 %v1567, %v1573
    %v1577 = vxor.u32 %v1575, 2147483648
    %v1578 = vxor.u32 %v1576, 2147483648
    %v1579 = vmul.f32 %v1577, 1.442695
    %v1580 = vpow.pop %v1579
    %v1581 = vmul.f32 %v1578, 1.442695
    %v1582 = vpow.pop %v1581
    %v1583 = vadd.f32 %v1580, 1.0
    %v1584 = vadd.f32 %v1582, 1.0
    %v1585 = vrcp.pop %v1583
    %v1586 = vmul.f32 1.0, %v1585
    %v1587 = vrcp.pop %v1584
    %v1588 = vmul.f32 1.0, %v1587
    %v1589 = vmul.f32 %v1586, %v1574
    %v1590 = vadd.f32 %v1568, %v1589
    %v1591 = vtanh.pop %v1590
    %v1592 = vsub.f32 1.0, %v1588
    %v1593 = vmul.f32 %v887, %v1592
    %v1594 = vsub.f32 %v1591, %v884
    %v1595 = vmul.f32 %v1593, %v1594
    %v1596 = vadd.f32 %v884, %v1595
    %v1597 = vmul.f32 %v887, %v1596
    %1598 = vst [vmem:[#allocation3 + $0x8] sm:$0xff] %v1597
    %v1599 = vld [vmem:[%s1 + $0x10] sm:$0xff]
    %v1600 = vld [vmem:[#allocation2 + $0x30] sm:$0xff]
    %v1601 = vld [vmem:[#allocation2 + $0x38] sm:$0xff]
    %v1602 = vld [vmem:[#allocation2 + $0x40] sm:$0xff]
    %v1603 = vadd.f32 %v1600, %v1569
    %v1604 = vadd.f32 %v1601, %v1570
    %v1605 = vxor.u32 %v1603, 2147483648
    %v1606 = vxor.u32 %v1604, 2147483648
    %v1607 = vmul.f32 %v1605, 1.442695
    %v1608 = vpow.pop %v1607
    %v1609 = vmul.f32 %v1606, 1.442695
    %v1610 = vpow.pop %v1609
    %v1611 = vadd.f32 %v1608, 1.0
    %v1612 = vadd.f32 %v1610, 1.0
    %v1613 = vrcp.pop %v1611
    %v1614 = vmul.f32 1.0, %v1613
    %v1615 = vrcp.pop %v1612
    %v1616 = vmul.f32 1.0, %v1615
    %v1617 = vmul.f32 %v1614, %v1571
    %v1618 = vadd.f32 %v1602, %v1617
    %v1619 = vtanh.pop %v1618
    %v1620 = vsub.f32 1.0, %v1616
    %v1621 = vmul.f32 %v1599, %v1620
    %v1622 = vsub.f32 %v1619, %v912
    %v1623 = vmul.f32 %v1621, %v1622
    %v1624 = vadd.f32 %v912, %v1623
    %v1625 = vpack.c.bf16 %v1596, %v1624
    %v1626 = vld [vmem:[%s4] sm:$0xff]
    %v1627 = vld [vmem:[%s4 + $0x8] sm:$0xff]
    %v1628 = vld [vmem:[%s4 + $0x10] sm:$0xff]
    %v1629 = vld [vmem:[%s4 + $0x18] sm:$0xff]
    %v1630 = vld [vmem:[%s4 + $0x20] sm:$0xf]
    %v1631 = vld [vmem:[%s4 + $0x24] sm:$0xff]
    %v1632 = vld [vmem:[%s4 + $0x2c] sm:$0xff]
    %v1633 = vld [vmem:[%s4 + $0x34] sm:$0xff]
    %v1634 = vld [vmem:[%s4 + $0x3c] sm:$0xff]
    %v1635 = vld [vmem:[%s4 + $0x44] sm:$0xf]
    %v1636 = vld [vmem:[%s4 + $0x48] sm:$0xff]
    %v1637 = vld [vmem:[%s4 + $0x50] sm:$0xff]
    %v1638 = vld [vmem:[%s4 + $0x58] sm:$0xff]
    %v1639 = vld [vmem:[%s4 + $0x60] sm:$0xff]
    %v1640 = vld [vmem:[%s4 + $0x68] sm:$0xf]
    %v1641 = vld [vmem:[%s4 + $0x6c] sm:$0xff]
    %v1642 = vld [vmem:[%s4 + $0x74] sm:$0xff]
    %v1643 = vld [vmem:[%s4 + $0x7c] sm:$0xff]
    %v1644 = vld [vmem:[%s4 + $0x84] sm:$0xff]
    %v1645 = vld [vmem:[%s4 + $0x8c] sm:$0xf]
    %v1646 = vld [vmem:[%s4 + $0x90] sm:$0xff]
    %v1647 = vld [vmem:[%s4 + $0x98] sm:$0xff]
    %v1648 = vld [vmem:[%s4 + $0xa0] sm:$0xff]
    %v1649 = vld [vmem:[%s4 + $0xa8] sm:$0xff]
    %v1650 = vld [vmem:[%s4 + $0xb0] sm:$0xf]
    %v1651 = vld [vmem:[%s4 + $0xb4] sm:$0xff]
    %v1652 = vld [vmem:[%s4 + $0xbc] sm:$0xff]
    %v1653 = vld [vmem:[%s4 + $0xc4] sm:$0xff]
    %v1654 = vld [vmem:[%s4 + $0xcc] sm:$0xff]
    %v1655 = vld [vmem:[%s4 + $0xd4] sm:$0xf]
    %v1656 = vld [vmem:[%s4 + $0xd8] sm:$0xff]
    %v1657 = vld [vmem:[%s4 + $0xe0] sm:$0xff]
    %v1658 = vld [vmem:[%s4 + $0xe8] sm:$0xff]
    %v1659 = vld [vmem:[%s4 + $0xf0] sm:$0xff]
    %v1660 = vld [vmem:[%s4 + $0xf8] sm:$0xf]
    %v1661 = vld [vmem:[%s4 + $0xfc] sm:$0xff]
    %v1662 = vld [vmem:[%s4 + $0x104] sm:$0xff]
    %v1663 = vld [vmem:[%s4 + $0x10c] sm:$0xff]
    %v1664 = vld [vmem:[%s4 + $0x114] sm:$0xff]
    %v1665 = vld [vmem:[%s4 + $0x11c] sm:$0xf]
    %v1666 = vld [vmem:[%s4 + $0x120] sm:$0xff]
    %v1667 = vld [vmem:[%s4 + $0x128] sm:$0xff]
    %v1668 = vld [vmem:[%s4 + $0x130] sm:$0xff]
    %v1669 = vld [vmem:[%s4 + $0x138] sm:$0xff]
    %v1670 = vld [vmem:[%s4 + $0x140] sm:$0xf]
    %v1671 = vld [vmem:[%s4 + $0x144] sm:$0xff]
    %v1672 = vld [vmem:[%s4 + $0x14c] sm:$0xff]
    %v1673 = vld [vmem:[%s4 + $0x154] sm:$0xff]
    %v1674 = vld [vmem:[%s4 + $0x15c] sm:$0xff]
    %v1675 = vld [vmem:[%s4 + $0x164] sm:$0xf]
    %v1676 = vld [vmem:[%s4 + $0x168] sm:$0xff]
    %v1677 = vld [vmem:[%s4 + $0x170] sm:$0xff]
    %v1678 = vld [vmem:[%s4 + $0x178] sm:$0xff]
    %v1679 = vld [vmem:[%s4 + $0x180] sm:$0xff]
    %v1680 = vld [vmem:[%s4 + $0x188] sm:$0xf]
    %v1681 = vld [vmem:[%s4 + $0x18c] sm:$0xff]
    %v1682 = vld [vmem:[%s4 + $0x194] sm:$0xff]
    %v1683 = vld [vmem:[%s4 + $0x19c] sm:$0xff]
    %v1684 = vld [vmem:[%s4 + $0x1a4] sm:$0xff]
    %v1685 = vld [vmem:[%s4 + $0x1ac] sm:$0xf]
    %v1686 = vld [vmem:[%s4 + $0x1b0] sm:$0xff]
    %v1687 = vld [vmem:[%s4 + $0x1b8] sm:$0xff]
    %v1688 = vld [vmem:[%s4 + $0x1c0] sm:$0xff]
    %v1689 = vld [vmem:[%s4 + $0x1c8] sm:$0xff]
    %v1690 = vld [vmem:[%s4 + $0x1d0] sm:$0xf]
    %v1691 = vld [vmem:[%s4 + $0x1d4] sm:$0xff]
    %v1692 = vld [vmem:[%s4 + $0x1dc] sm:$0xff]
    %v1693 = vld [vmem:[%s4 + $0x1e4] sm:$0xff]
    %v1694 = vld [vmem:[%s4 + $0x1ec] sm:$0xff]
    %v1695 = vld [vmem:[%s4 + $0x1f4] sm:$0xf]
    %v1696 = vld [vmem:[%s4 + $0x1f8] sm:$0xff]
    %v1697 = vld [vmem:[%s4 + $0x200] sm:$0xff]
    %v1698 = vld [vmem:[%s4 + $0x208] sm:$0xff]
    %v1699 = vld [vmem:[%s4 + $0x210] sm:$0xff]
    %v1700 = vld [vmem:[%s4 + $0x218] sm:$0xf]
    %v1701 = vld [vmem:[%s4 + $0x21c] sm:$0xff]
    %v1702 = vld [vmem:[%s4 + $0x224] sm:$0xff]
    %v1703 = vld [vmem:[%s4 + $0x22c] sm:$0xff]
    %v1704 = vld [vmem:[%s4 + $0x234] sm:$0xff]
    %v1705 = vld [vmem:[%s4 + $0x23c] sm:$0xf]
    %v1786 = vunpack.c.l.b16 %v1626
    %v1787 = vunpack.c.h.b16 %v1626
    %v1788 = vunpack.c.l.b16 %v1627
    %v1789 = vunpack.c.h.b16 %v1627
    %v1790 = vunpack.c.l.b16 %v1628
    %v1791 = vunpack.c.h.b16 %v1628
    %v1792 = vunpack.c.l.b16 %v1629
    %v1793 = vunpack.c.h.b16 %v1629
    %v1794 = vunpack.c.l.b16 %v1630
    %v1795 = vunpack.c.l.b16 %v1631
    %v1796 = vunpack.c.h.b16 %v1631
    %v1797 = vunpack.c.l.b16 %v1632
    %v1798 = vunpack.c.h.b16 %v1632
    %v1799 = vunpack.c.l.b16 %v1633
    %v1800 = vunpack.c.h.b16 %v1633
    %v1801 = vunpack.c.l.b16 %v1634
    %v1802 = vunpack.c.h.b16 %v1634
    %v1803 = vunpack.c.l.b16 %v1635
    %v1804 = vunpack.c.l.b16 %v1636
    %v1805 = vunpack.c.h.b16 %v1636
    %v1806 = vunpack.c.l.b16 %v1637
    %v1807 = vunpack.c.h.b16 %v1637
    %v1808 = vunpack.c.l.b16 %v1638
    %v1809 = vunpack.c.h.b16 %v1638
    %v1810 = vunpack.c.l.b16 %v1639
    %v1811 = vunpack.c.h.b16 %v1639
    %v1812 = vunpack.c.l.b16 %v1640
    %v1813 = vunpack.c.l.b16 %v1641
    %v1814 = vunpack.c.h.b16 %v1641
    %v1815 = vunpack.c.l.b16 %v1642
    %v1816 = vunpack.c.h.b16 %v1642
    %v1817 = vunpack.c.l.b16 %v1643
    %v1818 = vunpack.c.h.b16 %v1643
    %v1819 = vunpack.c.l.b16 %v1644
    %v1820 = vunpack.c.h.b16 %v1644
    %v1821 = vunpack.c.l.b16 %v1645
    %v1822 = vunpack.c.l.b16 %v1646
    %v1823 = vunpack.c.h.b16 %v1646
    %v1824 = vunpack.c.l.b16 %v1647
    %v1825 = vunpack.c.h.b16 %v1647
    %v1826 = vunpack.c.l.b16 %v1648
    %v1827 = vunpack.c.h.b16 %v1648
    %v1828 = vunpack.c.l.b16 %v1649
    %v1829 = vunpack.c.h.b16 %v1649
    %v1830 = vunpack.c.l.b16 %v1650
    %v1831 = vunpack.c.l.b16 %v1651
    %v1832 = vunpack.c.h.b16 %v1651
    %v1833 = vunpack.c.l.b16 %v1652
    %v1834 = vunpack.c.h.b16 %v1652
    %v1835 = vunpack.c.l.b16 %v1653
    %v1836 = vunpack.c.h.b16 %v1653
    %v1837 = vunpack.c.l.b16 %v1654
    %v1838 = vunpack.c.h.b16 %v1654
    %v1839 = vunpack.c.l.b16 %v1655
    %v1840 = vunpack.c.l.b16 %v1656
    %v1841 = vunpack.c.h.b16 %v1656
    %v1842 = vunpack.c.l.b16 %v1657
    %v1843 = vunpack.c.h.b16 %v1657
    %v1844 = vunpack.c.l.b16 %v1658
    %v1845 = vunpack.c.h.b16 %v1658
    %v1846 = vunpack.c.l.b16 %v1659
    %v1847 = vunpack.c.h.b16 %v1659
    %v1848 = vunpack.c.l.b16 %v1660
    %v1849 = vunpack.c.l.b16 %v1661
    %v1850 = vunpack.c.h.b16 %v1661
    %v1851 = vunpack.c.l.b16 %v1662
    %v1852 = vunpack.c.h.b16 %v1662
    %v1853 = vunpack.c.l.b16 %v1663
    %v1854 = vunpack.c.h.b16 %v1663
    %v1855 = vunpack.c.l.b16 %v1664
    %v1856 = vunpack.c.h.b16 %v1664
    %v1857 = vunpack.c.l.b16 %v1665
    %v1858 = vunpack.c.l.b16 %v1666
    %v1859 = vunpack.c.h.b16 %v1666
    %v1860 = vunpack.c.l.b16 %v1667
    %v1861 = vunpack.c.h.b16 %v1667
    %v1862 = vunpack.c.l.b16 %v1668
    %v1863 = vunpack.c.h.b16 %v1668
    %v1864 = vunpack.c.l.b16 %v1669
    %v1865 = vunpack.c.h.b16 %v1669
    %v1866 = vunpack.c.l.b16 %v1670
    %v1867 = vunpack.c.l.b16 %v1671
    %v1868 = vunpack.c.h.b16 %v1671
    %v1869 = vunpack.c.l.b16 %v1672
    %v1870 = vunpack.c.h.b16 %v1672
    %v1871 = vunpack.c.l.b16 %v1673
    %v1872 = vunpack.c.h.b16 %v1673
    %v1873 = vunpack.c.l.b16 %v1674
    %v1874 = vunpack.c.h.b16 %v1674
    %v1875 = vunpack.c.l.b16 %v1675
    %v1876 = vunpack.c.l.b16 %v1676
    %v1877 = vunpack.c.h.b16 %v1676
    %v1878 = vunpack.c.l.b16 %v1677
    %v1879 = vunpack.c.h.b16 %v1677
    %v1880 = vunpack.c.l.b16 %v1678
    %v1881 = vunpack.c.h.b16 %v1678
    %v1882 = vunpack.c.l.b16 %v1679
    %v1883 = vunpack.c.h.b16 %v1679
    %v1884 = vunpack.c.l.b16 %v1680
    %v1885 = vunpack.c.l.b16 %v1681
    %v1886 = vunpack.c.h.b16 %v1681
    %v1887 = vunpack.c.l.b16 %v1682
    %v1888 = vunpack.c.h.b16 %v1682
    %v1889 = vunpack.c.l.b16 %v1683
    %v1890 = vunpack.c.h.b16 %v1683
    %v1891 = vunpack.c.l.b16 %v1684
    %v1892 = vunpack.c.h.b16 %v1684
    %v1893 = vunpack.c.l.b16 %v1685
    %v1894 = vunpack.c.l.b16 %v1686
    %v1895 = vunpack.c.h.b16 %v1686
    %v1896 = vunpack.c.l.b16 %v1687
    %v1897 = vunpack.c.h.b16 %v1687
    %v1898 = vunpack.c.l.b16 %v1688
    %v1899 = vunpack.c.h.b16 %v1688
    %v1900 = vunpack.c.l.b16 %v1689
    %v1901 = vunpack.c.h.b16 %v1689
    %v1902 = vunpack.c.l.b16 %v1690
    %v1903 = vunpack.c.l.b16 %v1691
    %v1904 = vunpack.c.h.b16 %v1691
    %v1905 = vunpack.c.l.b16 %v1692
    %v1906 = vunpack.c.h.b16 %v1692
    %v1907 = vunpack.c.l.b16 %v1693
    %v1908 = vunpack.c.h.b16 %v1693
    %v1909 = vunpack.c.l.b16 %v1694
    %v1910 = vunpack.c.h.b16 %v1694
    %v1911 = vunpack.c.l.b16 %v1695
    %v1912 = vunpack.c.l.b16 %v1696
    %v1913 = vunpack.c.h.b16 %v1696
    %v1914 = vunpack.c.l.b16 %v1697
    %v1915 = vunpack.c.h.b16 %v1697
    %v1916 = vunpack.c.l.b16 %v1698
    %v1917 = vunpack.c.h.b16 %v1698
    %v1918 = vunpack.c.l.b16 %v1699
    %v1919 = vunpack.c.h.b16 %v1699
    %v1920 = vunpack.c.l.b16 %v1700
    %v1921 = vunpack.c.l.b16 %v1701
    %v1922 = vunpack.c.h.b16 %v1701
    %v1923 = vunpack.c.l.b16 %v1702
    %v1924 = vunpack.c.h.b16 %v1702
    %v1925 = vunpack.c.l.b16 %v1703
    %v1926 = vunpack.c.h.b16 %v1703
    %v1927 = vunpack.c.l.b16 %v1704
    %v1928 = vunpack.c.h.b16 %v1704
    %v1929 = vunpack.c.l.b16 %v1705
    %v1930 = vpack.c.b16 %v1795, %v1786
    %v1931 = vpack.c.b16 %v1796, %v1787
    %v1932 = vpack.c.b16 %v1797, %v1788
    %v1933 = vpack.c.b16 %v1798, %v1789
    %v1934 = vpack.c.b16 %v1799, %v1790
    %v1935 = vpack.c.b16 %v1800, %v1791
    %v1936 = vpack.c.b16 %v1801, %v1792
    %v1937 = vpack.c.b16 %v1802, %v1793
    %v1938 = vpack.c.b16 %v1803, %v1794
    %v1939 = vpack.c.b16 %v1813, %v1804
    %v1940 = vpack.c.b16 %v1814, %v1805
    %v1941 = vpack.c.b16 %v1815, %v1806
    %v1942 = vpack.c.b16 %v1816, %v1807
    %v1943 = vpack.c.b16 %v1817, %v1808
    %v1944 = vpack.c.b16 %v1818, %v1809
    %v1945 = vpack.c.b16 %v1819, %v1810
    %v1946 = vpack.c.b16 %v1820, %v1811
    %v1947 = vpack.c.b16 %v1821, %v1812
    %v1948 = vpack.c.b16 %v1831, %v1822
    %v1949 = vpack.c.b16 %v1832, %v1823
    %v1950 = vpack.c.b16 %v1833, %v1824
    %v1951 = vpack.c.b16 %v1834, %v1825
    %v1952 = vpack.c.b16 %v1835, %v1826
    %v1953 = vpack.c.b16 %v1836, %v1827
    %v1954 = vpack.c.b16 %v1837, %v1828
    %v1955 = vpack.c.b16 %v1838, %v1829
    %v1956 = vpack.c.b16 %v1839, %v1830
    %v1957 = vpack.c.b16 %v1849, %v1840
    %v1958 = vpack.c.b16 %v1850, %v1841
    %v1959 = vpack.c.b16 %v1851, %v1842
    %v1960 = vpack.c.b16 %v1852, %v1843
    %v1961 = vpack.c.b16 %v1853, %v1844
    %v1962 = vpack.c.b16 %v1854, %v1845
    %v1963 = vpack.c.b16 %v1855, %v1846
    %v1964 = vpack.c.b16 %v1856, %v1847
    %v1965 = vpack.c.b16 %v1857, %v1848
    %v1966 = vpack.c.b16 %v1867, %v1858
    %v1967 = vpack.c.b16 %v1868, %v1859
    %v1968 = vpack.c.b16 %v1869, %v1860
    %v1969 = vpack.c.b16 %v1870, %v1861
    %v1970 = vpack.c.b16 %v1871, %v1862
    %v1971 = vpack.c.b16 %v1872, %v1863
    %v1972 = vpack.c.b16 %v1873, %v1864
    %v1973 = vpack.c.b16 %v1874, %v1865
    %v1974 = vpack.c.b16 %v1875, %v1866
    %v1975 = vpack.c.b16 %v1885, %v1876
    %v1976 = vpack.c.b16 %v1886, %v1877
    %v1977 = vpack.c.b16 %v1887, %v1878
    %v1978 = vpack.c.b16 %v1888, %v1879
    %v1979 = vpack.c.b16 %v1889, %v1880
    %v1980 = vpack.c.b16 %v1890, %v1881
    %v1981 = vpack.c.b16 %v1891, %v1882
    %v1982 = vpack.c.b16 %v1892, %v1883
    %v1983 = vpack.c.b16 %v1893, %v1884
    %v1984 = vpack.c.b16 %v1903, %v1894
    %v1985 = vpack.c.b16 %v1904, %v1895
    %v1986 = vpack.c.b16 %v1905, %v1896
    %v1987 = vpack.c.b16 %v1906, %v1897
    %v1988 = vpack.c.b16 %v1907, %v1898
    %v1989 = vpack.c.b16 %v1908, %v1899
    %v1990 = vpack.c.b16 %v1909, %v1900
    %v1991 = vpack.c.b16 %v1910, %v1901
    %v1992 = vpack.c.b16 %v1911, %v1902
    %v1993 = vpack.c.b16 %v1921, %v1912
    %v1994 = vpack.c.b16 %v1922, %v1913
    %v1995 = vpack.c.b16 %v1923, %v1914
    %v1996 = vpack.c.b16 %v1924, %v1915
    %v1997 = vpack.c.b16 %v1925, %v1916
    %v1998 = vpack.c.b16 %v1926, %v1917
    %v1999 = vpack.c.b16 %v1927, %v1918
    %v2000 = vpack.c.b16 %v1928, %v1919
    %v2001 = vpack.c.b16 %v1929, %v1920
    %2074 = vmatprep.subr.bf16.mxu0 %v1994
    %2075 = vmatpush1.bf16.msra.mxu0 %v1993
    %2076 = vmatprep.subr.bf16.mxu0 %v1985
    %2077 = vmatpush1.bf16.msra.mxu0 %v1984
    %2078 = vmatprep.subr.bf16.mxu0 %v1976
    %2079 = vmatpush1.bf16.msra.mxu0 %v1975
    %2080 = vmatprep.subr.bf16.mxu0 %v1967
    %2081 = vmatpush1.bf16.msra.mxu0 %v1966
    %2082 = vmatprep.subr.bf16.mxu0 %v1958
    %2083 = vmatpush1.bf16.msra.mxu0 %v1957
    %2084 = vmatprep.subr.bf16.mxu0 %v1949
    %2085 = vmatpush1.bf16.msra.mxu0 %v1948
    %2086 = vmatprep.subr.bf16.mxu0 %v1940
    %2087 = vmatpush1.bf16.msra.mxu0 %v1939
    %2088 = vmatprep.subr.bf16.mxu0 %v1931
    %2089 = vmatpush1.bf16.msra.mxu0 %v1930
    %2090 = vmatprep.subr.bf16.mxu0 0
    %2091 = vmatpush2.bf16.msra.mxu0 0
    %2092 = vmatprep.subr.bf16.mxu0 0
    %2093 = vmatpush2.bf16.msra.mxu0 0
    %2094 = vmatprep.subr.bf16.mxu0 0
    %2095 = vmatpush2.bf16.msra.mxu0 0
    %2096 = vmatprep.subr.bf16.mxu0 0
    %2097 = vmatpush2.bf16.msra.mxu0 0
    %2098 = vmatprep.subr.bf16.mxu0 0
    %2099 = vmatpush2.bf16.msra.mxu0 0
    %2100 = vmatprep.subr.bf16.mxu0 0
    %2101 = vmatpush2.bf16.msra.mxu0 0
    %2102 = vmatprep.subr.bf16.mxu0 0
    %2103 = vmatpush2.bf16.msra.mxu0 0
    %2104 = vmatprep.subr.bf16.mxu0 0
    %2105 = vmatpush2.bf16.msra.mxu0 0
    %2106 = vmatprep.mubr.bf16.mxu0 0
    %2107 = vmatmul.mubr.bf16.gmra.mxu0 %v1625
    %v2108 = vpop.f32.mrf.mxu0
    %v2109 = vadd.f32 0.0, %v2108
    %v2110 = vpop.f32.mrf.mxu0
    %v2111 = vadd.f32 0.0, %v2110
    %v2112 = vpop.f32.mrf.mxu0
    %v2113 = vpop.f32.mrf.mxu0
    %2114 = vdwg.mxu0
    %2115 = vmatprep.subr.bf16.mxu0 %v1996
    %2116 = vmatpush1.bf16.msra.mxu0 %v1995
    %2117 = vmatprep.subr.bf16.mxu0 %v1987
    %2118 = vmatpush1.bf16.msra.mxu0 %v1986
    %2119 = vmatprep.subr.bf16.mxu0 %v1978
    %2120 = vmatpush1.bf16.msra.mxu0 %v1977
    %2121 = vmatprep.subr.bf16.mxu0 %v1969
    %2122 = vmatpush1.bf16.msra.mxu0 %v1968
    %2123 = vmatprep.subr.bf16.mxu0 %v1960
    %2124 = vmatpush1.bf16.msra.mxu0 %v1959
    %2125 = vmatprep.subr.bf16.mxu0 %v1951
    %2126 = vmatpush1.bf16.msra.mxu0 %v1950
    %2127 = vmatprep.subr.bf16.mxu0 %v1942
    %2128 = vmatpush1.bf16.msra.mxu0 %v1941
    %2129 = vmatprep.subr.bf16.mxu0 %v1933
    %2130 = vmatpush1.bf16.msra.mxu0 %v1932
    %2131 = vmatprep.subr.bf16.mxu0 0
    %2132 = vmatpush2.bf16.msra.mxu0 0
    %2133 = vmatprep.subr.bf16.mxu0 0
    %2134 = vmatpush2.bf16.msra.mxu0 0
    %2135 = vmatprep.subr.bf16.mxu0 0
    %2136 = vmatpush2.bf16.msra.mxu0 0
    %2137 = vmatprep.subr.bf16.mxu0 0
    %2138 = vmatpush2.bf16.msra.mxu0 0
    %2139 = vmatprep.subr.bf16.mxu0 0
    %2140 = vmatpush2.bf16.msra.mxu0 0
    %2141 = vmatprep.subr.bf16.mxu0 0
    %2142 = vmatpush2.bf16.msra.mxu0 0
    %2143 = vmatprep.subr.bf16.mxu0 0
    %2144 = vmatpush2.bf16.msra.mxu0 0
    %2145 = vmatprep.subr.bf16.mxu0 0
    %2146 = vmatpush2.bf16.msra.mxu0 0
    %2147 = vmatprep.mubr.bf16.mxu0 0
    %2148 = vmatmul.mubr.bf16.gmra.mxu0 %v1625
    %v2149 = vpop.f32.mrf.mxu0
    %v2150 = vadd.f32 0.0, %v2149
    %v2151 = vpop.f32.mrf.mxu0
    %v2152 = vadd.f32 0.0, %v2151
    %v2153 = vpop.f32.mrf.mxu0
    %v2154 = vpop.f32.mrf.mxu0
    %2155 = vdwg.mxu0
    %2156 = vmatprep.subr.bf16.mxu0 %v1998
    %2157 = vmatpush1.bf16.msra.mxu0 %v1997
    %2158 = vmatprep.subr.bf16.mxu0 %v1989
    %2159 = vmatpush1.bf16.msra.mxu0 %v1988
    %2160 = vmatprep.subr.bf16.mxu0 %v1980
    %2161 = vmatpush1.bf16.msra.mxu0 %v1979
    %2162 = vmatprep.subr.bf16.mxu0 %v1971
    %2163 = vmatpush1.bf16.msra.mxu0 %v1970
    %2164 = vmatprep.subr.bf16.mxu0 %v1962
    %2165 = vmatpush1.bf16.msra.mxu0 %v1961
    %2166 = vmatprep.subr.bf16.mxu0 %v1953
    %2167 = vmatpush1.bf16.msra.mxu0 %v1952
    %2168 = vmatprep.subr.bf16.mxu0 %v1944
    %2169 = vmatpush1.bf16.msra.mxu0 %v1943
    %2170 = vmatprep.subr.bf16.mxu0 %v1935
    %2171 = vmatpush1.bf16.msra.mxu0 %v1934
    %2172 = vmatprep.subr.bf16.mxu0 0
    %2173 = vmatpush2.bf16.msra.mxu0 0
    %2174 = vmatprep.subr.bf16.mxu0 0
    %2175 = vmatpush2.bf16.msra.mxu0 0
    %2176 = vmatprep.subr.bf16.mxu0 0
    %2177 = vmatpush2.bf16.msra.mxu0 0
    %2178 = vmatprep.subr.bf16.mxu0 0
    %2179 = vmatpush2.bf16.msra.mxu0 0
    %2180 = vmatprep.subr.bf16.mxu0 0
    %2181 = vmatpush2.bf16.msra.mxu0 0
    %2182 = vmatprep.subr.bf16.mxu0 0
    %2183 = vmatpush2.bf16.msra.mxu0 0
    %2184 = vmatprep.subr.bf16.mxu0 0
    %2185 = vmatpush2.bf16.msra.mxu0 0
    %2186 = vmatprep.subr.bf16.mxu0 0
    %2187 = vmatpush2.bf16.msra.mxu0 0
    %2188 = vmatprep.mubr.bf16.mxu0 0
    %2189 = vmatmul.mubr.bf16.gmra.mxu0 %v1625
    %v2190 = vpop.f32.mrf.mxu0
    %v2191 = vadd.f32 0.0, %v2190
    %v2192 = vpop.f32.mrf.mxu0
    %v2193 = vadd.f32 0.0, %v2192
    %v2194 = vpop.f32.mrf.mxu0
    %v2195 = vpop.f32.mrf.mxu0
    %2196 = vdwg.mxu0
    %2197 = vmatprep.subr.bf16.mxu0 %v2000
    %2198 = vmatpush1.bf16.msra.mxu0 %v1999
    %2199 = vmatprep.subr.bf16.mxu0 %v1991
    %2200 = vmatpush1.bf16.msra.mxu0 %v1990
    %2201 = vmatprep.subr.bf16.mxu0 %v1982
    %2202 = vmatpush1.bf16.msra.mxu0 %v1981
    %2203 = vmatprep.subr.bf16.mxu0 %v1973
    %2204 = vmatpush1.bf16.msra.mxu0 %v1972
    %2205 = vmatprep.subr.bf16.mxu0 %v1964
    %2206 = vmatpush1.bf16.msra.mxu0 %v1963
    %2207 = vmatprep.subr.bf16.mxu0 %v1955
    %2208 = vmatpush1.bf16.msra.mxu0 %v1954
    %2209 = vmatprep.subr.bf16.mxu0 %v1946
    %2210 = vmatpush1.bf16.msra.mxu0 %v1945
    %2211 = vmatprep.subr.bf16.mxu0 %v1937
    %2212 = vmatpush1.bf16.msra.mxu0 %v1936
    %2213 = vmatprep.subr.bf16.mxu0 0
    %2214 = vmatpush2.bf16.msra.mxu0 0
    %2215 = vmatprep.subr.bf16.mxu0 0
    %2216 = vmatpush2.bf16.msra.mxu0 0
    %2217 = vmatprep.subr.bf16.mxu0 0
    %2218 = vmatpush2.bf16.msra.mxu0 0
    %2219 = vmatprep.subr.bf16.mxu0 0
    %2220 = vmatpush2.bf16.msra.mxu0 0
    %2221 = vmatprep.subr.bf16.mxu0 0
    %2222 = vmatpush2.bf16.msra.mxu0 0
    %2223 = vmatprep.subr.bf16.mxu0 0
    %2224 = vmatpush2.bf16.msra.mxu0 0
    %2225 = vmatprep.subr.bf16.mxu0 0
    %2226 = vmatpush2.bf16.msra.mxu0 0
    %2227 = vmatprep.subr.bf16.mxu0 0
    %2228 = vmatpush2.bf16.msra.mxu0 0
    %2229 = vmatprep.mubr.bf16.mxu0 0
    %2230 = vmatmul.mubr.bf16.gmra.mxu0 %v1625
    %v2231 = vpop.f32.mrf.mxu0
    %v2232 = vpop.f32.mrf.mxu0
    %v2233 = vpop.f32.mrf.mxu0
    %v2234 = vadd.f32 0.0, %v2233
    %v2235 = vpop.f32.mrf.mxu0
    %v2236 = vadd.f32 0.0, %v2235
    %2237 = vdwg.mxu0
    %2238 = vmatprep.subr.bf16.mxu0 0
    %2239 = vmatpush1.bf16.msra.mxu0 %v2001
    %2240 = vmatprep.subr.bf16.mxu0 0
    %2241 = vmatpush1.bf16.msra.mxu0 %v1992
    %2242 = vmatprep.subr.bf16.mxu0 0
    %2243 = vmatpush1.bf16.msra.mxu0 %v1983
    %2244 = vmatprep.subr.bf16.mxu0 0
    %2245 = vmatpush1.bf16.msra.mxu0 %v1974
    %2246 = vmatprep.subr.bf16.mxu0 0
    %2247 = vmatpush1.bf16.msra.mxu0 %v1965
    %2248 = vmatprep.subr.bf16.mxu0 0
    %2249 = vmatpush1.bf16.msra.mxu0 %v1956
    %2250 = vmatprep.subr.bf16.mxu0 0
    %2251 = vmatpush1.bf16.msra.mxu0 %v1947
    %2252 = vmatprep.subr.bf16.mxu0 0
    %2253 = vmatpush1.bf16.msra.mxu0 %v1938
    %2254 = vmatprep.subr.bf16.mxu0 0
    %2255 = vmatpush2.bf16.msra.mxu0 0
    %2256 = vmatprep.subr.bf16.mxu0 0
    %2257 = vmatpush2.bf16.msra.mxu0 0
    %2258 = vmatprep.subr.bf16.mxu0 0
    %2259 = vmatpush2.bf16.msra.mxu0 0
    %2260 = vmatprep.subr.bf16.mxu0 0
    %2261 = vmatpush2.bf16.msra.mxu0 0
    %2262 = vmatprep.subr.bf16.mxu0 0
    %2263 = vmatpush2.bf16.msra.mxu0 0
    %2264 = vmatprep.subr.bf16.mxu0 0
    %2265 = vmatpush2.bf16.msra.mxu0 0
    %2266 = vmatprep.subr.bf16.mxu0 0
    %2267 = vmatpush2.bf16.msra.mxu0 0
    %2268 = vmatprep.subr.bf16.mxu0 0
    %2269 = vmatpush2.bf16.msra.mxu0 0
    %2270 = vmatprep.mubr.bf16.mxu0 0
    %2271 = vmatmul.mubr.bf16.gmra.mxu0 %v1625
    %v2272 = vpop.f32.mrf.mxu0
    %v2273 = vpop.f32.mrf.mxu0
    %v2274 = vpop.f32.mrf.mxu0
    %v2275 = vadd.f32 0.0, %v2274
    %v2276 = vpop.f32.mrf.mxu0
    %2277 = vdwg.mxu0
    %v2278 = vadd.f32 %v2109, %v418
    %v2279 = vadd.f32 %v2111, %v419
    %v2280 = vadd.f32 %v2150, %v420
    %v2281 = vadd.f32 %v2152, %v421
    %v2282 = vadd.f32 %v2191, %v422
    %v2283 = vadd.f32 %v2193, %v423
    %v2284 = vadd.f32 %v2234, %v424
    %v2285 = vadd.f32 %v2236, %v425
    %v2286 = vadd.f32 %v2275, %v426
    %v2287 = vadd.f32 %v2278, %v2284
    %v2288 = vadd.f32 %v2279, %v2285
    %v2289 = vxor.u32 %v2287, 2147483648
    %v2290 = vxor.u32 %v2288, 2147483648
    %v2291 = vmul.f32 %v2289, 1.442695
    %v2292 = vpow.pop %v2291
    %v2293 = vmul.f32 %v2290, 1.442695
    %v2294 = vpow.pop %v2293
    %v2295 = vadd.f32 %v2292, 1.0
    %v2296 = vadd.f32 %v2294, 1.0
    %v2297 = vrcp.pop %v2295
    %v2298 = vmul.f32 1.0, %v2297
    %v2299 = vrcp.pop %v2296
    %v2300 = vmul.f32 1.0, %v2299
    %v2301 = vmul.f32 %v2298, %v2286
    %v2302 = vadd.f32 %v2280, %v2301
    %v2303 = vtanh.pop %v2302
    %v2304 = vsub.f32 1.0, %v2300
    %v2305 = vmul.f32 %v1599, %v2304
    %v2306 = vsub.f32 %v2303, %v1596
    %v2307 = vmul.f32 %v2305, %v2306
    %v2308 = vadd.f32 %v1596, %v2307
    %v2309 = vmul.f32 %v1599, %v2308
    %2310 = vst [vmem:[#allocation3 + $0x10] sm:$0xff] %v2309
    %v2311 = vld [vmem:[%s1 + $0x18] sm:$0xff]
    %v2312 = vld [vmem:[#allocation2 + $0x48] sm:$0xff]
    %v2313 = vld [vmem:[#allocation2 + $0x50] sm:$0xff]
    %v2314 = vld [vmem:[#allocation2 + $0x58] sm:$0xff]
    %v2315 = vadd.f32 %v2312, %v2281
    %v2316 = vadd.f32 %v2313, %v2282
    %v2317 = vxor.u32 %v2315, 2147483648
    %v2318 = vxor.u32 %v2316, 2147483648
    %v2319 = vmul.f32 %v2317, 1.442695
    %v2320 = vpow.pop %v2319
    %v2321 = vmul.f32 %v2318, 1.442695
    %v2322 = vpow.pop %v2321
    %v2323 = vadd.f32 %v2320, 1.0
    %v2324 = vadd.f32 %v2322, 1.0
    %v2325 = vrcp.pop %v2323
    %v2326 = vmul.f32 1.0, %v2325
    %v2327 = vrcp.pop %v2324
    %v2328 = vmul.f32 1.0, %v2327
    %v2329 = vmul.f32 %v2326, %v2283
    %v2330 = vadd.f32 %v2314, %v2329
    %v2331 = vtanh.pop %v2330
    %v2332 = vsub.f32 1.0, %v2328
    %v2333 = vmul.f32 %v2311, %v2332
    %v2334 = vsub.f32 %v2331, %v1624
    %v2335 = vmul.f32 %v2333, %v2334
    %v2336 = vadd.f32 %v1624, %v2335
    %v2337 = vpack.c.bf16 %v2308, %v2336
    %v2338 = vld [vmem:[%s4] sm:$0xff]
    %v2339 = vld [vmem:[%s4 + $0x8] sm:$0xff]
    %v2340 = vld [vmem:[%s4 + $0x10] sm:$0xff]
    %v2341 = vld [vmem:[%s4 + $0x18] sm:$0xff]
    %v2342 = vld [vmem:[%s4 + $0x20] sm:$0xf]
    %v2343 = vld [vmem:[%s4 + $0x24] sm:$0xff]
    %v2344 = vld [vmem:[%s4 + $0x2c] sm:$0xff]
    %v2345 = vld [vmem:[%s4 + $0x34] sm:$0xff]
    %v2346 = vld [vmem:[%s4 + $0x3c] sm:$0xff]
    %v2347 = vld [vmem:[%s4 + $0x44] sm:$0xf]
    %v2348 = vld [vmem:[%s4 + $0x48] sm:$0xff]
    %v2349 = vld [vmem:[%s4 + $0x50] sm:$0xff]
    %v2350 = vld [vmem:[%s4 + $0x58] sm:$0xff]
    %v2351 = vld [vmem:[%s4 + $0x60] sm:$0xff]
    %v2352 = vld [vmem:[%s4 + $0x68] sm:$0xf]
    %v2353 = vld [vmem:[%s4 + $0x6c] sm:$0xff]
    %v2354 = vld [vmem:[%s4 + $0x74] sm:$0xff]
    %v2355 = vld [vmem:[%s4 + $0x7c] sm:$0xff]
    %v2356 = vld [vmem:[%s4 + $0x84] sm:$0xff]
    %v2357 = vld [vmem:[%s4 + $0x8c] sm:$0xf]
    %v2358 = vld [vmem:[%s4 + $0x90] sm:$0xff]
    %v2359 = vld [vmem:[%s4 + $0x98] sm:$0xff]
    %v2360 = vld [vmem:[%s4 + $0xa0] sm:$0xff]
    %v2361 = vld [vmem:[%s4 + $0xa8] sm:$0xff]
    %v2362 = vld [vmem:[%s4 + $0xb0] sm:$0xf]
    %v2363 = vld [vmem:[%s4 + $0xb4] sm:$0xff]
    %v2364 = vld [vmem:[%s4 + $0xbc] sm:$0xff]
    %v2365 = vld [vmem:[%s4 + $0xc4] sm:$0xff]
    %v2366 = vld [vmem:[%s4 + $0xcc] sm:$0xff]
    %v2367 = vld [vmem:[%s4 + $0xd4] sm:$0xf]
    %v2368 = vld [vmem:[%s4 + $0xd8] sm:$0xff]
    %v2369 = vld [vmem:[%s4 + $0xe0] sm:$0xff]
    %v2370 = vld [vmem:[%s4 + $0xe8] sm:$0xff]
    %v2371 = vld [vmem:[%s4 + $0xf0] sm:$0xff]
    %v2372 = vld [vmem:[%s4 + $0xf8] sm:$0xf]
    %v2373 = vld [vmem:[%s4 + $0xfc] sm:$0xff]
    %v2374 = vld [vmem:[%s4 + $0x104] sm:$0xff]
    %v2375 = vld [vmem:[%s4 + $0x10c] sm:$0xff]
    %v2376 = vld [vmem:[%s4 + $0x114] sm:$0xff]
    %v2377 = vld [vmem:[%s4 + $0x11c] sm:$0xf]
    %v2378 = vld [vmem:[%s4 + $0x120] sm:$0xff]
    %v2379 = vld [vmem:[%s4 + $0x128] sm:$0xff]
    %v2380 = vld [vmem:[%s4 + $0x130] sm:$0xff]
    %v2381 = vld [vmem:[%s4 + $0x138] sm:$0xff]
    %v2382 = vld [vmem:[%s4 + $0x140] sm:$0xf]
    %v2383 = vld [vmem:[%s4 + $0x144] sm:$0xff]
    %v2384 = vld [vmem:[%s4 + $0x14c] sm:$0xff]
    %v2385 = vld [vmem:[%s4 + $0x154] sm:$0xff]
    %v2386 = vld [vmem:[%s4 + $0x15c] sm:$0xff]
    %v2387 = vld [vmem:[%s4 + $0x164] sm:$0xf]
    %v2388 = vld [vmem:[%s4 + $0x168] sm:$0xff]
    %v2389 = vld [vmem:[%s4 + $0x170] sm:$0xff]
    %v2390 = vld [vmem:[%s4 + $0x178] sm:$0xff]
    %v2391 = vld [vmem:[%s4 + $0x180] sm:$0xff]
    %v2392 = vld [vmem:[%s4 + $0x188] sm:$0xf]
    %v2393 = vld [vmem:[%s4 + $0x18c] sm:$0xff]
    %v2394 = vld [vmem:[%s4 + $0x194] sm:$0xff]
    %v2395 = vld [vmem:[%s4 + $0x19c] sm:$0xff]
    %v2396 = vld [vmem:[%s4 + $0x1a4] sm:$0xff]
    %v2397 = vld [vmem:[%s4 + $0x1ac] sm:$0xf]
    %v2398 = vld [vmem:[%s4 + $0x1b0] sm:$0xff]
    %v2399 = vld [vmem:[%s4 + $0x1b8] sm:$0xff]
    %v2400 = vld [vmem:[%s4 + $0x1c0] sm:$0xff]
    %v2401 = vld [vmem:[%s4 + $0x1c8] sm:$0xff]
    %v2402 = vld [vmem:[%s4 + $0x1d0] sm:$0xf]
    %v2403 = vld [vmem:[%s4 + $0x1d4] sm:$0xff]
    %v2404 = vld [vmem:[%s4 + $0x1dc] sm:$0xff]
    %v2405 = vld [vmem:[%s4 + $0x1e4] sm:$0xff]
    %v2406 = vld [vmem:[%s4 + $0x1ec] sm:$0xff]
    %v2407 = vld [vmem:[%s4 + $0x1f4] sm:$0xf]
    %v2408 = vld [vmem:[%s4 + $0x1f8] sm:$0xff]
    %v2409 = vld [vmem:[%s4 + $0x200] sm:$0xff]
    %v2410 = vld [vmem:[%s4 + $0x208] sm:$0xff]
    %v2411 = vld [vmem:[%s4 + $0x210] sm:$0xff]
    %v2412 = vld [vmem:[%s4 + $0x218] sm:$0xf]
    %v2413 = vld [vmem:[%s4 + $0x21c] sm:$0xff]
    %v2414 = vld [vmem:[%s4 + $0x224] sm:$0xff]
    %v2415 = vld [vmem:[%s4 + $0x22c] sm:$0xff]
    %v2416 = vld [vmem:[%s4 + $0x234] sm:$0xff]
    %v2417 = vld [vmem:[%s4 + $0x23c] sm:$0xf]
    %v2498 = vunpack.c.l.b16 %v2338
    %v2499 = vunpack.c.h.b16 %v2338
    %v2500 = vunpack.c.l.b16 %v2339
    %v2501 = vunpack.c.h.b16 %v2339
    %v2502 = vunpack.c.l.b16 %v2340
    %v2503 = vunpack.c.h.b16 %v2340
    %v2504 = vunpack.c.l.b16 %v2341
    %v2505 = vunpack.c.h.b16 %v2341
    %v2506 = vunpack.c.l.b16 %v2342
    %v2507 = vunpack.c.l.b16 %v2343
    %v2508 = vunpack.c.h.b16 %v2343
    %v2509 = vunpack.c.l.b16 %v2344
    %v2510 = vunpack.c.h.b16 %v2344
    %v2511 = vunpack.c.l.b16 %v2345
    %v2512 = vunpack.c.h.b16 %v2345
    %v2513 = vunpack.c.l.b16 %v2346
    %v2514 = vunpack.c.h.b16 %v2346
    %v2515 = vunpack.c.l.b16 %v2347
    %v2516 = vunpack.c.l.b16 %v2348
    %v2517 = vunpack.c.h.b16 %v2348
    %v2518 = vunpack.c.l.b16 %v2349
    %v2519 = vunpack.c.h.b16 %v2349
    %v2520 = vunpack.c.l.b16 %v2350
    %v2521 = vunpack.c.h.b16 %v2350
    %v2522 = vunpack.c.l.b16 %v2351
    %v2523 = vunpack.c.h.b16 %v2351
    %v2524 = vunpack.c.l.b16 %v2352
    %v2525 = vunpack.c.l.b16 %v2353
    %v2526 = vunpack.c.h.b16 %v2353
    %v2527 = vunpack.c.l.b16 %v2354
    %v2528 = vunpack.c.h.b16 %v2354
    %v2529 = vunpack.c.l.b16 %v2355
    %v2530 = vunpack.c.h.b16 %v2355
    %v2531 = vunpack.c.l.b16 %v2356
    %v2532 = vunpack.c.h.b16 %v2356
    %v2533 = vunpack.c.l.b16 %v2357
    %v2534 = vunpack.c.l.b16 %v2358
    %v2535 = vunpack.c.h.b16 %v2358
    %v2536 = vunpack.c.l.b16 %v2359
    %v2537 = vunpack.c.h.b16 %v2359
    %v2538 = vunpack.c.l.b16 %v2360
    %v2539 = vunpack.c.h.b16 %v2360
    %v2540 = vunpack.c.l.b16 %v2361
    %v2541 = vunpack.c.h.b16 %v2361
    %v2542 = vunpack.c.l.b16 %v2362
    %v2543 = vunpack.c.l.b16 %v2363
    %v2544 = vunpack.c.h.b16 %v2363
    %v2545 = vunpack.c.l.b16 %v2364
    %v2546 = vunpack.c.h.b16 %v2364
    %v2547 = vunpack.c.l.b16 %v2365
    %v2548 = vunpack.c.h.b16 %v2365
    %v2549 = vunpack.c.l.b16 %v2366
    %v2550 = vunpack.c.h.b16 %v2366
    %v2551 = vunpack.c.l.b16 %v2367
    %v2552 = vunpack.c.l.b16 %v2368
    %v2553 = vunpack.c.h.b16 %v2368
    %v2554 = vunpack.c.l.b16 %v2369
    %v2555 = vunpack.c.h.b16 %v2369
    %v2556 = vunpack.c.l.b16 %v2370
    %v2557 = vunpack.c.h.b16 %v2370
    %v2558 = vunpack.c.l.b16 %v2371
    %v2559 = vunpack.c.h.b16 %v2371
    %v2560 = vunpack.c.l.b16 %v2372
    %v2561 = vunpack.c.l.b16 %v2373
    %v2562 = vunpack.c.h.b16 %v2373
    %v2563 = vunpack.c.l.b16 %v2374
    %v2564 = vunpack.c.h.b16 %v2374
    %v2565 = vunpack.c.l.b16 %v2375
    %v2566 = vunpack.c.h.b16 %v2375
    %v2567 = vunpack.c.l.b16 %v2376
    %v2568 = vunpack.c.h.b16 %v2376
    %v2569 = vunpack.c.l.b16 %v2377
    %v2570 = vunpack.c.l.b16 %v2378
    %v2571 = vunpack.c.h.b16 %v2378
    %v2572 = vunpack.c.l.b16 %v2379
    %v2573 = vunpack.c.h.b16 %v2379
    %v2574 = vunpack.c.l.b16 %v2380
    %v2575 = vunpack.c.h.b16 %v2380
    %v2576 = vunpack.c.l.b16 %v2381
    %v2577 = vunpack.c.h.b16 %v2381
    %v2578 = vunpack.c.l.b16 %v2382
    %v2579 = vunpack.c.l.b16 %v2383
    %v2580 = vunpack.c.h.b16 %v2383
    %v2581 = vunpack.c.l.b16 %v2384
    %v2582 = vunpack.c.h.b16 %v2384
    %v2583 = vunpack.c.l.b16 %v2385
    %v2584 = vunpack.c.h.b16 %v2385
    %v2585 = vunpack.c.l.b16 %v2386
    %v2586 = vunpack.c.h.b16 %v2386
    %v2587 = vunpack.c.l.b16 %v2387
    %v2588 = vunpack.c.l.b16 %v2388
    %v2589 = vunpack.c.h.b16 %v2388
    %v2590 = vunpack.c.l.b16 %v2389
    %v2591 = vunpack.c.h.b16 %v2389
    %v2592 = vunpack.c.l.b16 %v2390
    %v2593 = vunpack.c.h.b16 %v2390
    %v2594 = vunpack.c.l.b16 %v2391
    %v2595 = vunpack.c.h.b16 %v2391
    %v2596 = vunpack.c.l.b16 %v2392
    %v2597 = vunpack.c.l.b16 %v2393
    %v2598 = vunpack.c.h.b16 %v2393
    %v2599 = vunpack.c.l.b16 %v2394
    %v2600 = vunpack.c.h.b16 %v2394
    %v2601 = vunpack.c.l.b16 %v2395
    %v2602 = vunpack.c.h.b16 %v2395
    %v2603 = vunpack.c.l.b16 %v2396
    %v2604 = vunpack.c.h.b16 %v2396
    %v2605 = vunpack.c.l.b16 %v2397
    %v2606 = vunpack.c.l.b16 %v2398
    %v2607 = vunpack.c.h.b16 %v2398
    %v2608 = vunpack.c.l.b16 %v2399
    %v2609 = vunpack.c.h.b16 %v2399
    %v2610 = vunpack.c.l.b16 %v2400
    %v2611 = vunpack.c.h.b16 %v2400
    %v2612 = vunpack.c.l.b16 %v2401
    %v2613 = vunpack.c.h.b16 %v2401
    %v2614 = vunpack.c.l.b16 %v2402
    %v2615 = vunpack.c.l.b16 %v2403
    %v2616 = vunpack.c.h.b16 %v2403
    %v2617 = vunpack.c.l.b16 %v2404
    %v2618 = vunpack.c.h.b16 %v2404
    %v2619 = vunpack.c.l.b16 %v2405
    %v2620 = vunpack.c.h.b16 %v2405
    %v2621 = vunpack.c.l.b16 %v2406
    %v2622 = vunpack.c.h.b16 %v2406
    %v2623 = vunpack.c.l.b16 %v2407
    %v2624 = vunpack.c.l.b16 %v2408
    %v2625 = vunpack.c.h.b16 %v2408
    %v2626 = vunpack.c.l.b16 %v2409
    %v2627 = vunpack.c.h.b16 %v2409
    %v2628 = vunpack.c.l.b16 %v2410
    %v2629 = vunpack.c.h.b16 %v2410
    %v2630 = vunpack.c.l.b16 %v2411
    %v2631 = vunpack.c.h.b16 %v2411
    %v2632 = vunpack.c.l.b16 %v2412
    %v2633 = vunpack.c.l.b16 %v2413
    %v2634 = vunpack.c.h.b16 %v2413
    %v2635 = vunpack.c.l.b16 %v2414
    %v2636 = vunpack.c.h.b16 %v2414
    %v2637 = vunpack.c.l.b16 %v2415
    %v2638 = vunpack.c.h.b16 %v2415
    %v2639 = vunpack.c.l.b16 %v2416
    %v2640 = vunpack.c.h.b16 %v2416
    %v2641 = vunpack.c.l.b16 %v2417
    %v2642 = vpack.c.b16 %v2507, %v2498
    %v2643 = vpack.c.b16 %v2508, %v2499
    %v2644 = vpack.c.b16 %v2509, %v2500
    %v2645 = vpack.c.b16 %v2510, %v2501
    %v2646 = vpack.c.b16 %v2511, %v2502
    %v2647 = vpack.c.b16 %v2512, %v2503
    %v2648 = vpack.c.b16 %v2513, %v2504
    %v2649 = vpack.c.b16 %v2514, %v2505
    %v2650 = vpack.c.b16 %v2515, %v2506
    %v2651 = vpack.c.b16 %v2525, %v2516
    %v2652 = vpack.c.b16 %v2526, %v2517
    %v2653 = vpack.c.b16 %v2527, %v2518
    %v2654 = vpack.c.b16 %v2528, %v2519
    %v2655 = vpack.c.b16 %v2529, %v2520
    %v2656 = vpack.c.b16 %v2530, %v2521
    %v2657 = vpack.c.b16 %v2531, %v2522
    %v2658 = vpack.c.b16 %v2532, %v2523
    %v2659 = vpack.c.b16 %v2533, %v2524
    %v2660 = vpack.c.b16 %v2543, %v2534
    %v2661 = vpack.c.b16 %v2544, %v2535
    %v2662 = vpack.c.b16 %v2545, %v2536
    %v2663 = vpack.c.b16 %v2546, %v2537
    %v2664 = vpack.c.b16 %v2547, %v2538
    %v2665 = vpack.c.b16 %v2548, %v2539
    %v2666 = vpack.c.b16 %v2549, %v2540
    %v2667 = vpack.c.b16 %v2550, %v2541
    %v2668 = vpack.c.b16 %v2551, %v2542
    %v2669 = vpack.c.b16 %v2561, %v2552
    %v2670 = vpack.c.b16 %v2562, %v2553
    %v2671 = vpack.c.b16 %v2563, %v2554
    %v2672 = vpack.c.b16 %v2564, %v2555
    %v2673 = vpack.c.b16 %v2565, %v2556
    %v2674 = vpack.c.b16 %v2566, %v2557
    %v2675 = vpack.c.b16 %v2567, %v2558
    %v2676 = vpack.c.b16 %v2568, %v2559
    %v2677 = vpack.c.b16 %v2569, %v2560
    %v2678 = vpack.c.b16 %v2579, %v2570
    %v2679 = vpack.c.b16 %v2580, %v2571
    %v2680 = vpack.c.b16 %v2581, %v2572
    %v2681 = vpack.c.b16 %v2582, %v2573
    %v2682 = vpack.c.b16 %v2583, %v2574
    %v2683 = vpack.c.b16 %v2584, %v2575
    %v2684 = vpack.c.b16 %v2585, %v2576
    %v2685 = vpack.c.b16 %v2586, %v2577
    %v2686 = vpack.c.b16 %v2587, %v2578
    %v2687 = vpack.c.b16 %v2597, %v2588
    %v2688 = vpack.c.b16 %v2598, %v2589
    %v2689 = vpack.c.b16 %v2599, %v2590
    %v2690 = vpack.c.b16 %v2600, %v2591
    %v2691 = vpack.c.b16 %v2601, %v2592
    %v2692 = vpack.c.b16 %v2602, %v2593
    %v2693 = vpack.c.b16 %v2603, %v2594
    %v2694 = vpack.c.b16 %v2604, %v2595
    %v2695 = vpack.c.b16 %v2605, %v2596
    %v2696 = vpack.c.b16 %v2615, %v2606
    %v2697 = vpack.c.b16 %v2616, %v2607
    %v2698 = vpack.c.b16 %v2617, %v2608
    %v2699 = vpack.c.b16 %v2618, %v2609
    %v2700 = vpack.c.b16 %v2619, %v2610
    %v2701 = vpack.c.b16 %v2620, %v2611
    %v2702 = vpack.c.b16 %v2621, %v2612
    %v2703 = vpack.c.b16 %v2622, %v2613
    %v2704 = vpack.c.b16 %v2623, %v2614
    %v2705 = vpack.c.b16 %v2633, %v2624
    %v2706 = vpack.c.b16 %v2634, %v2625
    %v2707 = vpack.c.b16 %v2635, %v2626
    %v2708 = vpack.c.b16 %v2636, %v2627
    %v2709 = vpack.c.b16 %v2637, %v2628
    %v2710 = vpack.c.b16 %v2638, %v2629
    %v2711 = vpack.c.b16 %v2639, %v2630
    %v2712 = vpack.c.b16 %v2640, %v2631
    %v2713 = vpack.c.b16 %v2641, %v2632
    %2786 = vmatprep.subr.bf16.mxu0 %v2706
    %2787 = vmatpush1.bf16.msra.mxu0 %v2705
    %2788 = vmatprep.subr.bf16.mxu0 %v2697
    %2789 = vmatpush1.bf16.msra.mxu0 %v2696
    %2790 = vmatprep.subr.bf16.mxu0 %v2688
    %2791 = vmatpush1.bf16.msra.mxu0 %v2687
    %2792 = vmatprep.subr.bf16.mxu0 %v2679
    %2793 = vmatpush1.bf16.msra.mxu0 %v2678
    %2794 = vmatprep.subr.bf16.mxu0 %v2670
    %2795 = vmatpush1.bf16.msra.mxu0 %v2669
    %2796 = vmatprep.subr.bf16.mxu0 %v2661
    %2797 = vmatpush1.bf16.msra.mxu0 %v2660
    %2798 = vmatprep.subr.bf16.mxu0 %v2652
    %2799 = vmatpush1.bf16.msra.mxu0 %v2651
    %2800 = vmatprep.subr.bf16.mxu0 %v2643
    %2801 = vmatpush1.bf16.msra.mxu0 %v2642
    %2802 = vmatprep.subr.bf16.mxu0 0
    %2803 = vmatpush2.bf16.msra.mxu0 0
    %2804 = vmatprep.subr.bf16.mxu0 0
    %2805 = vmatpush2.bf16.msra.mxu0 0
    %2806 = vmatprep.subr.bf16.mxu0 0
    %2807 = vmatpush2.bf16.msra.mxu0 0
    %2808 = vmatprep.subr.bf16.mxu0 0
    %2809 = vmatpush2.bf16.msra.mxu0 0
    %2810 = vmatprep.subr.bf16.mxu0 0
    %2811 = vmatpush2.bf16.msra.mxu0 0
    %2812 = vmatprep.subr.bf16.mxu0 0
    %2813 = vmatpush2.bf16.msra.mxu0 0
    %2814 = vmatprep.subr.bf16.mxu0 0
    %2815 = vmatpush2.bf16.msra.mxu0 0
    %2816 = vmatprep.subr.bf16.mxu0 0
    %2817 = vmatpush2.bf16.msra.mxu0 0
    %2818 = vmatprep.mubr.bf16.mxu0 0
    %2819 = vmatmul.mubr.bf16.gmra.mxu0 %v2337
    %v2820 = vpop.f32.mrf.mxu0
    %v2821 = vadd.f32 0.0, %v2820
    %v2822 = vpop.f32.mrf.mxu0
    %v2823 = vadd.f32 0.0, %v2822
    %v2824 = vpop.f32.mrf.mxu0
    %v2825 = vpop.f32.mrf.mxu0
    %2826 = vdwg.mxu0
    %2827 = vmatprep.subr.bf16.mxu0 %v2708
    %2828 = vmatpush1.bf16.msra.mxu0 %v2707
    %2829 = vmatprep.subr.bf16.mxu0 %v2699
    %2830 = vmatpush1.bf16.msra.mxu0 %v2698
    %2831 = vmatprep.subr.bf16.mxu0 %v2690
    %2832 = vmatpush1.bf16.msra.mxu0 %v2689
    %2833 = vmatprep.subr.bf16.mxu0 %v2681
    %2834 = vmatpush1.bf16.msra.mxu0 %v2680
    %2835 = vmatprep.subr.bf16.mxu0 %v2672
    %2836 = vmatpush1.bf16.msra.mxu0 %v2671
    %2837 = vmatprep.subr.bf16.mxu0 %v2663
    %2838 = vmatpush1.bf16.msra.mxu0 %v2662
    %2839 = vmatprep.subr.bf16.mxu0 %v2654
    %2840 = vmatpush1.bf16.msra.mxu0 %v2653
    %2841 = vmatprep.subr.bf16.mxu0 %v2645
    %2842 = vmatpush1.bf16.msra.mxu0 %v2644
    %2843 = vmatprep.subr.bf16.mxu0 0
    %2844 = vmatpush2.bf16.msra.mxu0 0
    %2845 = vmatprep.subr.bf16.mxu0 0
    %2846 = vmatpush2.bf16.msra.mxu0 0
    %2847 = vmatprep.subr.bf16.mxu0 0
    %2848 = vmatpush2.bf16.msra.mxu0 0
    %2849 = vmatprep.subr.bf16.mxu0 0
    %2850 = vmatpush2.bf16.msra.mxu0 0
    %2851 = vmatprep.subr.bf16.mxu0 0
    %2852 = vmatpush2.bf16.msra.mxu0 0
    %2853 = vmatprep.subr.bf16.mxu0 0
    %2854 = vmatpush2.bf16.msra.mxu0 0
    %2855 = vmatprep.subr.bf16.mxu0 0
    %2856 = vmatpush2.bf16.msra.mxu0 0
    %2857 = vmatprep.subr.bf16.mxu0 0
    %2858 = vmatpush2.bf16.msra.mxu0 0
    %2859 = vmatprep.mubr.bf16.mxu0 0
    %2860 = vmatmul.mubr.bf16.gmra.mxu0 %v2337
    %v2861 = vpop.f32.mrf.mxu0
    %v2862 = vadd.f32 0.0, %v2861
    %v2863 = vpop.f32.mrf.mxu0
    %v2864 = vadd.f32 0.0, %v2863
    %v2865 = vpop.f32.mrf.mxu0
    %v2866 = vpop.f32.mrf.mxu0
    %2867 = vdwg.mxu0
    %2868 = vmatprep.subr.bf16.mxu0 %v2710
    %2869 = vmatpush1.bf16.msra.mxu0 %v2709
    %2870 = vmatprep.subr.bf16.mxu0 %v2701
    %2871 = vmatpush1.bf16.msra.mxu0 %v2700
    %2872 = vmatprep.subr.bf16.mxu0 %v2692
    %2873 = vmatpush1.bf16.msra.mxu0 %v2691
    %2874 = vmatprep.subr.bf16.mxu0 %v2683
    %2875 = vmatpush1.bf16.msra.mxu0 %v2682
    %2876 = vmatprep.subr.bf16.mxu0 %v2674
    %2877 = vmatpush1.bf16.msra.mxu0 %v2673
    %2878 = vmatprep.subr.bf16.mxu0 %v2665
    %2879 = vmatpush1.bf16.msra.mxu0 %v2664
    %2880 = vmatprep.subr.bf16.mxu0 %v2656
    %2881 = vmatpush1.bf16.msra.mxu0 %v2655
    %2882 = vmatprep.subr.bf16.mxu0 %v2647
    %2883 = vmatpush1.bf16.msra.mxu0 %v2646
    %2884 = vmatprep.subr.bf16.mxu0 0
    %2885 = vmatpush2.bf16.msra.mxu0 0
    %2886 = vmatprep.subr.bf16.mxu0 0
    %2887 = vmatpush2.bf16.msra.mxu0 0
    %2888 = vmatprep.subr.bf16.mxu0 0
    %2889 = vmatpush2.bf16.msra.mxu0 0
    %2890 = vmatprep.subr.bf16.mxu0 0
    %2891 = vmatpush2.bf16.msra.mxu0 0
    %2892 = vmatprep.subr.bf16.mxu0 0
    %2893 = vmatpush2.bf16.msra.mxu0 0
    %2894 = vmatprep.subr.bf16.mxu0 0
    %2895 = vmatpush2.bf16.msra.mxu0 0
    %2896 = vmatprep.subr.bf16.mxu0 0
    %2897 = vmatpush2.bf16.msra.mxu0 0
    %2898 = vmatprep.subr.bf16.mxu0 0
    %2899 = vmatpush2.bf16.msra.mxu0 0
    %2900 = vmatprep.mubr.bf16.mxu0 0
    %2901 = vmatmul.mubr.bf16.gmra.mxu0 %v2337
    %v2902 = vpop.f32.mrf.mxu0
    %v2903 = vadd.f32 0.0, %v2902
    %v2904 = vpop.f32.mrf.mxu0
    %v2905 = vadd.f32 0.0, %v2904
    %v2906 = vpop.f32.mrf.mxu0
    %v2907 = vpop.f32.mrf.mxu0
    %2908 = vdwg.mxu0
    %2909 = vmatprep.subr.bf16.mxu0 %v2712
    %2910 = vmatpush1.bf16.msra.mxu0 %v2711
    %2911 = vmatprep.subr.bf16.mxu0 %v2703
    %2912 = vmatpush1.bf16.msra.mxu0 %v2702
    %2913 = vmatprep.subr.bf16.mxu0 %v2694
    %2914 = vmatpush1.bf16.msra.mxu0 %v2693
    %2915 = vmatprep.subr.bf16.mxu0 %v2685
    %2916 = vmatpush1.bf16.msra.mxu0 %v2684
    %2917 = vmatprep.subr.bf16.mxu0 %v2676
    %2918 = vmatpush1.bf16.msra.mxu0 %v2675
    %2919 = vmatprep.subr.bf16.mxu0 %v2667
    %2920 = vmatpush1.bf16.msra.mxu0 %v2666
    %2921 = vmatprep.subr.bf16.mxu0 %v2658
    %2922 = vmatpush1.bf16.msra.mxu0 %v2657
    %2923 = vmatprep.subr.bf16.mxu0 %v2649
    %2924 = vmatpush1.bf16.msra.mxu0 %v2648
    %2925 = vmatprep.subr.bf16.mxu0 0
    %2926 = vmatpush2.bf16.msra.mxu0 0
    %2927 = vmatprep.subr.bf16.mxu0 0
    %2928 = vmatpush2.bf16.msra.mxu0 0
    %2929 = vmatprep.subr.bf16.mxu0 0
    %2930 = vmatpush2.bf16.msra.mxu0 0
    %2931 = vmatprep.subr.bf16.mxu0 0
    %2932 = vmatpush2.bf16.msra.mxu0 0
    %2933 = vmatprep.subr.bf16.mxu0 0
    %2934 = vmatpush2.bf16.msra.mxu0 0
    %2935 = vmatprep.subr.bf16.mxu0 0
    %2936 = vmatpush2.bf16.msra.mxu0 0
    %2937 = vmatprep.subr.bf16.mxu0 0
    %2938 = vmatpush2.bf16.msra.mxu0 0
    %2939 = vmatprep.subr.bf16.mxu0 0
    %2940 = vmatpush2.bf16.msra.mxu0 0
    %2941 = vmatprep.mubr.bf16.mxu0 0
    %2942 = vmatmul.mubr.bf16.gmra.mxu0 %v2337
    %v2943 = vpop.f32.mrf.mxu0
    %v2944 = vpop.f32.mrf.mxu0
    %v2945 = vpop.f32.mrf.mxu0
    %v2946 = vadd.f32 0.0, %v2945
    %v2947 = vpop.f32.mrf.mxu0
    %v2948 = vadd.f32 0.0, %v2947
    %2949 = vdwg.mxu0
    %2950 = vmatprep.subr.bf16.mxu0 0
    %2951 = vmatpush1.bf16.msra.mxu0 %v2713
    %2952 = vmatprep.subr.bf16.mxu0 0
    %2953 = vmatpush1.bf16.msra.mxu0 %v2704
    %2954 = vmatprep.subr.bf16.mxu0 0
    %2955 = vmatpush1.bf16.msra.mxu0 %v2695
    %2956 = vmatprep.subr.bf16.mxu0 0
    %2957 = vmatpush1.bf16.msra.mxu0 %v2686
    %2958 = vmatprep.subr.bf16.mxu0 0
    %2959 = vmatpush1.bf16.msra.mxu0 %v2677
    %2960 = vmatprep.subr.bf16.mxu0 0
    %2961 = vmatpush1.bf16.msra.mxu0 %v2668
    %2962 = vmatprep.subr.bf16.mxu0 0
    %2963 = vmatpush1.bf16.msra.mxu0 %v2659
    %2964 = vmatprep.subr.bf16.mxu0 0
    %2965 = vmatpush1.bf16.msra.mxu0 %v2650
    %2966 = vmatprep.subr.bf16.mxu0 0
    %2967 = vmatpush2.bf16.msra.mxu0 0
    %2968 = vmatprep.subr.bf16.mxu0 0
    %2969 = vmatpush2.bf16.msra.mxu0 0
    %2970 = vmatprep.subr.bf16.mxu0 0
    %2971 = vmatpush2.bf16.msra.mxu0 0
    %2972 = vmatprep.subr.bf16.mxu0 0
    %2973 = vmatpush2.bf16.msra.mxu0 0
    %2974 = vmatprep.subr.bf16.mxu0 0
    %2975 = vmatpush2.bf16.msra.mxu0 0
    %2976 = vmatprep.subr.bf16.mxu0 0
    %2977 = vmatpush2.bf16.msra.mxu0 0
    %2978 = vmatprep.subr.bf16.mxu0 0
    %2979 = vmatpush2.bf16.msra.mxu0 0
    %2980 = vmatprep.subr.bf16.mxu0 0
    %2981 = vmatpush2.bf16.msra.mxu0 0
    %2982 = vmatprep.mubr.bf16.mxu0 0
    %2983 = vmatmul.mubr.bf16.gmra.mxu0 %v2337
    %v2984 = vpop.f32.mrf.mxu0
    %v2985 = vpop.f32.mrf.mxu0
    %v2986 = vpop.f32.mrf.mxu0
    %v2987 = vadd.f32 0.0, %v2986
    %v2988 = vpop.f32.mrf.mxu0
    %2989 = vdwg.mxu0
    %v2990 = vadd.f32 %v2821, %v418
    %v2991 = vadd.f32 %v2823, %v419
    %v2992 = vadd.f32 %v2862, %v420
    %v2993 = vadd.f32 %v2864, %v421
    %v2994 = vadd.f32 %v2903, %v422
    %v2995 = vadd.f32 %v2905, %v423
    %v2996 = vadd.f32 %v2946, %v424
    %v2997 = vadd.f32 %v2948, %v425
    %v2998 = vadd.f32 %v2987, %v426
    %v2999 = vadd.f32 %v2990, %v2996
    %v3000 = vadd.f32 %v2991, %v2997
    %v3001 = vxor.u32 %v2999, 2147483648
    %v3002 = vxor.u32 %v3000, 2147483648
    %v3003 = vmul.f32 %v3001, 1.442695
    %v3004 = vpow.pop %v3003
    %v3005 = vmul.f32 %v3002, 1.442695
    %v3006 = vpow.pop %v3005
    %v3007 = vadd.f32 %v3004, 1.0
    %v3008 = vadd.f32 %v3006, 1.0
    %v3009 = vrcp.pop %v3007
    %v3010 = vmul.f32 1.0, %v3009
    %v3011 = vrcp.pop %v3008
    %v3012 = vmul.f32 1.0, %v3011
    %v3013 = vmul.f32 %v3010, %v2998
    %v3014 = vadd.f32 %v2992, %v3013
    %v3015 = vtanh.pop %v3014
    %v3016 = vsub.f32 1.0, %v3012
    %v3017 = vmul.f32 %v2311, %v3016
    %v3018 = vsub.f32 %v3015, %v2308
    %v3019 = vmul.f32 %v3017, %v3018
    %v3020 = vadd.f32 %v2308, %v3019
    %v3021 = vmul.f32 %v2311, %v3020
    %3022 = vst [vmem:[#allocation3 + $0x18] sm:$0xff] %v3021
    %v3023 = vld [vmem:[%s1 + $0x20] sm:$0xff]
    %v3024 = vld [vmem:[#allocation2 + $0x60] sm:$0xff]
    %v3025 = vld [vmem:[#allocation2 + $0x68] sm:$0xff]
    %v3026 = vld [vmem:[#allocation2 + $0x70] sm:$0xff]
    %v3027 = vadd.f32 %v3024, %v2993
    %v3028 = vadd.f32 %v3025, %v2994
    %v3029 = vxor.u32 %v3027, 2147483648
    %v3030 = vxor.u32 %v3028, 2147483648
    %v3031 = vmul.f32 %v3029, 1.442695
    %v3032 = vpow.pop %v3031
    %v3033 = vmul.f32 %v3030, 1.442695
    %v3034 = vpow.pop %v3033
    %v3035 = vadd.f32 %v3032, 1.0
    %v3036 = vadd.f32 %v3034, 1.0
    %v3037 = vrcp.pop %v3035
    %v3038 = vmul.f32 1.0, %v3037
    %v3039 = vrcp.pop %v3036
    %v3040 = vmul.f32 1.0, %v3039
    %v3041 = vmul.f32 %v3038, %v2995
    %v3042 = vadd.f32 %v3026, %v3041
    %v3043 = vtanh.pop %v3042
    %v3044 = vsub.f32 1.0, %v3040
    %v3045 = vmul.f32 %v3023, %v3044
    %v3046 = vsub.f32 %v3043, %v2336
    %v3047 = vmul.f32 %v3045, %v3046
    %v3048 = vadd.f32 %v2336, %v3047
    %v3049 = vpack.c.bf16 %v3020, %v3048
    %v3050 = vld [vmem:[%s4] sm:$0xff]
    %v3051 = vld [vmem:[%s4 + $0x8] sm:$0xff]
    %v3052 = vld [vmem:[%s4 + $0x10] sm:$0xff]
    %v3053 = vld [vmem:[%s4 + $0x18] sm:$0xff]
    %v3054 = vld [vmem:[%s4 + $0x20] sm:$0xf]
    %v3055 = vld [vmem:[%s4 + $0x24] sm:$0xff]
    %v3056 = vld [vmem:[%s4 + $0x2c] sm:$0xff]
    %v3057 = vld [vmem:[%s4 + $0x34] sm:$0xff]
    %v3058 = vld [vmem:[%s4 + $0x3c] sm:$0xff]
    %v3059 = vld [vmem:[%s4 + $0x44] sm:$0xf]
    %v3060 = vld [vmem:[%s4 + $0x48] sm:$0xff]
    %v3061 = vld [vmem:[%s4 + $0x50] sm:$0xff]
    %v3062 = vld [vmem:[%s4 + $0x58] sm:$0xff]
    %v3063 = vld [vmem:[%s4 + $0x60] sm:$0xff]
    %v3064 = vld [vmem:[%s4 + $0x68] sm:$0xf]
    %v3065 = vld [vmem:[%s4 + $0x6c] sm:$0xff]
    %v3066 = vld [vmem:[%s4 + $0x74] sm:$0xff]
    %v3067 = vld [vmem:[%s4 + $0x7c] sm:$0xff]
    %v3068 = vld [vmem:[%s4 + $0x84] sm:$0xff]
    %v3069 = vld [vmem:[%s4 + $0x8c] sm:$0xf]
    %v3070 = vld [vmem:[%s4 + $0x90] sm:$0xff]
    %v3071 = vld [vmem:[%s4 + $0x98] sm:$0xff]
    %v3072 = vld [vmem:[%s4 + $0xa0] sm:$0xff]
    %v3073 = vld [vmem:[%s4 + $0xa8] sm:$0xff]
    %v3074 = vld [vmem:[%s4 + $0xb0] sm:$0xf]
    %v3075 = vld [vmem:[%s4 + $0xb4] sm:$0xff]
    %v3076 = vld [vmem:[%s4 + $0xbc] sm:$0xff]
    %v3077 = vld [vmem:[%s4 + $0xc4] sm:$0xff]
    %v3078 = vld [vmem:[%s4 + $0xcc] sm:$0xff]
    %v3079 = vld [vmem:[%s4 + $0xd4] sm:$0xf]
    %v3080 = vld [vmem:[%s4 + $0xd8] sm:$0xff]
    %v3081 = vld [vmem:[%s4 + $0xe0] sm:$0xff]
    %v3082 = vld [vmem:[%s4 + $0xe8] sm:$0xff]
    %v3083 = vld [vmem:[%s4 + $0xf0] sm:$0xff]
    %v3084 = vld [vmem:[%s4 + $0xf8] sm:$0xf]
    %v3085 = vld [vmem:[%s4 + $0xfc] sm:$0xff]
    %v3086 = vld [vmem:[%s4 + $0x104] sm:$0xff]
    %v3087 = vld [vmem:[%s4 + $0x10c] sm:$0xff]
    %v3088 = vld [vmem:[%s4 + $0x114] sm:$0xff]
    %v3089 = vld [vmem:[%s4 + $0x11c] sm:$0xf]
    %v3090 = vld [vmem:[%s4 + $0x120] sm:$0xff]
    %v3091 = vld [vmem:[%s4 + $0x128] sm:$0xff]
    %v3092 = vld [vmem:[%s4 + $0x130] sm:$0xff]
    %v3093 = vld [vmem:[%s4 + $0x138] sm:$0xff]
    %v3094 = vld [vmem:[%s4 + $0x140] sm:$0xf]
    %v3095 = vld [vmem:[%s4 + $0x144] sm:$0xff]
    %v3096 = vld [vmem:[%s4 + $0x14c] sm:$0xff]
    %v3097 = vld [vmem:[%s4 + $0x154] sm:$0xff]
    %v3098 = vld [vmem:[%s4 + $0x15c] sm:$0xff]
    %v3099 = vld [vmem:[%s4 + $0x164] sm:$0xf]
    %v3100 = vld [vmem:[%s4 + $0x168] sm:$0xff]
    %v3101 = vld [vmem:[%s4 + $0x170] sm:$0xff]
    %v3102 = vld [vmem:[%s4 + $0x178] sm:$0xff]
    %v3103 = vld [vmem:[%s4 + $0x180] sm:$0xff]
    %v3104 = vld [vmem:[%s4 + $0x188] sm:$0xf]
    %v3105 = vld [vmem:[%s4 + $0x18c] sm:$0xff]
    %v3106 = vld [vmem:[%s4 + $0x194] sm:$0xff]
    %v3107 = vld [vmem:[%s4 + $0x19c] sm:$0xff]
    %v3108 = vld [vmem:[%s4 + $0x1a4] sm:$0xff]
    %v3109 = vld [vmem:[%s4 + $0x1ac] sm:$0xf]
    %v3110 = vld [vmem:[%s4 + $0x1b0] sm:$0xff]
    %v3111 = vld [vmem:[%s4 + $0x1b8] sm:$0xff]
    %v3112 = vld [vmem:[%s4 + $0x1c0] sm:$0xff]
    %v3113 = vld [vmem:[%s4 + $0x1c8] sm:$0xff]
    %v3114 = vld [vmem:[%s4 + $0x1d0] sm:$0xf]
    %v3115 = vld [vmem:[%s4 + $0x1d4] sm:$0xff]
    %v3116 = vld [vmem:[%s4 + $0x1dc] sm:$0xff]
    %v3117 = vld [vmem:[%s4 + $0x1e4] sm:$0xff]
    %v3118 = vld [vmem:[%s4 + $0x1ec] sm:$0xff]
    %v3119 = vld [vmem:[%s4 + $0x1f4] sm:$0xf]
    %v3120 = vld [vmem:[%s4 + $0x1f8] sm:$0xff]
    %v3121 = vld [vmem:[%s4 + $0x200] sm:$0xff]
    %v3122 = vld [vmem:[%s4 + $0x208] sm:$0xff]
    %v3123 = vld [vmem:[%s4 + $0x210] sm:$0xff]
    %v3124 = vld [vmem:[%s4 + $0x218] sm:$0xf]
    %v3125 = vld [vmem:[%s4 + $0x21c] sm:$0xff]
    %v3126 = vld [vmem:[%s4 + $0x224] sm:$0xff]
    %v3127 = vld [vmem:[%s4 + $0x22c] sm:$0xff]
    %v3128 = vld [vmem:[%s4 + $0x234] sm:$0xff]
    %v3129 = vld [vmem:[%s4 + $0x23c] sm:$0xf]
    %v3210 = vunpack.c.l.b16 %v3050
    %v3211 = vunpack.c.h.b16 %v3050
    %v3212 = vunpack.c.l.b16 %v3051
    %v3213 = vunpack.c.h.b16 %v3051
    %v3214 = vunpack.c.l.b16 %v3052
    %v3215 = vunpack.c.h.b16 %v3052
    %v3216 = vunpack.c.l.b16 %v3053
    %v3217 = vunpack.c.h.b16 %v3053
    %v3218 = vunpack.c.l.b16 %v3054
    %v3219 = vunpack.c.l.b16 %v3055
    %v3220 = vunpack.c.h.b16 %v3055
    %v3221 = vunpack.c.l.b16 %v3056
    %v3222 = vunpack.c.h.b16 %v3056
    %v3223 = vunpack.c.l.b16 %v3057
    %v3224 = vunpack.c.h.b16 %v3057
    %v3225 = vunpack.c.l.b16 %v3058
    %v3226 = vunpack.c.h.b16 %v3058
    %v3227 = vunpack.c.l.b16 %v3059
    %v3228 = vunpack.c.l.b16 %v3060
    %v3229 = vunpack.c.h.b16 %v3060
    %v3230 = vunpack.c.l.b16 %v3061
    %v3231 = vunpack.c.h.b16 %v3061
    %v3232 = vunpack.c.l.b16 %v3062
    %v3233 = vunpack.c.h.b16 %v3062
    %v3234 = vunpack.c.l.b16 %v3063
    %v3235 = vunpack.c.h.b16 %v3063
    %v3236 = vunpack.c.l.b16 %v3064
    %v3237 = vunpack.c.l.b16 %v3065
    %v3238 = vunpack.c.h.b16 %v3065
    %v3239 = vunpack.c.l.b16 %v3066
    %v3240 = vunpack.c.h.b16 %v3066
    %v3241 = vunpack.c.l.b16 %v3067
    %v3242 = vunpack.c.h.b16 %v3067
    %v3243 = vunpack.c.l.b16 %v3068
    %v3244 = vunpack.c.h.b16 %v3068
    %v3245 = vunpack.c.l.b16 %v3069
    %v3246 = vunpack.c.l.b16 %v3070
    %v3247 = vunpack.c.h.b16 %v3070
    %v3248 = vunpack.c.l.b16 %v3071
    %v3249 = vunpack.c.h.b16 %v3071
    %v3250 = vunpack.c.l.b16 %v3072
    %v3251 = vunpack.c.h.b16 %v3072
    %v3252 = vunpack.c.l.b16 %v3073
    %v3253 = vunpack.c.h.b16 %v3073
    %v3254 = vunpack.c.l.b16 %v3074
    %v3255 = vunpack.c.l.b16 %v3075
    %v3256 = vunpack.c.h.b16 %v3075
    %v3257 = vunpack.c.l.b16 %v3076
    %v3258 = vunpack.c.h.b16 %v3076
    %v3259 = vunpack.c.l.b16 %v3077
    %v3260 = vunpack.c.h.b16 %v3077
    %v3261 = vunpack.c.l.b16 %v3078
    %v3262 = vunpack.c.h.b16 %v3078
    %v3263 = vunpack.c.l.b16 %v3079
    %v3264 = vunpack.c.l.b16 %v3080
    %v3265 = vunpack.c.h.b16 %v3080
    %v3266 = vunpack.c.l.b16 %v3081
    %v3267 = vunpack.c.h.b16 %v3081
    %v3268 = vunpack.c.l.b16 %v3082
    %v3269 = vunpack.c.h.b16 %v3082
    %v3270 = vunpack.c.l.b16 %v3083
    %v3271 = vunpack.c.h.b16 %v3083
    %v3272 = vunpack.c.l.b16 %v3084
    %v3273 = vunpack.c.l.b16 %v3085
    %v3274 = vunpack.c.h.b16 %v3085
    %v3275 = vunpack.c.l.b16 %v3086
    %v3276 = vunpack.c.h.b16 %v3086
    %v3277 = vunpack.c.l.b16 %v3087
    %v3278 = vunpack.c.h.b16 %v3087
    %v3279 = vunpack.c.l.b16 %v3088
    %v3280 = vunpack.c.h.b16 %v3088
    %v3281 = vunpack.c.l.b16 %v3089
    %v3282 = vunpack.c.l.b16 %v3090
    %v3283 = vunpack.c.h.b16 %v3090
    %v3284 = vunpack.c.l.b16 %v3091
    %v3285 = vunpack.c.h.b16 %v3091
    %v3286 = vunpack.c.l.b16 %v3092
    %v3287 = vunpack.c.h.b16 %v3092
    %v3288 = vunpack.c.l.b16 %v3093
    %v3289 = vunpack.c.h.b16 %v3093
    %v3290 = vunpack.c.l.b16 %v3094
    %v3291 = vunpack.c.l.b16 %v3095
    %v3292 = vunpack.c.h.b16 %v3095
    %v3293 = vunpack.c.l.b16 %v3096
    %v3294 = vunpack.c.h.b16 %v3096
    %v3295 = vunpack.c.l.b16 %v3097
    %v3296 = vunpack.c.h.b16 %v3097
    %v3297 = vunpack.c.l.b16 %v3098
    %v3298 = vunpack.c.h.b16 %v3098
    %v3299 = vunpack.c.l.b16 %v3099
    %v3300 = vunpack.c.l.b16 %v3100
    %v3301 = vunpack.c.h.b16 %v3100
    %v3302 = vunpack.c.l.b16 %v3101
    %v3303 = vunpack.c.h.b16 %v3101
    %v3304 = vunpack.c.l.b16 %v3102
    %v3305 = vunpack.c.h.b16 %v3102
    %v3306 = vunpack.c.l.b16 %v3103
    %v3307 = vunpack.c.h.b16 %v3103
    %v3308 = vunpack.c.l.b16 %v3104
    %v3309 = vunpack.c.l.b16 %v3105
    %v3310 = vunpack.c.h.b16 %v3105
    %v3311 = vunpack.c.l.b16 %v3106
    %v3312 = vunpack.c.h.b16 %v3106
    %v3313 = vunpack.c.l.b16 %v3107
    %v3314 = vunpack.c.h.b16 %v3107
    %v3315 = vunpack.c.l.b16 %v3108
    %v3316 = vunpack.c.h.b16 %v3108
    %v3317 = vunpack.c.l.b16 %v3109
    %v3318 = vunpack.c.l.b16 %v3110
    %v3319 = vunpack.c.h.b16 %v3110
    %v3320 = vunpack.c.l.b16 %v3111
    %v3321 = vunpack.c.h.b16 %v3111
    %v3322 = vunpack.c.l.b16 %v3112
    %v3323 = vunpack.c.h.b16 %v3112
    %v3324 = vunpack.c.l.b16 %v3113
    %v3325 = vunpack.c.h.b16 %v3113
    %v3326 = vunpack.c.l.b16 %v3114
    %v3327 = vunpack.c.l.b16 %v3115
    %v3328 = vunpack.c.h.b16 %v3115
    %v3329 = vunpack.c.l.b16 %v3116
    %v3330 = vunpack.c.h.b16 %v3116
    %v3331 = vunpack.c.l.b16 %v3117
    %v3332 = vunpack.c.h.b16 %v3117
    %v3333 = vunpack.c.l.b16 %v3118
    %v3334 = vunpack.c.h.b16 %v3118
    %v3335 = vunpack.c.l.b16 %v3119
    %v3336 = vunpack.c.l.b16 %v3120
    %v3337 = vunpack.c.h.b16 %v3120
    %v3338 = vunpack.c.l.b16 %v3121
    %v3339 = vunpack.c.h.b16 %v3121
    %v3340 = vunpack.c.l.b16 %v3122
    %v3341 = vunpack.c.h.b16 %v3122
    %v3342 = vunpack.c.l.b16 %v3123
    %v3343 = vunpack.c.h.b16 %v3123
    %v3344 = vunpack.c.l.b16 %v3124
    %v3345 = vunpack.c.l.b16 %v3125
    %v3346 = vunpack.c.h.b16 %v3125
    %v3347 = vunpack.c.l.b16 %v3126
    %v3348 = vunpack.c.h.b16 %v3126
    %v3349 = vunpack.c.l.b16 %v3127
    %v3350 = vunpack.c.h.b16 %v3127
    %v3351 = vunpack.c.l.b16 %v3128
    %v3352 = vunpack.c.h.b16 %v3128
    %v3353 = vunpack.c.l.b16 %v3129
    %v3354 = vpack.c.b16 %v3219, %v3210
    %v3355 = vpack.c.b16 %v3220, %v3211
    %v3356 = vpack.c.b16 %v3221, %v3212
    %v3357 = vpack.c.b16 %v3222, %v3213
    %v3358 = vpack.c.b16 %v3223, %v3214
    %v3359 = vpack.c.b16 %v3224, %v3215
    %v3360 = vpack.c.b16 %v3225, %v3216
    %v3361 = vpack.c.b16 %v3226, %v3217
    %v3362 = vpack.c.b16 %v3227, %v3218
    %v3363 = vpack.c.b16 %v3237, %v3228
    %v3364 = vpack.c.b16 %v3238, %v3229
    %v3365 = vpack.c.b16 %v3239, %v3230
    %v3366 = vpack.c.b16 %v3240, %v3231
    %v3367 = vpack.c.b16 %v3241, %v3232
    %v3368 = vpack.c.b16 %v3242, %v3233
    %v3369 = vpack.c.b16 %v3243, %v3234
    %v3370 = vpack.c.b16 %v3244, %v3235
    %v3371 = vpack.c.b16 %v3245, %v3236
    %v3372 = vpack.c.b16 %v3255, %v3246
    %v3373 = vpack.c.b16 %v3256, %v3247
    %v3374 = vpack.c.b16 %v3257, %v3248
    %v3375 = vpack.c.b16 %v3258, %v3249
    %v3376 = vpack.c.b16 %v3259, %v3250
    %v3377 = vpack.c.b16 %v3260, %v3251
    %v3378 = vpack.c.b16 %v3261, %v3252
    %v3379 = vpack.c.b16 %v3262, %v3253
    %v3380 = vpack.c.b16 %v3263, %v3254
    %v3381 = vpack.c.b16 %v3273, %v3264
    %v3382 = vpack.c.b16 %v3274, %v3265
    %v3383 = vpack.c.b16 %v3275, %v3266
    %v3384 = vpack.c.b16 %v3276, %v3267
    %v3385 = vpack.c.b16 %v3277, %v3268
    %v3386 = vpack.c.b16 %v3278, %v3269
    %v3387 = vpack.c.b16 %v3279, %v3270
    %v3388 = vpack.c.b16 %v3280, %v3271
    %v3389 = vpack.c.b16 %v3281, %v3272
    %v3390 = vpack.c.b16 %v3291, %v3282
    %v3391 = vpack.c.b16 %v3292, %v3283
    %v3392 = vpack.c.b16 %v3293, %v3284
    %v3393 = vpack.c.b16 %v3294, %v3285
    %v3394 = vpack.c.b16 %v3295, %v3286
    %v3395 = vpack.c.b16 %v3296, %v3287
    %v3396 = vpack.c.b16 %v3297, %v3288
    %v3397 = vpack.c.b16 %v3298, %v3289
    %v3398 = vpack.c.b16 %v3299, %v3290
    %v3399 = vpack.c.b16 %v3309, %v3300
    %v3400 = vpack.c.b16 %v3310, %v3301
    %v3401 = vpack.c.b16 %v3311, %v3302
    %v3402 = vpack.c.b16 %v3312, %v3303
    %v3403 = vpack.c.b16 %v3313, %v3304
    %v3404 = vpack.c.b16 %v3314, %v3305
    %v3405 = vpack.c.b16 %v3315, %v3306
    %v3406 = vpack.c.b16 %v3316, %v3307
    %v3407 = vpack.c.b16 %v3317, %v3308
    %v3408 = vpack.c.b16 %v3327, %v3318
    %v3409 = vpack.c.b16 %v3328, %v3319
    %v3410 = vpack.c.b16 %v3329, %v3320
    %v3411 = vpack.c.b16 %v3330, %v3321
    %v3412 = vpack.c.b16 %v3331, %v3322
    %v3413 = vpack.c.b16 %v3332, %v3323
    %v3414 = vpack.c.b16 %v3333, %v3324
    %v3415 = vpack.c.b16 %v3334, %v3325
    %v3416 = vpack.c.b16 %v3335, %v3326
    %v3417 = vpack.c.b16 %v3345, %v3336
    %v3418 = vpack.c.b16 %v3346, %v3337
    %v3419 = vpack.c.b16 %v3347, %v3338
    %v3420 = vpack.c.b16 %v3348, %v3339
    %v3421 = vpack.c.b16 %v3349, %v3340
    %v3422 = vpack.c.b16 %v3350, %v3341
    %v3423 = vpack.c.b16 %v3351, %v3342
    %v3424 = vpack.c.b16 %v3352, %v3343
    %v3425 = vpack.c.b16 %v3353, %v3344
    %3498 = vmatprep.subr.bf16.mxu0 %v3418
    %3499 = vmatpush1.bf16.msra.mxu0 %v3417
    %3500 = vmatprep.subr.bf16.mxu0 %v3409
    %3501 = vmatpush1.bf16.msra.mxu0 %v3408
    %3502 = vmatprep.subr.bf16.mxu0 %v3400
    %3503 = vmatpush1.bf16.msra.mxu0 %v3399
    %3504 = vmatprep.subr.bf16.mxu0 %v3391
    %3505 = vmatpush1.bf16.msra.mxu0 %v3390
    %3506 = vmatprep.subr.bf16.mxu0 %v3382
    %3507 = vmatpush1.bf16.msra.mxu0 %v3381
    %3508 = vmatprep.subr.bf16.mxu0 %v3373
    %3509 = vmatpush1.bf16.msra.mxu0 %v3372
    %3510 = vmatprep.subr.bf16.mxu0 %v3364
    %3511 = vmatpush1.bf16.msra.mxu0 %v3363
    %3512 = vmatprep.subr.bf16.mxu0 %v3355
    %3513 = vmatpush1.bf16.msra.mxu0 %v3354
    %3514 = vmatprep.subr.bf16.mxu0 0
    %3515 = vmatpush2.bf16.msra.mxu0 0
    %3516 = vmatprep.subr.bf16.mxu0 0
    %3517 = vmatpush2.bf16.msra.mxu0 0
    %3518 = vmatprep.subr.bf16.mxu0 0
    %3519 = vmatpush2.bf16.msra.mxu0 0
    %3520 = vmatprep.subr.bf16.mxu0 0
    %3521 = vmatpush2.bf16.msra.mxu0 0
    %3522 = vmatprep.subr.bf16.mxu0 0
    %3523 = vmatpush2.bf16.msra.mxu0 0
    %3524 = vmatprep.subr.bf16.mxu0 0
    %3525 = vmatpush2.bf16.msra.mxu0 0
    %3526 = vmatprep.subr.bf16.mxu0 0
    %3527 = vmatpush2.bf16.msra.mxu0 0
    %3528 = vmatprep.subr.bf16.mxu0 0
    %3529 = vmatpush2.bf16.msra.mxu0 0
    %3530 = vmatprep.mubr.bf16.mxu0 0
    %3531 = vmatmul.mubr.bf16.gmra.mxu0 %v3049
    %v3532 = vpop.f32.mrf.mxu0
    %v3533 = vadd.f32 0.0, %v3532
    %v3534 = vpop.f32.mrf.mxu0
    %v3535 = vadd.f32 0.0, %v3534
    %v3536 = vpop.f32.mrf.mxu0
    %v3537 = vpop.f32.mrf.mxu0
    %3538 = vdwg.mxu0
    %3539 = vmatprep.subr.bf16.mxu0 %v3420
    %3540 = vmatpush1.bf16.msra.mxu0 %v3419
    %3541 = vmatprep.subr.bf16.mxu0 %v3411
    %3542 = vmatpush1.bf16.msra.mxu0 %v3410
    %3543 = vmatprep.subr.bf16.mxu0 %v3402
    %3544 = vmatpush1.bf16.msra.mxu0 %v3401
    %3545 = vmatprep.subr.bf16.mxu0 %v3393
    %3546 = vmatpush1.bf16.msra.mxu0 %v3392
    %3547 = vmatprep.subr.bf16.mxu0 %v3384
    %3548 = vmatpush1.bf16.msra.mxu0 %v3383
    %3549 = vmatprep.subr.bf16.mxu0 %v3375
    %3550 = vmatpush1.bf16.msra.mxu0 %v3374
    %3551 = vmatprep.subr.bf16.mxu0 %v3366
    %3552 = vmatpush1.bf16.msra.mxu0 %v3365
    %3553 = vmatprep.subr.bf16.mxu0 %v3357
    %3554 = vmatpush1.bf16.msra.mxu0 %v3356
    %3555 = vmatprep.subr.bf16.mxu0 0
    %3556 = vmatpush2.bf16.msra.mxu0 0
    %3557 = vmatprep.subr.bf16.mxu0 0
    %3558 = vmatpush2.bf16.msra.mxu0 0
    %3559 = vmatprep.subr.bf16.mxu0 0
    %3560 = vmatpush2.bf16.msra.mxu0 0
    %3561 = vmatprep.subr.bf16.mxu0 0
    %3562 = vmatpush2.bf16.msra.mxu0 0
    %3563 = vmatprep.subr.bf16.mxu0 0
    %3564 = vmatpush2.bf16.msra.mxu0 0
    %3565 = vmatprep.subr.bf16.mxu0 0
    %3566 = vmatpush2.bf16.msra.mxu0 0
    %3567 = vmatprep.subr.bf16.mxu0 0
    %3568 = vmatpush2.bf16.msra.mxu0 0
    %3569 = vmatprep.subr.bf16.mxu0 0
    %3570 = vmatpush2.bf16.msra.mxu0 0
    %3571 = vmatprep.mubr.bf16.mxu0 0
    %3572 = vmatmul.mubr.bf16.gmra.mxu0 %v3049
    %v3573 = vpop.f32.mrf.mxu0
    %v3574 = vadd.f32 0.0, %v3573
    %v3575 = vpop.f32.mrf.mxu0
    %v3576 = vadd.f32 0.0, %v3575
    %v3577 = vpop.f32.mrf.mxu0
    %v3578 = vpop.f32.mrf.mxu0
    %3579 = vdwg.mxu0
    %3580 = vmatprep.subr.bf16.mxu0 %v3422
    %3581 = vmatpush1.bf16.msra.mxu0 %v3421
    %3582 = vmatprep.subr.bf16.mxu0 %v3413
    %3583 = vmatpush1.bf16.msra.mxu0 %v3412
    %3584 = vmatprep.subr.bf16.mxu0 %v3404
    %3585 = vmatpush1.bf16.msra.mxu0 %v3403
    %3586 = vmatprep.subr.bf16.mxu0 %v3395
    %3587 = vmatpush1.bf16.msra.mxu0 %v3394
    %3588 = vmatprep.subr.bf16.mxu0 %v3386
    %3589 = vmatpush1.bf16.msra.mxu0 %v3385
    %3590 = vmatprep.subr.bf16.mxu0 %v3377
    %3591 = vmatpush1.bf16.msra.mxu0 %v3376
    %3592 = vmatprep.subr.bf16.mxu0 %v3368
    %3593 = vmatpush1.bf16.msra.mxu0 %v3367
    %3594 = vmatprep.subr.bf16.mxu0 %v3359
    %3595 = vmatpush1.bf16.msra.mxu0 %v3358
    %3596 = vmatprep.subr.bf16.mxu0 0
    %3597 = vmatpush2.bf16.msra.mxu0 0
    %3598 = vmatprep.subr.bf16.mxu0 0
    %3599 = vmatpush2.bf16.msra.mxu0 0
    %3600 = vmatprep.subr.bf16.mxu0 0
    %3601 = vmatpush2.bf16.msra.mxu0 0
    %3602 = vmatprep.subr.bf16.mxu0 0
    %3603 = vmatpush2.bf16.msra.mxu0 0
    %3604 = vmatprep.subr.bf16.mxu0 0
    %3605 = vmatpush2.bf16.msra.mxu0 0
    %3606 = vmatprep.subr.bf16.mxu0 0
    %3607 = vmatpush2.bf16.msra.mxu0 0
    %3608 = vmatprep.subr.bf16.mxu0 0
    %3609 = vmatpush2.bf16.msra.mxu0 0
    %3610 = vmatprep.subr.bf16.mxu0 0
    %3611 = vmatpush2.bf16.msra.mxu0 0
    %3612 = vmatprep.mubr.bf16.mxu0 0
    %3613 = vmatmul.mubr.bf16.gmra.mxu0 %v3049
    %v3614 = vpop.f32.mrf.mxu0
    %v3615 = vadd.f32 0.0, %v3614
    %v3616 = vpop.f32.mrf.mxu0
    %v3617 = vadd.f32 0.0, %v3616
    %v3618 = vpop.f32.mrf.mxu0
    %v3619 = vpop.f32.mrf.mxu0
    %3620 = vdwg.mxu0
    %3621 = vmatprep.subr.bf16.mxu0 %v3424
    %3622 = vmatpush1.bf16.msra.mxu0 %v3423
    %3623 = vmatprep.subr.bf16.mxu0 %v3415
    %3624 = vmatpush1.bf16.msra.mxu0 %v3414
    %3625 = vmatprep.subr.bf16.mxu0 %v3406
    %3626 = vmatpush1.bf16.msra.mxu0 %v3405
    %3627 = vmatprep.subr.bf16.mxu0 %v3397
    %3628 = vmatpush1.bf16.msra.mxu0 %v3396
    %3629 = vmatprep.subr.bf16.mxu0 %v3388
    %3630 = vmatpush1.bf16.msra.mxu0 %v3387
    %3631 = vmatprep.subr.bf16.mxu0 %v3379
    %3632 = vmatpush1.bf16.msra.mxu0 %v3378
    %3633 = vmatprep.subr.bf16.mxu0 %v3370
    %3634 = vmatpush1.bf16.msra.mxu0 %v3369
    %3635 = vmatprep.subr.bf16.mxu0 %v3361
    %3636 = vmatpush1.bf16.msra.mxu0 %v3360
    %3637 = vmatprep.subr.bf16.mxu0 0
    %3638 = vmatpush2.bf16.msra.mxu0 0
    %3639 = vmatprep.subr.bf16.mxu0 0
    %3640 = vmatpush2.bf16.msra.mxu0 0
    %3641 = vmatprep.subr.bf16.mxu0 0
    %3642 = vmatpush2.bf16.msra.mxu0 0
    %3643 = vmatprep.subr.bf16.mxu0 0
    %3644 = vmatpush2.bf16.msra.mxu0 0
    %3645 = vmatprep.subr.bf16.mxu0 0
    %3646 = vmatpush2.bf16.msra.mxu0 0
    %3647 = vmatprep.subr.bf16.mxu0 0
    %3648 = vmatpush2.bf16.msra.mxu0 0
    %3649 = vmatprep.subr.bf16.mxu0 0
    %3650 = vmatpush2.bf16.msra.mxu0 0
    %3651 = vmatprep.subr.bf16.mxu0 0
    %3652 = vmatpush2.bf16.msra.mxu0 0
    %3653 = vmatprep.mubr.bf16.mxu0 0
    %3654 = vmatmul.mubr.bf16.gmra.mxu0 %v3049
    %v3655 = vpop.f32.mrf.mxu0
    %v3656 = vpop.f32.mrf.mxu0
    %v3657 = vpop.f32.mrf.mxu0
    %v3658 = vadd.f32 0.0, %v3657
    %v3659 = vpop.f32.mrf.mxu0
    %v3660 = vadd.f32 0.0, %v3659
    %3661 = vdwg.mxu0
    %3662 = vmatprep.subr.bf16.mxu0 0
    %3663 = vmatpush1.bf16.msra.mxu0 %v3425
    %3664 = vmatprep.subr.bf16.mxu0 0
    %3665 = vmatpush1.bf16.msra.mxu0 %v3416
    %3666 = vmatprep.subr.bf16.mxu0 0
    %3667 = vmatpush1.bf16.msra.mxu0 %v3407
    %3668 = vmatprep.subr.bf16.mxu0 0
    %3669 = vmatpush1.bf16.msra.mxu0 %v3398
    %3670 = vmatprep.subr.bf16.mxu0 0
    %3671 = vmatpush1.bf16.msra.mxu0 %v3389
    %3672 = vmatprep.subr.bf16.mxu0 0
    %3673 = vmatpush1.bf16.msra.mxu0 %v3380
    %3674 = vmatprep.subr.bf16.mxu0 0
    %3675 = vmatpush1.bf16.msra.mxu0 %v3371
    %3676 = vmatprep.subr.bf16.mxu0 0
    %3677 = vmatpush1.bf16.msra.mxu0 %v3362
    %3678 = vmatprep.subr.bf16.mxu0 0
    %3679 = vmatpush2.bf16.msra.mxu0 0
    %3680 = vmatprep.subr.bf16.mxu0 0
    %3681 = vmatpush2.bf16.msra.mxu0 0
    %3682 = vmatprep.subr.bf16.mxu0 0
    %3683 = vmatpush2.bf16.msra.mxu0 0
    %3684 = vmatprep.subr.bf16.mxu0 0
    %3685 = vmatpush2.bf16.msra.mxu0 0
    %3686 = vmatprep.subr.bf16.mxu0 0
    %3687 = vmatpush2.bf16.msra.mxu0 0
    %3688 = vmatprep.subr.bf16.mxu0 0
    %3689 = vmatpush2.bf16.msra.mxu0 0
    %3690 = vmatprep.subr.bf16.mxu0 0
    %3691 = vmatpush2.bf16.msra.mxu0 0
    %3692 = vmatprep.subr.bf16.mxu0 0
    %3693 = vmatpush2.bf16.msra.mxu0 0
    %3694 = vmatprep.mubr.bf16.mxu0 0
    %3695 = vmatmul.mubr.bf16.gmra.mxu0 %v3049
    %v3696 = vpop.f32.mrf.mxu0
    %v3697 = vpop.f32.mrf.mxu0
    %v3698 = vpop.f32.mrf.mxu0
    %v3699 = vadd.f32 0.0, %v3698
    %v3700 = vpop.f32.mrf.mxu0
    %3701 = vdwg.mxu0
    %v3702 = vadd.f32 %v3533, %v418
    %v3703 = vadd.f32 %v3535, %v419
    %v3704 = vadd.f32 %v3574, %v420
    %v3705 = vadd.f32 %v3576, %v421
    %v3706 = vadd.f32 %v3615, %v422
    %v3707 = vadd.f32 %v3617, %v423
    %v3708 = vadd.f32 %v3658, %v424
    %v3709 = vadd.f32 %v3660, %v425
    %v3710 = vadd.f32 %v3699, %v426
    %v3711 = vadd.f32 %v3702, %v3708
    %v3712 = vadd.f32 %v3703, %v3709
    %v3713 = vxor.u32 %v3711, 2147483648
    %v3714 = vxor.u32 %v3712, 2147483648
    %v3715 = vmul.f32 %v3713, 1.442695
    %v3716 = vpow.pop %v3715
    %v3717 = vmul.f32 %v3714, 1.442695
    %v3718 = vpow.pop %v3717
    %v3719 = vadd.f32 %v3716, 1.0
    %v3720 = vadd.f32 %v3718, 1.0
    %v3721 = vrcp.pop %v3719
    %v3722 = vmul.f32 1.0, %v3721
    %v3723 = vrcp.pop %v3720
    %v3724 = vmul.f32 1.0, %v3723
    %v3725 = vmul.f32 %v3722, %v3710
    %v3726 = vadd.f32 %v3704, %v3725
    %v3727 = vtanh.pop %v3726
    %v3728 = vsub.f32 1.0, %v3724
    %v3729 = vmul.f32 %v3023, %v3728
    %v3730 = vsub.f32 %v3727, %v3020
    %v3731 = vmul.f32 %v3729, %v3730
    %v3732 = vadd.f32 %v3020, %v3731
    %v3733 = vmul.f32 %v3023, %v3732
    %3734 = vst [vmem:[#allocation3 + $0x20] sm:$0xff] %v3733
    %v3735 = vld [vmem:[%s1 + $0x28] sm:$0xff]
    %v3736 = vld [vmem:[#allocation2 + $0x78] sm:$0xff]
    %v3737 = vld [vmem:[#allocation2 + $0x80] sm:$0xff]
    %v3738 = vld [vmem:[#allocation2 + $0x88] sm:$0xff]
    %v3739 = vadd.f32 %v3736, %v3705
    %v3740 = vadd.f32 %v3737, %v3706
    %v3741 = vxor.u32 %v3739, 2147483648
    %v3742 = vxor.u32 %v3740, 2147483648
    %v3743 = vmul.f32 %v3741, 1.442695
    %v3744 = vpow.pop %v3743
    %v3745 = vmul.f32 %v3742, 1.442695
    %v3746 = vpow.pop %v3745
    %v3747 = vadd.f32 %v3744, 1.0
    %v3748 = vadd.f32 %v3746, 1.0
    %v3749 = vrcp.pop %v3747
    %v3750 = vmul.f32 1.0, %v3749
    %v3751 = vrcp.pop %v3748
    %v3752 = vmul.f32 1.0, %v3751
    %v3753 = vmul.f32 %v3750, %v3707
    %v3754 = vadd.f32 %v3738, %v3753
    %v3755 = vtanh.pop %v3754
    %v3756 = vsub.f32 1.0, %v3752
    %v3757 = vmul.f32 %v3735, %v3756
    %v3758 = vsub.f32 %v3755, %v3048
    %v3759 = vmul.f32 %v3757, %v3758
    %v3760 = vadd.f32 %v3048, %v3759
    %v3761 = vpack.c.bf16 %v3732, %v3760
    %v3762 = vld [vmem:[%s4] sm:$0xff]
    %v3763 = vld [vmem:[%s4 + $0x8] sm:$0xff]
    %v3764 = vld [vmem:[%s4 + $0x10] sm:$0xff]
    %v3765 = vld [vmem:[%s4 + $0x18] sm:$0xff]
    %v3766 = vld [vmem:[%s4 + $0x20] sm:$0xf]
    %v3767 = vld [vmem:[%s4 + $0x24] sm:$0xff]
    %v3768 = vld [vmem:[%s4 + $0x2c] sm:$0xff]
    %v3769 = vld [vmem:[%s4 + $0x34] sm:$0xff]
    %v3770 = vld [vmem:[%s4 + $0x3c] sm:$0xff]
    %v3771 = vld [vmem:[%s4 + $0x44] sm:$0xf]
    %v3772 = vld [vmem:[%s4 + $0x48] sm:$0xff]
    %v3773 = vld [vmem:[%s4 + $0x50] sm:$0xff]
    %v3774 = vld [vmem:[%s4 + $0x58] sm:$0xff]
    %v3775 = vld [vmem:[%s4 + $0x60] sm:$0xff]
    %v3776 = vld [vmem:[%s4 + $0x68] sm:$0xf]
    %v3777 = vld [vmem:[%s4 + $0x6c] sm:$0xff]
    %v3778 = vld [vmem:[%s4 + $0x74] sm:$0xff]
    %v3779 = vld [vmem:[%s4 + $0x7c] sm:$0xff]
    %v3780 = vld [vmem:[%s4 + $0x84] sm:$0xff]
    %v3781 = vld [vmem:[%s4 + $0x8c] sm:$0xf]
    %v3782 = vld [vmem:[%s4 + $0x90] sm:$0xff]
    %v3783 = vld [vmem:[%s4 + $0x98] sm:$0xff]
    %v3784 = vld [vmem:[%s4 + $0xa0] sm:$0xff]
    %v3785 = vld [vmem:[%s4 + $0xa8] sm:$0xff]
    %v3786 = vld [vmem:[%s4 + $0xb0] sm:$0xf]
    %v3787 = vld [vmem:[%s4 + $0xb4] sm:$0xff]
    %v3788 = vld [vmem:[%s4 + $0xbc] sm:$0xff]
    %v3789 = vld [vmem:[%s4 + $0xc4] sm:$0xff]
    %v3790 = vld [vmem:[%s4 + $0xcc] sm:$0xff]
    %v3791 = vld [vmem:[%s4 + $0xd4] sm:$0xf]
    %v3792 = vld [vmem:[%s4 + $0xd8] sm:$0xff]
    %v3793 = vld [vmem:[%s4 + $0xe0] sm:$0xff]
    %v3794 = vld [vmem:[%s4 + $0xe8] sm:$0xff]
    %v3795 = vld [vmem:[%s4 + $0xf0] sm:$0xff]
    %v3796 = vld [vmem:[%s4 + $0xf8] sm:$0xf]
    %v3797 = vld [vmem:[%s4 + $0xfc] sm:$0xff]
    %v3798 = vld [vmem:[%s4 + $0x104] sm:$0xff]
    %v3799 = vld [vmem:[%s4 + $0x10c] sm:$0xff]
    %v3800 = vld [vmem:[%s4 + $0x114] sm:$0xff]
    %v3801 = vld [vmem:[%s4 + $0x11c] sm:$0xf]
    %v3802 = vld [vmem:[%s4 + $0x120] sm:$0xff]
    %v3803 = vld [vmem:[%s4 + $0x128] sm:$0xff]
    %v3804 = vld [vmem:[%s4 + $0x130] sm:$0xff]
    %v3805 = vld [vmem:[%s4 + $0x138] sm:$0xff]
    %v3806 = vld [vmem:[%s4 + $0x140] sm:$0xf]
    %v3807 = vld [vmem:[%s4 + $0x144] sm:$0xff]
    %v3808 = vld [vmem:[%s4 + $0x14c] sm:$0xff]
    %v3809 = vld [vmem:[%s4 + $0x154] sm:$0xff]
    %v3810 = vld [vmem:[%s4 + $0x15c] sm:$0xff]
    %v3811 = vld [vmem:[%s4 + $0x164] sm:$0xf]
    %v3812 = vld [vmem:[%s4 + $0x168] sm:$0xff]
    %v3813 = vld [vmem:[%s4 + $0x170] sm:$0xff]
    %v3814 = vld [vmem:[%s4 + $0x178] sm:$0xff]
    %v3815 = vld [vmem:[%s4 + $0x180] sm:$0xff]
    %v3816 = vld [vmem:[%s4 + $0x188] sm:$0xf]
    %v3817 = vld [vmem:[%s4 + $0x18c] sm:$0xff]
    %v3818 = vld [vmem:[%s4 + $0x194] sm:$0xff]
    %v3819 = vld [vmem:[%s4 + $0x19c] sm:$0xff]
    %v3820 = vld [vmem:[%s4 + $0x1a4] sm:$0xff]
    %v3821 = vld [vmem:[%s4 + $0x1ac] sm:$0xf]
    %v3822 = vld [vmem:[%s4 + $0x1b0] sm:$0xff]
    %v3823 = vld [vmem:[%s4 + $0x1b8] sm:$0xff]
    %v3824 = vld [vmem:[%s4 + $0x1c0] sm:$0xff]
    %v3825 = vld [vmem:[%s4 + $0x1c8] sm:$0xff]
    %v3826 = vld [vmem:[%s4 + $0x1d0] sm:$0xf]
    %v3827 = vld [vmem:[%s4 + $0x1d4] sm:$0xff]
    %v3828 = vld [vmem:[%s4 + $0x1dc] sm:$0xff]
    %v3829 = vld [vmem:[%s4 + $0x1e4] sm:$0xff]
    %v3830 = vld [vmem:[%s4 + $0x1ec] sm:$0xff]
    %v3831 = vld [vmem:[%s4 + $0x1f4] sm:$0xf]
    %v3832 = vld [vmem:[%s4 + $0x1f8] sm:$0xff]
    %v3833 = vld [vmem:[%s4 + $0x200] sm:$0xff]
    %v3834 = vld [vmem:[%s4 + $0x208] sm:$0xff]
    %v3835 = vld [vmem:[%s4 + $0x210] sm:$0xff]
    %v3836 = vld [vmem:[%s4 + $0x218] sm:$0xf]
    %v3837 = vld [vmem:[%s4 + $0x21c] sm:$0xff]
    %v3838 = vld [vmem:[%s4 + $0x224] sm:$0xff]
    %v3839 = vld [vmem:[%s4 + $0x22c] sm:$0xff]
    %v3840 = vld [vmem:[%s4 + $0x234] sm:$0xff]
    %v3841 = vld [vmem:[%s4 + $0x23c] sm:$0xf]
    %v3922 = vunpack.c.l.b16 %v3762
    %v3923 = vunpack.c.h.b16 %v3762
    %v3924 = vunpack.c.l.b16 %v3763
    %v3925 = vunpack.c.h.b16 %v3763
    %v3926 = vunpack.c.l.b16 %v3764
    %v3927 = vunpack.c.h.b16 %v3764
    %v3928 = vunpack.c.l.b16 %v3765
    %v3929 = vunpack.c.h.b16 %v3765
    %v3930 = vunpack.c.l.b16 %v3766
    %v3931 = vunpack.c.l.b16 %v3767
    %v3932 = vunpack.c.h.b16 %v3767
    %v3933 = vunpack.c.l.b16 %v3768
    %v3934 = vunpack.c.h.b16 %v3768
    %v3935 = vunpack.c.l.b16 %v3769
    %v3936 = vunpack.c.h.b16 %v3769
    %v3937 = vunpack.c.l.b16 %v3770
    %v3938 = vunpack.c.h.b16 %v3770
    %v3939 = vunpack.c.l.b16 %v3771
    %v3940 = vunpack.c.l.b16 %v3772
    %v3941 = vunpack.c.h.b16 %v3772
    %v3942 = vunpack.c.l.b16 %v3773
    %v3943 = vunpack.c.h.b16 %v3773
    %v3944 = vunpack.c.l.b16 %v3774
    %v3945 = vunpack.c.h.b16 %v3774
    %v3946 = vunpack.c.l.b16 %v3775
    %v3947 = vunpack.c.h.b16 %v3775
    %v3948 = vunpack.c.l.b16 %v3776
    %v3949 = vunpack.c.l.b16 %v3777
    %v3950 = vunpack.c.h.b16 %v3777
    %v3951 = vunpack.c.l.b16 %v3778
    %v3952 = vunpack.c.h.b16 %v3778
    %v3953 = vunpack.c.l.b16 %v3779
    %v3954 = vunpack.c.h.b16 %v3779
    %v3955 = vunpack.c.l.b16 %v3780
    %v3956 = vunpack.c.h.b16 %v3780
    %v3957 = vunpack.c.l.b16 %v3781
    %v3958 = vunpack.c.l.b16 %v3782
    %v3959 = vunpack.c.h.b16 %v3782
    %v3960 = vunpack.c.l.b16 %v3783
    %v3961 = vunpack.c.h.b16 %v3783
    %v3962 = vunpack.c.l.b16 %v3784
    %v3963 = vunpack.c.h.b16 %v3784
    %v3964 = vunpack.c.l.b16 %v3785
    %v3965 = vunpack.c.h.b16 %v3785
    %v3966 = vunpack.c.l.b16 %v3786
    %v3967 = vunpack.c.l.b16 %v3787
    %v3968 = vunpack.c.h.b16 %v3787
    %v3969 = vunpack.c.l.b16 %v3788
    %v3970 = vunpack.c.h.b16 %v3788
    %v3971 = vunpack.c.l.b16 %v3789
    %v3972 = vunpack.c.h.b16 %v3789
    %v3973 = vunpack.c.l.b16 %v3790
    %v3974 = vunpack.c.h.b16 %v3790
    %v3975 = vunpack.c.l.b16 %v3791
    %v3976 = vunpack.c.l.b16 %v3792
    %v3977 = vunpack.c.h.b16 %v3792
    %v3978 = vunpack.c.l.b16 %v3793
    %v3979 = vunpack.c.h.b16 %v3793
    %v3980 = vunpack.c.l.b16 %v3794
    %v3981 = vunpack.c.h.b16 %v3794
    %v3982 = vunpack.c.l.b16 %v3795
    %v3983 = vunpack.c.h.b16 %v3795
    %v3984 = vunpack.c.l.b16 %v3796
    %v3985 = vunpack.c.l.b16 %v3797
    %v3986 = vunpack.c.h.b16 %v3797
    %v3987 = vunpack.c.l.b16 %v3798
    %v3988 = vunpack.c.h.b16 %v3798
    %v3989 = vunpack.c.l.b16 %v3799
    %v3990 = vunpack.c.h.b16 %v3799
    %v3991 = vunpack.c.l.b16 %v3800
    %v3992 = vunpack.c.h.b16 %v3800
    %v3993 = vunpack.c.l.b16 %v3801
    %v3994 = vunpack.c.l.b16 %v3802
    %v3995 = vunpack.c.h.b16 %v3802
    %v3996 = vunpack.c.l.b16 %v3803
    %v3997 = vunpack.c.h.b16 %v3803
    %v3998 = vunpack.c.l.b16 %v3804
    %v3999 = vunpack.c.h.b16 %v3804
    %v4000 = vunpack.c.l.b16 %v3805
    %v4001 = vunpack.c.h.b16 %v3805
    %v4002 = vunpack.c.l.b16 %v3806
    %v4003 = vunpack.c.l.b16 %v3807
    %v4004 = vunpack.c.h.b16 %v3807
    %v4005 = vunpack.c.l.b16 %v3808
    %v4006 = vunpack.c.h.b16 %v3808
    %v4007 = vunpack.c.l.b16 %v3809
    %v4008 = vunpack.c.h.b16 %v3809
    %v4009 = vunpack.c.l.b16 %v3810
    %v4010 = vunpack.c.h.b16 %v3810
    %v4011 = vunpack.c.l.b16 %v3811
    %v4012 = vunpack.c.l.b16 %v3812
    %v4013 = vunpack.c.h.b16 %v3812
    %v4014 = vunpack.c.l.b16 %v3813
    %v4015 = vunpack.c.h.b16 %v3813
    %v4016 = vunpack.c.l.b16 %v3814
    %v4017 = vunpack.c.h.b16 %v3814
    %v4018 = vunpack.c.l.b16 %v3815
    %v4019 = vunpack.c.h.b16 %v3815
    %v4020 = vunpack.c.l.b16 %v3816
    %v4021 = vunpack.c.l.b16 %v3817
    %v4022 = vunpack.c.h.b16 %v3817
    %v4023 = vunpack.c.l.b16 %v3818
    %v4024 = vunpack.c.h.b16 %v3818
    %v4025 = vunpack.c.l.b16 %v3819
    %v4026 = vunpack.c.h.b16 %v3819
    %v4027 = vunpack.c.l.b16 %v3820
    %v4028 = vunpack.c.h.b16 %v3820
    %v4029 = vunpack.c.l.b16 %v3821
    %v4030 = vunpack.c.l.b16 %v3822
    %v4031 = vunpack.c.h.b16 %v3822
    %v4032 = vunpack.c.l.b16 %v3823
    %v4033 = vunpack.c.h.b16 %v3823
    %v4034 = vunpack.c.l.b16 %v3824
    %v4035 = vunpack.c.h.b16 %v3824
    %v4036 = vunpack.c.l.b16 %v3825
    %v4037 = vunpack.c.h.b16 %v3825
    %v4038 = vunpack.c.l.b16 %v3826
    %v4039 = vunpack.c.l.b16 %v3827
    %v4040 = vunpack.c.h.b16 %v3827
    %v4041 = vunpack.c.l.b16 %v3828
    %v4042 = vunpack.c.h.b16 %v3828
    %v4043 = vunpack.c.l.b16 %v3829
    %v4044 = vunpack.c.h.b16 %v3829
    %v4045 = vunpack.c.l.b16 %v3830
    %v4046 = vunpack.c.h.b16 %v3830
    %v4047 = vunpack.c.l.b16 %v3831
    %v4048 = vunpack.c.l.b16 %v3832
    %v4049 = vunpack.c.h.b16 %v3832
    %v4050 = vunpack.c.l.b16 %v3833
    %v4051 = vunpack.c.h.b16 %v3833
    %v4052 = vunpack.c.l.b16 %v3834
    %v4053 = vunpack.c.h.b16 %v3834
    %v4054 = vunpack.c.l.b16 %v3835
    %v4055 = vunpack.c.h.b16 %v3835
    %v4056 = vunpack.c.l.b16 %v3836
    %v4057 = vunpack.c.l.b16 %v3837
    %v4058 = vunpack.c.h.b16 %v3837
    %v4059 = vunpack.c.l.b16 %v3838
    %v4060 = vunpack.c.h.b16 %v3838
    %v4061 = vunpack.c.l.b16 %v3839
    %v4062 = vunpack.c.h.b16 %v3839
    %v4063 = vunpack.c.l.b16 %v3840
    %v4064 = vunpack.c.h.b16 %v3840
    %v4065 = vunpack.c.l.b16 %v3841
    %v4066 = vpack.c.b16 %v3931, %v3922
    %v4067 = vpack.c.b16 %v3932, %v3923
    %v4068 = vpack.c.b16 %v3933, %v3924
    %v4069 = vpack.c.b16 %v3934, %v3925
    %v4070 = vpack.c.b16 %v3935, %v3926
    %v4071 = vpack.c.b16 %v3936, %v3927
    %v4072 = vpack.c.b16 %v3937, %v3928
    %v4073 = vpack.c.b16 %v3938, %v3929
    %v4074 = vpack.c.b16 %v3939, %v3930
    %v4075 = vpack.c.b16 %v3949, %v3940
    %v4076 = vpack.c.b16 %v3950, %v3941
    %v4077 = vpack.c.b16 %v3951, %v3942
    %v4078 = vpack.c.b16 %v3952, %v3943
    %v4079 = vpack.c.b16 %v3953, %v3944
    %v4080 = vpack.c.b16 %v3954, %v3945
    %v4081 = vpack.c.b16 %v3955, %v3946
    %v4082 = vpack.c.b16 %v3956, %v3947
    %v4083 = vpack.c.b16 %v3957, %v3948
    %v4084 = vpack.c.b16 %v3967, %v3958
    %v4085 = vpack.c.b16 %v3968, %v3959
    %v4086 = vpack.c.b16 %v3969, %v3960
    %v4087 = vpack.c.b16 %v3970, %v3961
    %v4088 = vpack.c.b16 %v3971, %v3962
    %v4089 = vpack.c.b16 %v3972, %v3963
    %v4090 = vpack.c.b16 %v3973, %v3964
    %v4091 = vpack.c.b16 %v3974, %v3965
    %v4092 = vpack.c.b16 %v3975, %v3966
    %v4093 = vpack.c.b16 %v3985, %v3976
    %v4094 = vpack.c.b16 %v3986, %v3977
    %v4095 = vpack.c.b16 %v3987, %v3978
    %v4096 = vpack.c.b16 %v3988, %v3979
    %v4097 = vpack.c.b16 %v3989, %v3980
    %v4098 = vpack.c.b16 %v3990, %v3981
    %v4099 = vpack.c.b16 %v3991, %v3982
    %v4100 = vpack.c.b16 %v3992, %v3983
    %v4101 = vpack.c.b16 %v3993, %v3984
    %v4102 = vpack.c.b16 %v4003, %v3994
    %v4103 = vpack.c.b16 %v4004, %v3995
    %v4104 = vpack.c.b16 %v4005, %v3996
    %v4105 = vpack.c.b16 %v4006, %v3997
    %v4106 = vpack.c.b16 %v4007, %v3998
    %v4107 = vpack.c.b16 %v4008, %v3999
    %v4108 = vpack.c.b16 %v4009, %v4000
    %v4109 = vpack.c.b16 %v4010, %v4001
    %v4110 = vpack.c.b16 %v4011, %v4002
    %v4111 = vpack.c.b16 %v4021, %v4012
    %v4112 = vpack.c.b16 %v4022, %v4013
    %v4113 = vpack.c.b16 %v4023, %v4014
    %v4114 = vpack.c.b16 %v4024, %v4015
    %v4115 = vpack.c.b16 %v4025, %v4016
    %v4116 = vpack.c.b16 %v4026, %v4017
    %v4117 = vpack.c.b16 %v4027, %v4018
    %v4118 = vpack.c.b16 %v4028, %v4019
    %v4119 = vpack.c.b16 %v4029, %v4020
    %v4120 = vpack.c.b16 %v4039, %v4030
    %v4121 = vpack.c.b16 %v4040, %v4031
    %v4122 = vpack.c.b16 %v4041, %v4032
    %v4123 = vpack.c.b16 %v4042, %v4033
    %v4124 = vpack.c.b16 %v4043, %v4034
    %v4125 = vpack.c.b16 %v4044, %v4035
    %v4126 = vpack.c.b16 %v4045, %v4036
    %v4127 = vpack.c.b16 %v4046, %v4037
    %v4128 = vpack.c.b16 %v4047, %v4038
    %v4129 = vpack.c.b16 %v4057, %v4048
    %v4130 = vpack.c.b16 %v4058, %v4049
    %v4131 = vpack.c.b16 %v4059, %v4050
    %v4132 = vpack.c.b16 %v4060, %v4051
    %v4133 = vpack.c.b16 %v4061, %v4052
    %v4134 = vpack.c.b16 %v4062, %v4053
    %v4135 = vpack.c.b16 %v4063, %v4054
    %v4136 = vpack.c.b16 %v4064, %v4055
    %v4137 = vpack.c.b16 %v4065, %v4056
    %4210 = vmatprep.subr.bf16.mxu0 %v4130
    %4211 = vmatpush1.bf16.msra.mxu0 %v4129
    %4212 = vmatprep.subr.bf16.mxu0 %v4121
    %4213 = vmatpush1.bf16.msra.mxu0 %v4120
    %4214 = vmatprep.subr.bf16.mxu0 %v4112
    %4215 = vmatpush1.bf16.msra.mxu0 %v4111
    %4216 = vmatprep.subr.bf16.mxu0 %v4103
    %4217 = vmatpush1.bf16.msra.mxu0 %v4102
    %4218 = vmatprep.subr.bf16.mxu0 %v4094
    %4219 = vmatpush1.bf16.msra.mxu0 %v4093
    %4220 = vmatprep.subr.bf16.mxu0 %v4085
    %4221 = vmatpush1.bf16.msra.mxu0 %v4084
    %4222 = vmatprep.subr.bf16.mxu0 %v4076
    %4223 = vmatpush1.bf16.msra.mxu0 %v4075
    %4224 = vmatprep.subr.bf16.mxu0 %v4067
    %4225 = vmatpush1.bf16.msra.mxu0 %v4066
    %4226 = vmatprep.subr.bf16.mxu0 0
    %4227 = vmatpush2.bf16.msra.mxu0 0
    %4228 = vmatprep.subr.bf16.mxu0 0
    %4229 = vmatpush2.bf16.msra.mxu0 0
    %4230 = vmatprep.subr.bf16.mxu0 0
    %4231 = vmatpush2.bf16.msra.mxu0 0
    %4232 = vmatprep.subr.bf16.mxu0 0
    %4233 = vmatpush2.bf16.msra.mxu0 0
    %4234 = vmatprep.subr.bf16.mxu0 0
    %4235 = vmatpush2.bf16.msra.mxu0 0
    %4236 = vmatprep.subr.bf16.mxu0 0
    %4237 = vmatpush2.bf16.msra.mxu0 0
    %4238 = vmatprep.subr.bf16.mxu0 0
    %4239 = vmatpush2.bf16.msra.mxu0 0
    %4240 = vmatprep.subr.bf16.mxu0 0
    %4241 = vmatpush2.bf16.msra.mxu0 0
    %4242 = vmatprep.mubr.bf16.mxu0 0
    %4243 = vmatmul.mubr.bf16.gmra.mxu0 %v3761
    %v4244 = vpop.f32.mrf.mxu0
    %v4245 = vadd.f32 0.0, %v4244
    %v4246 = vpop.f32.mrf.mxu0
    %v4247 = vadd.f32 0.0, %v4246
    %v4248 = vpop.f32.mrf.mxu0
    %v4249 = vpop.f32.mrf.mxu0
    %4250 = vdwg.mxu0
    %4251 = vmatprep.subr.bf16.mxu0 %v4132
    %4252 = vmatpush1.bf16.msra.mxu0 %v4131
    %4253 = vmatprep.subr.bf16.mxu0 %v4123
    %4254 = vmatpush1.bf16.msra.mxu0 %v4122
    %4255 = vmatprep.subr.bf16.mxu0 %v4114
    %4256 = vmatpush1.bf16.msra.mxu0 %v4113
    %4257 = vmatprep.subr.bf16.mxu0 %v4105
    %4258 = vmatpush1.bf16.msra.mxu0 %v4104
    %4259 = vmatprep.subr.bf16.mxu0 %v4096
    %4260 = vmatpush1.bf16.msra.mxu0 %v4095
    %4261 = vmatprep.subr.bf16.mxu0 %v4087
    %4262 = vmatpush1.bf16.msra.mxu0 %v4086
    %4263 = vmatprep.subr.bf16.mxu0 %v4078
    %4264 = vmatpush1.bf16.msra.mxu0 %v4077
    %4265 = vmatprep.subr.bf16.mxu0 %v4069
    %4266 = vmatpush1.bf16.msra.mxu0 %v4068
    %4267 = vmatprep.subr.bf16.mxu0 0
    %4268 = vmatpush2.bf16.msra.mxu0 0
    %4269 = vmatprep.subr.bf16.mxu0 0
    %4270 = vmatpush2.bf16.msra.mxu0 0
    %4271 = vmatprep.subr.bf16.mxu0 0
    %4272 = vmatpush2.bf16.msra.mxu0 0
    %4273 = vmatprep.subr.bf16.mxu0 0
    %4274 = vmatpush2.bf16.msra.mxu0 0
    %4275 = vmatprep.subr.bf16.mxu0 0
    %4276 = vmatpush2.bf16.msra.mxu0 0
    %4277 = vmatprep.subr.bf16.mxu0 0
    %4278 = vmatpush2.bf16.msra.mxu0 0
    %4279 = vmatprep.subr.bf16.mxu0 0
    %4280 = vmatpush2.bf16.msra.mxu0 0
    %4281 = vmatprep.subr.bf16.mxu0 0
    %4282 = vmatpush2.bf16.msra.mxu0 0
    %4283 = vmatprep.mubr.bf16.mxu0 0
    %4284 = vmatmul.mubr.bf16.gmra.mxu0 %v3761
    %v4285 = vpop.f32.mrf.mxu0
    %v4286 = vadd.f32 0.0, %v4285
    %v4287 = vpop.f32.mrf.mxu0
    %v4288 = vadd.f32 0.0, %v4287
    %v4289 = vpop.f32.mrf.mxu0
    %v4290 = vpop.f32.mrf.mxu0
    %4291 = vdwg.mxu0
    %4292 = vmatprep.subr.bf16.mxu0 %v4134
    %4293 = vmatpush1.bf16.msra.mxu0 %v4133
    %4294 = vmatprep.subr.bf16.mxu0 %v4125
    %4295 = vmatpush1.bf16.msra.mxu0 %v4124
    %4296 = vmatprep.subr.bf16.mxu0 %v4116
    %4297 = vmatpush1.bf16.msra.mxu0 %v4115
    %4298 = vmatprep.subr.bf16.mxu0 %v4107
    %4299 = vmatpush1.bf16.msra.mxu0 %v4106
    %4300 = vmatprep.subr.bf16.mxu0 %v4098
    %4301 = vmatpush1.bf16.msra.mxu0 %v4097
    %4302 = vmatprep.subr.bf16.mxu0 %v4089
    %4303 = vmatpush1.bf16.msra.mxu0 %v4088
    %4304 = vmatprep.subr.bf16.mxu0 %v4080
    %4305 = vmatpush1.bf16.msra.mxu0 %v4079
    %4306 = vmatprep.subr.bf16.mxu0 %v4071
    %4307 = vmatpush1.bf16.msra.mxu0 %v4070
    %4308 = vmatprep.subr.bf16.mxu0 0
    %4309 = vmatpush2.bf16.msra.mxu0 0
    %4310 = vmatprep.subr.bf16.mxu0 0
    %4311 = vmatpush2.bf16.msra.mxu0 0
    %4312 = vmatprep.subr.bf16.mxu0 0
    %4313 = vmatpush2.bf16.msra.mxu0 0
    %4314 = vmatprep.subr.bf16.mxu0 0
    %4315 = vmatpush2.bf16.msra.mxu0 0
    %4316 = vmatprep.subr.bf16.mxu0 0
    %4317 = vmatpush2.bf16.msra.mxu0 0
    %4318 = vmatprep.subr.bf16.mxu0 0
    %4319 = vmatpush2.bf16.msra.mxu0 0
    %4320 = vmatprep.subr.bf16.mxu0 0
    %4321 = vmatpush2.bf16.msra.mxu0 0
    %4322 = vmatprep.subr.bf16.mxu0 0
    %4323 = vmatpush2.bf16.msra.mxu0 0
    %4324 = vmatprep.mubr.bf16.mxu0 0
    %4325 = vmatmul.mubr.bf16.gmra.mxu0 %v3761
    %v4326 = vpop.f32.mrf.mxu0
    %v4327 = vadd.f32 0.0, %v4326
    %v4328 = vpop.f32.mrf.mxu0
    %v4329 = vadd.f32 0.0, %v4328
    %v4330 = vpop.f32.mrf.mxu0
    %v4331 = vpop.f32.mrf.mxu0
    %4332 = vdwg.mxu0
    %4333 = vmatprep.subr.bf16.mxu0 %v4136
    %4334 = vmatpush1.bf16.msra.mxu0 %v4135
    %4335 = vmatprep.subr.bf16.mxu0 %v4127
    %4336 = vmatpush1.bf16.msra.mxu0 %v4126
    %4337 = vmatprep.subr.bf16.mxu0 %v4118
    %4338 = vmatpush1.bf16.msra.mxu0 %v4117
    %4339 = vmatprep.subr.bf16.mxu0 %v4109
    %4340 = vmatpush1.bf16.msra.mxu0 %v4108
    %4341 = vmatprep.subr.bf16.mxu0 %v4100
    %4342 = vmatpush1.bf16.msra.mxu0 %v4099
    %4343 = vmatprep.subr.bf16.mxu0 %v4091
    %4344 = vmatpush1.bf16.msra.mxu0 %v4090
    %4345 = vmatprep.subr.bf16.mxu0 %v4082
    %4346 = vmatpush1.bf16.msra.mxu0 %v4081
    %4347 = vmatprep.subr.bf16.mxu0 %v4073
    %4348 = vmatpush1.bf16.msra.mxu0 %v4072
    %4349 = vmatprep.subr.bf16.mxu0 0
    %4350 = vmatpush2.bf16.msra.mxu0 0
    %4351 = vmatprep.subr.bf16.mxu0 0
    %4352 = vmatpush2.bf16.msra.mxu0 0
    %4353 = vmatprep.subr.bf16.mxu0 0
    %4354 = vmatpush2.bf16.msra.mxu0 0
    %4355 = vmatprep.subr.bf16.mxu0 0
    %4356 = vmatpush2.bf16.msra.mxu0 0
    %4357 = vmatprep.subr.bf16.mxu0 0
    %4358 = vmatpush2.bf16.msra.mxu0 0
    %4359 = vmatprep.subr.bf16.mxu0 0
    %4360 = vmatpush2.bf16.msra.mxu0 0
    %4361 = vmatprep.subr.bf16.mxu0 0
    %4362 = vmatpush2.bf16.msra.mxu0 0
    %4363 = vmatprep.subr.bf16.mxu0 0
    %4364 = vmatpush2.bf16.msra.mxu0 0
    %4365 = vmatprep.mubr.bf16.mxu0 0
    %4366 = vmatmul.mubr.bf16.gmra.mxu0 %v3761
    %v4367 = vpop.f32.mrf.mxu0
    %v4368 = vpop.f32.mrf.mxu0
    %v4369 = vpop.f32.mrf.mxu0
    %v4370 = vadd.f32 0.0, %v4369
    %v4371 = vpop.f32.mrf.mxu0
    %v4372 = vadd.f32 0.0, %v4371
    %4373 = vdwg.mxu0
    %4374 = vmatprep.subr.bf16.mxu0 0
    %4375 = vmatpush1.bf16.msra.mxu0 %v4137
    %4376 = vmatprep.subr.bf16.mxu0 0
    %4377 = vmatpush1.bf16.msra.mxu0 %v4128
    %4378 = vmatprep.subr.bf16.mxu0 0
    %4379 = vmatpush1.bf16.msra.mxu0 %v4119
    %4380 = vmatprep.subr.bf16.mxu0 0
    %4381 = vmatpush1.bf16.msra.mxu0 %v4110
    %4382 = vmatprep.subr.bf16.mxu0 0
    %4383 = vmatpush1.bf16.msra.mxu0 %v4101
    %4384 = vmatprep.subr.bf16.mxu0 0
    %4385 = vmatpush1.bf16.msra.mxu0 %v4092
    %4386 = vmatprep.subr.bf16.mxu0 0
    %4387 = vmatpush1.bf16.msra.mxu0 %v4083
    %4388 = vmatprep.subr.bf16.mxu0 0
    %4389 = vmatpush1.bf16.msra.mxu0 %v4074
    %4390 = vmatprep.subr.bf16.mxu0 0
    %4391 = vmatpush2.bf16.msra.mxu0 0
    %4392 = vmatprep.subr.bf16.mxu0 0
    %4393 = vmatpush2.bf16.msra.mxu0 0
    %4394 = vmatprep.subr.bf16.mxu0 0
    %4395 = vmatpush2.bf16.msra.mxu0 0
    %4396 = vmatprep.subr.bf16.mxu0 0
    %4397 = vmatpush2.bf16.msra.mxu0 0
    %4398 = vmatprep.subr.bf16.mxu0 0
    %4399 = vmatpush2.bf16.msra.mxu0 0
    %4400 = vmatprep.subr.bf16.mxu0 0
    %4401 = vmatpush2.bf16.msra.mxu0 0
    %4402 = vmatprep.subr.bf16.mxu0 0
    %4403 = vmatpush2.bf16.msra.mxu0 0
    %4404 = vmatprep.subr.bf16.mxu0 0
    %4405 = vmatpush2.bf16.msra.mxu0 0
    %4406 = vmatprep.mubr.bf16.mxu0 0
    %4407 = vmatmul.mubr.bf16.gmra.mxu0 %v3761
    %v4408 = vpop.f32.mrf.mxu0
    %v4409 = vpop.f32.mrf.mxu0
    %v4410 = vpop.f32.mrf.mxu0
    %v4411 = vadd.f32 0.0, %v4410
    %v4412 = vpop.f32.mrf.mxu0
    %4413 = vdwg.mxu0
    %v4414 = vadd.f32 %v4245, %v418
    %v4415 = vadd.f32 %v4247, %v419
    %v4416 = vadd.f32 %v4286, %v420
    %v4417 = vadd.f32 %v4288, %v421
    %v4418 = vadd.f32 %v4327, %v422
    %v4419 = vadd.f32 %v4329, %v423
    %v4420 = vadd.f32 %v4370, %v424
    %v4421 = vadd.f32 %v4372, %v425
    %v4422 = vadd.f32 %v4411, %v426
    %v4423 = vadd.f32 %v4414, %v4420
    %v4424 = vadd.f32 %v4415, %v4421
    %v4425 = vxor.u32 %v4423, 2147483648
    %v4426 = vxor.u32 %v4424, 2147483648
    %v4427 = vmul.f32 %v4425, 1.442695
    %v4428 = vpow.pop %v4427
    %v4429 = vmul.f32 %v4426, 1.442695
    %v4430 = vpow.pop %v4429
    %v4431 = vadd.f32 %v4428, 1.0
    %v4432 = vadd.f32 %v4430, 1.0
    %v4433 = vrcp.pop %v4431
    %v4434 = vmul.f32 1.0, %v4433
    %v4435 = vrcp.pop %v4432
    %v4436 = vmul.f32 1.0, %v4435
    %v4437 = vmul.f32 %v4434, %v4422
    %v4438 = vadd.f32 %v4416, %v4437
    %v4439 = vtanh.pop %v4438
    %v4440 = vsub.f32 1.0, %v4436
    %v4441 = vmul.f32 %v3735, %v4440
    %v4442 = vsub.f32 %v4439, %v3732
    %v4443 = vmul.f32 %v4441, %v4442
    %v4444 = vadd.f32 %v3732, %v4443
    %v4445 = vmul.f32 %v3735, %v4444
    %4446 = vst [vmem:[#allocation3 + $0x28] sm:$0xff] %v4445
    %v4447 = vld [vmem:[%s1 + $0x30] sm:$0xff]
    %v4448 = vld [vmem:[#allocation2 + $0x90] sm:$0xff]
    %v4449 = vld [vmem:[#allocation2 + $0x98] sm:$0xff]
    %v4450 = vld [vmem:[#allocation2 + $0xa0] sm:$0xff]
    %v4451 = vadd.f32 %v4448, %v4417
    %v4452 = vadd.f32 %v4449, %v4418
    %v4453 = vxor.u32 %v4451, 2147483648
    %v4454 = vxor.u32 %v4452, 2147483648
    %v4455 = vmul.f32 %v4453, 1.442695
    %v4456 = vpow.pop %v4455
    %v4457 = vmul.f32 %v4454, 1.442695
    %v4458 = vpow.pop %v4457
    %v4459 = vadd.f32 %v4456, 1.0
    %v4460 = vadd.f32 %v4458, 1.0
    %v4461 = vrcp.pop %v4459
    %v4462 = vmul.f32 1.0, %v4461
    %v4463 = vrcp.pop %v4460
    %v4464 = vmul.f32 1.0, %v4463
    %v4465 = vmul.f32 %v4462, %v4419
    %v4466 = vadd.f32 %v4450, %v4465
    %v4467 = vtanh.pop %v4466
    %v4468 = vsub.f32 1.0, %v4464
    %v4469 = vmul.f32 %v4447, %v4468
    %v4470 = vsub.f32 %v4467, %v3760
    %v4471 = vmul.f32 %v4469, %v4470
    %v4472 = vadd.f32 %v3760, %v4471
    %v4473 = vpack.c.bf16 %v4444, %v4472
    %v4474 = vld [vmem:[%s4] sm:$0xff]
    %v4475 = vld [vmem:[%s4 + $0x8] sm:$0xff]
    %v4476 = vld [vmem:[%s4 + $0x10] sm:$0xff]
    %v4477 = vld [vmem:[%s4 + $0x18] sm:$0xff]
    %v4478 = vld [vmem:[%s4 + $0x20] sm:$0xf]
    %v4479 = vld [vmem:[%s4 + $0x24] sm:$0xff]
    %v4480 = vld [vmem:[%s4 + $0x2c] sm:$0xff]
    %v4481 = vld [vmem:[%s4 + $0x34] sm:$0xff]
    %v4482 = vld [vmem:[%s4 + $0x3c] sm:$0xff]
    %v4483 = vld [vmem:[%s4 + $0x44] sm:$0xf]
    %v4484 = vld [vmem:[%s4 + $0x48] sm:$0xff]
    %v4485 = vld [vmem:[%s4 + $0x50] sm:$0xff]
    %v4486 = vld [vmem:[%s4 + $0x58] sm:$0xff]
    %v4487 = vld [vmem:[%s4 + $0x60] sm:$0xff]
    %v4488 = vld [vmem:[%s4 + $0x68] sm:$0xf]
    %v4489 = vld [vmem:[%s4 + $0x6c] sm:$0xff]
    %v4490 = vld [vmem:[%s4 + $0x74] sm:$0xff]
    %v4491 = vld [vmem:[%s4 + $0x7c] sm:$0xff]
    %v4492 = vld [vmem:[%s4 + $0x84] sm:$0xff]
    %v4493 = vld [vmem:[%s4 + $0x8c] sm:$0xf]
    %v4494 = vld [vmem:[%s4 + $0x90] sm:$0xff]
    %v4495 = vld [vmem:[%s4 + $0x98] sm:$0xff]
    %v4496 = vld [vmem:[%s4 + $0xa0] sm:$0xff]
    %v4497 = vld [vmem:[%s4 + $0xa8] sm:$0xff]
    %v4498 = vld [vmem:[%s4 + $0xb0] sm:$0xf]
    %v4499 = vld [vmem:[%s4 + $0xb4] sm:$0xff]
    %v4500 = vld [vmem:[%s4 + $0xbc] sm:$0xff]
    %v4501 = vld [vmem:[%s4 + $0xc4] sm:$0xff]
    %v4502 = vld [vmem:[%s4 + $0xcc] sm:$0xff]
    %v4503 = vld [vmem:[%s4 + $0xd4] sm:$0xf]
    %v4504 = vld [vmem:[%s4 + $0xd8] sm:$0xff]
    %v4505 = vld [vmem:[%s4 + $0xe0] sm:$0xff]
    %v4506 = vld [vmem:[%s4 + $0xe8] sm:$0xff]
    %v4507 = vld [vmem:[%s4 + $0xf0] sm:$0xff]
    %v4508 = vld [vmem:[%s4 + $0xf8] sm:$0xf]
    %v4509 = vld [vmem:[%s4 + $0xfc] sm:$0xff]
    %v4510 = vld [vmem:[%s4 + $0x104] sm:$0xff]
    %v4511 = vld [vmem:[%s4 + $0x10c] sm:$0xff]
    %v4512 = vld [vmem:[%s4 + $0x114] sm:$0xff]
    %v4513 = vld [vmem:[%s4 + $0x11c] sm:$0xf]
    %v4514 = vld [vmem:[%s4 + $0x120] sm:$0xff]
    %v4515 = vld [vmem:[%s4 + $0x128] sm:$0xff]
    %v4516 = vld [vmem:[%s4 + $0x130] sm:$0xff]
    %v4517 = vld [vmem:[%s4 + $0x138] sm:$0xff]
    %v4518 = vld [vmem:[%s4 + $0x140] sm:$0xf]
    %v4519 = vld [vmem:[%s4 + $0x144] sm:$0xff]
    %v4520 = vld [vmem:[%s4 + $0x14c] sm:$0xff]
    %v4521 = vld [vmem:[%s4 + $0x154] sm:$0xff]
    %v4522 = vld [vmem:[%s4 + $0x15c] sm:$0xff]
    %v4523 = vld [vmem:[%s4 + $0x164] sm:$0xf]
    %v4524 = vld [vmem:[%s4 + $0x168] sm:$0xff]
    %v4525 = vld [vmem:[%s4 + $0x170] sm:$0xff]
    %v4526 = vld [vmem:[%s4 + $0x178] sm:$0xff]
    %v4527 = vld [vmem:[%s4 + $0x180] sm:$0xff]
    %v4528 = vld [vmem:[%s4 + $0x188] sm:$0xf]
    %v4529 = vld [vmem:[%s4 + $0x18c] sm:$0xff]
    %v4530 = vld [vmem:[%s4 + $0x194] sm:$0xff]
    %v4531 = vld [vmem:[%s4 + $0x19c] sm:$0xff]
    %v4532 = vld [vmem:[%s4 + $0x1a4] sm:$0xff]
    %v4533 = vld [vmem:[%s4 + $0x1ac] sm:$0xf]
    %v4534 = vld [vmem:[%s4 + $0x1b0] sm:$0xff]
    %v4535 = vld [vmem:[%s4 + $0x1b8] sm:$0xff]
    %v4536 = vld [vmem:[%s4 + $0x1c0] sm:$0xff]
    %v4537 = vld [vmem:[%s4 + $0x1c8] sm:$0xff]
    %v4538 = vld [vmem:[%s4 + $0x1d0] sm:$0xf]
    %v4539 = vld [vmem:[%s4 + $0x1d4] sm:$0xff]
    %v4540 = vld [vmem:[%s4 + $0x1dc] sm:$0xff]
    %v4541 = vld [vmem:[%s4 + $0x1e4] sm:$0xff]
    %v4542 = vld [vmem:[%s4 + $0x1ec] sm:$0xff]
    %v4543 = vld [vmem:[%s4 + $0x1f4] sm:$0xf]
    %v4544 = vld [vmem:[%s4 + $0x1f8] sm:$0xff]
    %v4545 = vld [vmem:[%s4 + $0x200] sm:$0xff]
    %v4546 = vld [vmem:[%s4 + $0x208] sm:$0xff]
    %v4547 = vld [vmem:[%s4 + $0x210] sm:$0xff]
    %v4548 = vld [vmem:[%s4 + $0x218] sm:$0xf]
    %v4549 = vld [vmem:[%s4 + $0x21c] sm:$0xff]
    %v4550 = vld [vmem:[%s4 + $0x224] sm:$0xff]
    %v4551 = vld [vmem:[%s4 + $0x22c] sm:$0xff]
    %v4552 = vld [vmem:[%s4 + $0x234] sm:$0xff]
    %v4553 = vld [vmem:[%s4 + $0x23c] sm:$0xf]
    %v4634 = vunpack.c.l.b16 %v4474
    %v4635 = vunpack.c.h.b16 %v4474
    %v4636 = vunpack.c.l.b16 %v4475
    %v4637 = vunpack.c.h.b16 %v4475
    %v4638 = vunpack.c.l.b16 %v4476
    %v4639 = vunpack.c.h.b16 %v4476
    %v4640 = vunpack.c.l.b16 %v4477
    %v4641 = vunpack.c.h.b16 %v4477
    %v4642 = vunpack.c.l.b16 %v4478
    %v4643 = vunpack.c.l.b16 %v4479
    %v4644 = vunpack.c.h.b16 %v4479
    %v4645 = vunpack.c.l.b16 %v4480
    %v4646 = vunpack.c.h.b16 %v4480
    %v4647 = vunpack.c.l.b16 %v4481
    %v4648 = vunpack.c.h.b16 %v4481
    %v4649 = vunpack.c.l.b16 %v4482
    %v4650 = vunpack.c.h.b16 %v4482
    %v4651 = vunpack.c.l.b16 %v4483
    %v4652 = vunpack.c.l.b16 %v4484
    %v4653 = vunpack.c.h.b16 %v4484
    %v4654 = vunpack.c.l.b16 %v4485
    %v4655 = vunpack.c.h.b16 %v4485
    %v4656 = vunpack.c.l.b16 %v4486
    %v4657 = vunpack.c.h.b16 %v4486
    %v4658 = vunpack.c.l.b16 %v4487
    %v4659 = vunpack.c.h.b16 %v4487
    %v4660 = vunpack.c.l.b16 %v4488
    %v4661 = vunpack.c.l.b16 %v4489
    %v4662 = vunpack.c.h.b16 %v4489
    %v4663 = vunpack.c.l.b16 %v4490
    %v4664 = vunpack.c.h.b16 %v4490
    %v4665 = vunpack.c.l.b16 %v4491
    %v4666 = vunpack.c.h.b16 %v4491
    %v4667 = vunpack.c.l.b16 %v4492
    %v4668 = vunpack.c.h.b16 %v4492
    %v4669 = vunpack.c.l.b16 %v4493
    %v4670 = vunpack.c.l.b16 %v4494
    %v4671 = vunpack.c.h.b16 %v4494
    %v4672 = vunpack.c.l.b16 %v4495
    %v4673 = vunpack.c.h.b16 %v4495
    %v4674 = vunpack.c.l.b16 %v4496
    %v4675 = vunpack.c.h.b16 %v4496
    %v4676 = vunpack.c.l.b16 %v4497
    %v4677 = vunpack.c.h.b16 %v4497
    %v4678 = vunpack.c.l.b16 %v4498
    %v4679 = vunpack.c.l.b16 %v4499
    %v4680 = vunpack.c.h.b16 %v4499
    %v4681 = vunpack.c.l.b16 %v4500
    %v4682 = vunpack.c.h.b16 %v4500
    %v4683 = vunpack.c.l.b16 %v4501
    %v4684 = vunpack.c.h.b16 %v4501
    %v4685 = vunpack.c.l.b16 %v4502
    %v4686 = vunpack.c.h.b16 %v4502
    %v4687 = vunpack.c.l.b16 %v4503
    %v4688 = vunpack.c.l.b16 %v4504
    %v4689 = vunpack.c.h.b16 %v4504
    %v4690 = vunpack.c.l.b16 %v4505
    %v4691 = vunpack.c.h.b16 %v4505
    %v4692 = vunpack.c.l.b16 %v4506
    %v4693 = vunpack.c.h.b16 %v4506
    %v4694 = vunpack.c.l.b16 %v4507
    %v4695 = vunpack.c.h.b16 %v4507
    %v4696 = vunpack.c.l.b16 %v4508
    %v4697 = vunpack.c.l.b16 %v4509
    %v4698 = vunpack.c.h.b16 %v4509
    %v4699 = vunpack.c.l.b16 %v4510
    %v4700 = vunpack.c.h.b16 %v4510
    %v4701 = vunpack.c.l.b16 %v4511
    %v4702 = vunpack.c.h.b16 %v4511
    %v4703 = vunpack.c.l.b16 %v4512
    %v4704 = vunpack.c.h.b16 %v4512
    %v4705 = vunpack.c.l.b16 %v4513
    %v4706 = vunpack.c.l.b16 %v4514
    %v4707 = vunpack.c.h.b16 %v4514
    %v4708 = vunpack.c.l.b16 %v4515
    %v4709 = vunpack.c.h.b16 %v4515
    %v4710 = vunpack.c.l.b16 %v4516
    %v4711 = vunpack.c.h.b16 %v4516
    %v4712 = vunpack.c.l.b16 %v4517
    %v4713 = vunpack.c.h.b16 %v4517
    %v4714 = vunpack.c.l.b16 %v4518
    %v4715 = vunpack.c.l.b16 %v4519
    %v4716 = vunpack.c.h.b16 %v4519
    %v4717 = vunpack.c.l.b16 %v4520
    %v4718 = vunpack.c.h.b16 %v4520
    %v4719 = vunpack.c.l.b16 %v4521
    %v4720 = vunpack.c.h.b16 %v4521
    %v4721 = vunpack.c.l.b16 %v4522
    %v4722 = vunpack.c.h.b16 %v4522
    %v4723 = vunpack.c.l.b16 %v4523
    %v4724 = vunpack.c.l.b16 %v4524
    %v4725 = vunpack.c.h.b16 %v4524
    %v4726 = vunpack.c.l.b16 %v4525
    %v4727 = vunpack.c.h.b16 %v4525
    %v4728 = vunpack.c.l.b16 %v4526
    %v4729 = vunpack.c.h.b16 %v4526
    %v4730 = vunpack.c.l.b16 %v4527
    %v4731 = vunpack.c.h.b16 %v4527
    %v4732 = vunpack.c.l.b16 %v4528
    %v4733 = vunpack.c.l.b16 %v4529
    %v4734 = vunpack.c.h.b16 %v4529
    %v4735 = vunpack.c.l.b16 %v4530
    %v4736 = vunpack.c.h.b16 %v4530
    %v4737 = vunpack.c.l.b16 %v4531
    %v4738 = vunpack.c.h.b16 %v4531
    %v4739 = vunpack.c.l.b16 %v4532
    %v4740 = vunpack.c.h.b16 %v4532
    %v4741 = vunpack.c.l.b16 %v4533
    %v4742 = vunpack.c.l.b16 %v4534
    %v4743 = vunpack.c.h.b16 %v4534
    %v4744 = vunpack.c.l.b16 %v4535
    %v4745 = vunpack.c.h.b16 %v4535
    %v4746 = vunpack.c.l.b16 %v4536
    %v4747 = vunpack.c.h.b16 %v4536
    %v4748 = vunpack.c.l.b16 %v4537
    %v4749 = vunpack.c.h.b16 %v4537
    %v4750 = vunpack.c.l.b16 %v4538
    %v4751 = vunpack.c.l.b16 %v4539
    %v4752 = vunpack.c.h.b16 %v4539
    %v4753 = vunpack.c.l.b16 %v4540
    %v4754 = vunpack.c.h.b16 %v4540
    %v4755 = vunpack.c.l.b16 %v4541
    %v4756 = vunpack.c.h.b16 %v4541
    %v4757 = vunpack.c.l.b16 %v4542
    %v4758 = vunpack.c.h.b16 %v4542
    %v4759 = vunpack.c.l.b16 %v4543
    %v4760 = vunpack.c.l.b16 %v4544
    %v4761 = vunpack.c.h.b16 %v4544
    %v4762 = vunpack.c.l.b16 %v4545
    %v4763 = vunpack.c.h.b16 %v4545
    %v4764 = vunpack.c.l.b16 %v4546
    %v4765 = vunpack.c.h.b16 %v4546
    %v4766 = vunpack.c.l.b16 %v4547
    %v4767 = vunpack.c.h.b16 %v4547
    %v4768 = vunpack.c.l.b16 %v4548
    %v4769 = vunpack.c.l.b16 %v4549
    %v4770 = vunpack.c.h.b16 %v4549
    %v4771 = vunpack.c.l.b16 %v4550
    %v4772 = vunpack.c.h.b16 %v4550
    %v4773 = vunpack.c.l.b16 %v4551
    %v4774 = vunpack.c.h.b16 %v4551
    %v4775 = vunpack.c.l.b16 %v4552
    %v4776 = vunpack.c.h.b16 %v4552
    %v4777 = vunpack.c.l.b16 %v4553
    %v4778 = vpack.c.b16 %v4643, %v4634
    %v4779 = vpack.c.b16 %v4644, %v4635
    %v4780 = vpack.c.b16 %v4645, %v4636
    %v4781 = vpack.c.b16 %v4646, %v4637
    %v4782 = vpack.c.b16 %v4647, %v4638
    %v4783 = vpack.c.b16 %v4648, %v4639
    %v4784 = vpack.c.b16 %v4649, %v4640
    %v4785 = vpack.c.b16 %v4650, %v4641
    %v4786 = vpack.c.b16 %v4651, %v4642
    %v4787 = vpack.c.b16 %v4661, %v4652
    %v4788 = vpack.c.b16 %v4662, %v4653
    %v4789 = vpack.c.b16 %v4663, %v4654
    %v4790 = vpack.c.b16 %v4664, %v4655
    %v4791 = vpack.c.b16 %v4665, %v4656
    %v4792 = vpack.c.b16 %v4666, %v4657
    %v4793 = vpack.c.b16 %v4667, %v4658
    %v4794 = vpack.c.b16 %v4668, %v4659
    %v4795 = vpack.c.b16 %v4669, %v4660
    %v4796 = vpack.c.b16 %v4679, %v4670
    %v4797 = vpack.c.b16 %v4680, %v4671
    %v4798 = vpack.c.b16 %v4681, %v4672
    %v4799 = vpack.c.b16 %v4682, %v4673
    %v4800 = vpack.c.b16 %v4683, %v4674
    %v4801 = vpack.c.b16 %v4684, %v4675
    %v4802 = vpack.c.b16 %v4685, %v4676
    %v4803 = vpack.c.b16 %v4686, %v4677
    %v4804 = vpack.c.b16 %v4687, %v4678
    %v4805 = vpack.c.b16 %v4697, %v4688
    %v4806 = vpack.c.b16 %v4698, %v4689
    %v4807 = vpack.c.b16 %v4699, %v4690
    %v4808 = vpack.c.b16 %v4700, %v4691
    %v4809 = vpack.c.b16 %v4701, %v4692
    %v4810 = vpack.c.b16 %v4702, %v4693
    %v4811 = vpack.c.b16 %v4703, %v4694
    %v4812 = vpack.c.b16 %v4704, %v4695
    %v4813 = vpack.c.b16 %v4705, %v4696
    %v4814 = vpack.c.b16 %v4715, %v4706
    %v4815 = vpack.c.b16 %v4716, %v4707
    %v4816 = vpack.c.b16 %v4717, %v4708
    %v4817 = vpack.c.b16 %v4718, %v4709
    %v4818 = vpack.c.b16 %v4719, %v4710
    %v4819 = vpack.c.b16 %v4720, %v4711
    %v4820 = vpack.c.b16 %v4721, %v4712
    %v4821 = vpack.c.b16 %v4722, %v4713
    %v4822 = vpack.c.b16 %v4723, %v4714
    %v4823 = vpack.c.b16 %v4733, %v4724
    %v4824 = vpack.c.b16 %v4734, %v4725
    %v4825 = vpack.c.b16 %v4735, %v4726
    %v4826 = vpack.c.b16 %v4736, %v4727
    %v4827 = vpack.c.b16 %v4737, %v4728
    %v4828 = vpack.c.b16 %v4738, %v4729
    %v4829 = vpack.c.b16 %v4739, %v4730
    %v4830 = vpack.c.b16 %v4740, %v4731
    %v4831 = vpack.c.b16 %v4741, %v4732
    %v4832 = vpack.c.b16 %v4751, %v4742
    %v4833 = vpack.c.b16 %v4752, %v4743
    %v4834 = vpack.c.b16 %v4753, %v4744
    %v4835 = vpack.c.b16 %v4754, %v4745
    %v4836 = vpack.c.b16 %v4755, %v4746
    %v4837 = vpack.c.b16 %v4756, %v4747
    %v4838 = vpack.c.b16 %v4757, %v4748
    %v4839 = vpack.c.b16 %v4758, %v4749
    %v4840 = vpack.c.b16 %v4759, %v4750
    %v4841 = vpack.c.b16 %v4769, %v4760
    %v4842 = vpack.c.b16 %v4770, %v4761
    %v4843 = vpack.c.b16 %v4771, %v4762
    %v4844 = vpack.c.b16 %v4772, %v4763
    %v4845 = vpack.c.b16 %v4773, %v4764
    %v4846 = vpack.c.b16 %v4774, %v4765
    %v4847 = vpack.c.b16 %v4775, %v4766
    %v4848 = vpack.c.b16 %v4776, %v4767
    %v4849 = vpack.c.b16 %v4777, %v4768
    %4922 = vmatprep.subr.bf16.mxu0 %v4842
    %4923 = vmatpush1.bf16.msra.mxu0 %v4841
    %4924 = vmatprep.subr.bf16.mxu0 %v4833
    %4925 = vmatpush1.bf16.msra.mxu0 %v4832
    %4926 = vmatprep.subr.bf16.mxu0 %v4824
    %4927 = vmatpush1.bf16.msra.mxu0 %v4823
    %4928 = vmatprep.subr.bf16.mxu0 %v4815
    %4929 = vmatpush1.bf16.msra.mxu0 %v4814
    %4930 = vmatprep.subr.bf16.mxu0 %v4806
    %4931 = vmatpush1.bf16.msra.mxu0 %v4805
    %4932 = vmatprep.subr.bf16.mxu0 %v4797
    %4933 = vmatpush1.bf16.msra.mxu0 %v4796
    %4934 = vmatprep.subr.bf16.mxu0 %v4788
    %4935 = vmatpush1.bf16.msra.mxu0 %v4787
    %4936 = vmatprep.subr.bf16.mxu0 %v4779
    %4937 = vmatpush1.bf16.msra.mxu0 %v4778
    %4938 = vmatprep.subr.bf16.mxu0 0
    %4939 = vmatpush2.bf16.msra.mxu0 0
    %4940 = vmatprep.subr.bf16.mxu0 0
    %4941 = vmatpush2.bf16.msra.mxu0 0
    %4942 = vmatprep.subr.bf16.mxu0 0
    %4943 = vmatpush2.bf16.msra.mxu0 0
    %4944 = vmatprep.subr.bf16.mxu0 0
    %4945 = vmatpush2.bf16.msra.mxu0 0
    %4946 = vmatprep.subr.bf16.mxu0 0
    %4947 = vmatpush2.bf16.msra.mxu0 0
    %4948 = vmatprep.subr.bf16.mxu0 0
    %4949 = vmatpush2.bf16.msra.mxu0 0
    %4950 = vmatprep.subr.bf16.mxu0 0
    %4951 = vmatpush2.bf16.msra.mxu0 0
    %4952 = vmatprep.subr.bf16.mxu0 0
    %4953 = vmatpush2.bf16.msra.mxu0 0
    %4954 = vmatprep.mubr.bf16.mxu0 0
    %4955 = vmatmul.mubr.bf16.gmra.mxu0 %v4473
    %v4956 = vpop.f32.mrf.mxu0
    %v4957 = vadd.f32 0.0, %v4956
    %v4958 = vpop.f32.mrf.mxu0
    %v4959 = vadd.f32 0.0, %v4958
    %v4960 = vpop.f32.mrf.mxu0
    %v4961 = vpop.f32.mrf.mxu0
    %4962 = vdwg.mxu0
    %4963 = vmatprep.subr.bf16.mxu0 %v4844
    %4964 = vmatpush1.bf16.msra.mxu0 %v4843
    %4965 = vmatprep.subr.bf16.mxu0 %v4835
    %4966 = vmatpush1.bf16.msra.mxu0 %v4834
    %4967 = vmatprep.subr.bf16.mxu0 %v4826
    %4968 = vmatpush1.bf16.msra.mxu0 %v4825
    %4969 = vmatprep.subr.bf16.mxu0 %v4817
    %4970 = vmatpush1.bf16.msra.mxu0 %v4816
    %4971 = vmatprep.subr.bf16.mxu0 %v4808
    %4972 = vmatpush1.bf16.msra.mxu0 %v4807
    %4973 = vmatprep.subr.bf16.mxu0 %v4799
    %4974 = vmatpush1.bf16.msra.mxu0 %v4798
    %4975 = vmatprep.subr.bf16.mxu0 %v4790
    %4976 = vmatpush1.bf16.msra.mxu0 %v4789
    %4977 = vmatprep.subr.bf16.mxu0 %v4781
    %4978 = vmatpush1.bf16.msra.mxu0 %v4780
    %4979 = vmatprep.subr.bf16.mxu0 0
    %4980 = vmatpush2.bf16.msra.mxu0 0
    %4981 = vmatprep.subr.bf16.mxu0 0
    %4982 = vmatpush2.bf16.msra.mxu0 0
    %4983 = vmatprep.subr.bf16.mxu0 0
    %4984 = vmatpush2.bf16.msra.mxu0 0
    %4985 = vmatprep.subr.bf16.mxu0 0
    %4986 = vmatpush2.bf16.msra.mxu0 0
    %4987 = vmatprep.subr.bf16.mxu0 0
    %4988 = vmatpush2.bf16.msra.mxu0 0
    %4989 = vmatprep.subr.bf16.mxu0 0
    %4990 = vmatpush2.bf16.msra.mxu0 0
    %4991 = vmatprep.subr.bf16.mxu0 0
    %4992 = vmatpush2.bf16.msra.mxu0 0
    %4993 = vmatprep.subr.bf16.mxu0 0
    %4994 = vmatpush2.bf16.msra.mxu0 0
    %4995 = vmatprep.mubr.bf16.mxu0 0
    %4996 = vmatmul.mubr.bf16.gmra.mxu0 %v4473
    %v4997 = vpop.f32.mrf.mxu0
    %v4998 = vadd.f32 0.0, %v4997
    %v4999 = vpop.f32.mrf.mxu0
    %v5000 = vadd.f32 0.0, %v4999
    %v5001 = vpop.f32.mrf.mxu0
    %v5002 = vpop.f32.mrf.mxu0
    %5003 = vdwg.mxu0
    %5004 = vmatprep.subr.bf16.mxu0 %v4846
    %5005 = vmatpush1.bf16.msra.mxu0 %v4845
    %5006 = vmatprep.subr.bf16.mxu0 %v4837
    %5007 = vmatpush1.bf16.msra.mxu0 %v4836
    %5008 = vmatprep.subr.bf16.mxu0 %v4828
    %5009 = vmatpush1.bf16.msra.mxu0 %v4827
    %5010 = vmatprep.subr.bf16.mxu0 %v4819
    %5011 = vmatpush1.bf16.msra.mxu0 %v4818
    %5012 = vmatprep.subr.bf16.mxu0 %v4810
    %5013 = vmatpush1.bf16.msra.mxu0 %v4809
    %5014 = vmatprep.subr.bf16.mxu0 %v4801
    %5015 = vmatpush1.bf16.msra.mxu0 %v4800
    %5016 = vmatprep.subr.bf16.mxu0 %v4792
    %5017 = vmatpush1.bf16.msra.mxu0 %v4791
    %5018 = vmatprep.subr.bf16.mxu0 %v4783
    %5019 = vmatpush1.bf16.msra.mxu0 %v4782
    %5020 = vmatprep.subr.bf16.mxu0 0
    %5021 = vmatpush2.bf16.msra.mxu0 0
    %5022 = vmatprep.subr.bf16.mxu0 0
    %5023 = vmatpush2.bf16.msra.mxu0 0
    %5024 = vmatprep.subr.bf16.mxu0 0
    %5025 = vmatpush2.bf16.msra.mxu0 0
    %5026 = vmatprep.subr.bf16.mxu0 0
    %5027 = vmatpush2.bf16.msra.mxu0 0
    %5028 = vmatprep.subr.bf16.mxu0 0
    %5029 = vmatpush2.bf16.msra.mxu0 0
    %5030 = vmatprep.subr.bf16.mxu0 0
    %5031 = vmatpush2.bf16.msra.mxu0 0
    %5032 = vmatprep.subr.bf16.mxu0 0
    %5033 = vmatpush2.bf16.msra.mxu0 0
    %5034 = vmatprep.subr.bf16.mxu0 0
    %5035 = vmatpush2.bf16.msra.mxu0 0
    %5036 = vmatprep.mubr.bf16.mxu0 0
    %5037 = vmatmul.mubr.bf16.gmra.mxu0 %v4473
    %v5038 = vpop.f32.mrf.mxu0
    %v5039 = vadd.f32 0.0, %v5038
    %v5040 = vpop.f32.mrf.mxu0
    %v5041 = vadd.f32 0.0, %v5040
    %v5042 = vpop.f32.mrf.mxu0
    %v5043 = vpop.f32.mrf.mxu0
    %5044 = vdwg.mxu0
    %5045 = vmatprep.subr.bf16.mxu0 %v4848
    %5046 = vmatpush1.bf16.msra.mxu0 %v4847
    %5047 = vmatprep.subr.bf16.mxu0 %v4839
    %5048 = vmatpush1.bf16.msra.mxu0 %v4838
    %5049 = vmatprep.subr.bf16.mxu0 %v4830
    %5050 = vmatpush1.bf16.msra.mxu0 %v4829
    %5051 = vmatprep.subr.bf16.mxu0 %v4821
    %5052 = vmatpush1.bf16.msra.mxu0 %v4820
    %5053 = vmatprep.subr.bf16.mxu0 %v4812
    %5054 = vmatpush1.bf16.msra.mxu0 %v4811
    %5055 = vmatprep.subr.bf16.mxu0 %v4803
    %5056 = vmatpush1.bf16.msra.mxu0 %v4802
    %5057 = vmatprep.subr.bf16.mxu0 %v4794
    %5058 = vmatpush1.bf16.msra.mxu0 %v4793
    %5059 = vmatprep.subr.bf16.mxu0 %v4785
    %5060 = vmatpush1.bf16.msra.mxu0 %v4784
    %5061 = vmatprep.subr.bf16.mxu0 0
    %5062 = vmatpush2.bf16.msra.mxu0 0
    %5063 = vmatprep.subr.bf16.mxu0 0
    %5064 = vmatpush2.bf16.msra.mxu0 0
    %5065 = vmatprep.subr.bf16.mxu0 0
    %5066 = vmatpush2.bf16.msra.mxu0 0
    %5067 = vmatprep.subr.bf16.mxu0 0
    %5068 = vmatpush2.bf16.msra.mxu0 0
    %5069 = vmatprep.subr.bf16.mxu0 0
    %5070 = vmatpush2.bf16.msra.mxu0 0
    %5071 = vmatprep.subr.bf16.mxu0 0
    %5072 = vmatpush2.bf16.msra.mxu0 0
    %5073 = vmatprep.subr.bf16.mxu0 0
    %5074 = vmatpush2.bf16.msra.mxu0 0
    %5075 = vmatprep.subr.bf16.mxu0 0
    %5076 = vmatpush2.bf16.msra.mxu0 0
    %5077 = vmatprep.mubr.bf16.mxu0 0
    %5078 = vmatmul.mubr.bf16.gmra.mxu0 %v4473
    %v5079 = vpop.f32.mrf.mxu0
    %v5080 = vpop.f32.mrf.mxu0
    %v5081 = vpop.f32.mrf.mxu0
    %v5082 = vadd.f32 0.0, %v5081
    %v5083 = vpop.f32.mrf.mxu0
    %v5084 = vadd.f32 0.0, %v5083
    %5085 = vdwg.mxu0
    %5086 = vmatprep.subr.bf16.mxu0 0
    %5087 = vmatpush1.bf16.msra.mxu0 %v4849
    %5088 = vmatprep.subr.bf16.mxu0 0
    %5089 = vmatpush1.bf16.msra.mxu0 %v4840
    %5090 = vmatprep.subr.bf16.mxu0 0
    %5091 = vmatpush1.bf16.msra.mxu0 %v4831
    %5092 = vmatprep.subr.bf16.mxu0 0
    %5093 = vmatpush1.bf16.msra.mxu0 %v4822
    %5094 = vmatprep.subr.bf16.mxu0 0
    %5095 = vmatpush1.bf16.msra.mxu0 %v4813
    %5096 = vmatprep.subr.bf16.mxu0 0
    %5097 = vmatpush1.bf16.msra.mxu0 %v4804
    %5098 = vmatprep.subr.bf16.mxu0 0
    %5099 = vmatpush1.bf16.msra.mxu0 %v4795
    %5100 = vmatprep.subr.bf16.mxu0 0
    %5101 = vmatpush1.bf16.msra.mxu0 %v4786
    %5102 = vmatprep.subr.bf16.mxu0 0
    %5103 = vmatpush2.bf16.msra.mxu0 0
    %5104 = vmatprep.subr.bf16.mxu0 0
    %5105 = vmatpush2.bf16.msra.mxu0 0
    %5106 = vmatprep.subr.bf16.mxu0 0
    %5107 = vmatpush2.bf16.msra.mxu0 0
    %5108 = vmatprep.subr.bf16.mxu0 0
    %5109 = vmatpush2.bf16.msra.mxu0 0
    %5110 = vmatprep.subr.bf16.mxu0 0
    %5111 = vmatpush2.bf16.msra.mxu0 0
    %5112 = vmatprep.subr.bf16.mxu0 0
    %5113 = vmatpush2.bf16.msra.mxu0 0
    %5114 = vmatprep.subr.bf16.mxu0 0
    %5115 = vmatpush2.bf16.msra.mxu0 0
    %5116 = vmatprep.subr.bf16.mxu0 0
    %5117 = vmatpush2.bf16.msra.mxu0 0
    %5118 = vmatprep.mubr.bf16.mxu0 0
    %5119 = vmatmul.mubr.bf16.gmra.mxu0 %v4473
    %v5120 = vpop.f32.mrf.mxu0
    %v5121 = vpop.f32.mrf.mxu0
    %v5122 = vpop.f32.mrf.mxu0
    %v5123 = vadd.f32 0.0, %v5122
    %v5124 = vpop.f32.mrf.mxu0
    %5125 = vdwg.mxu0
    %v5126 = vadd.f32 %v4957, %v418
    %v5127 = vadd.f32 %v4959, %v419
    %v5128 = vadd.f32 %v4998, %v420
    %v5129 = vadd.f32 %v5000, %v421
    %v5130 = vadd.f32 %v5039, %v422
    %v5131 = vadd.f32 %v5041, %v423
    %v5132 = vadd.f32 %v5082, %v424
    %v5133 = vadd.f32 %v5084, %v425
    %v5134 = vadd.f32 %v5123, %v426
    %v5135 = vadd.f32 %v5126, %v5132
    %v5136 = vadd.f32 %v5127, %v5133
    %v5137 = vxor.u32 %v5135, 2147483648
    %v5138 = vxor.u32 %v5136, 2147483648
    %v5139 = vmul.f32 %v5137, 1.442695
    %v5140 = vpow.pop %v5139
    %v5141 = vmul.f32 %v5138, 1.442695
    %v5142 = vpow.pop %v5141
    %v5143 = vadd.f32 %v5140, 1.0
    %v5144 = vadd.f32 %v5142, 1.0
    %v5145 = vrcp.pop %v5143
    %v5146 = vmul.f32 1.0, %v5145
    %v5147 = vrcp.pop %v5144
    %v5148 = vmul.f32 1.0, %v5147
    %v5149 = vmul.f32 %v5146, %v5134
    %v5150 = vadd.f32 %v5128, %v5149
    %v5151 = vtanh.pop %v5150
    %v5152 = vsub.f32 1.0, %v5148
    %v5153 = vmul.f32 %v4447, %v5152
    %v5154 = vsub.f32 %v5151, %v4444
    %v5155 = vmul.f32 %v5153, %v5154
    %v5156 = vadd.f32 %v4444, %v5155
    %v5157 = vmul.f32 %v4447, %v5156
    %5158 = vst [vmem:[#allocation3 + $0x30] sm:$0xff] %v5157
    %v5159 = vld [vmem:[%s1 + $0x38] sm:$0xff]
    %v5160 = vld [vmem:[#allocation2 + $0xa8] sm:$0xff]
    %v5161 = vld [vmem:[#allocation2 + $0xb0] sm:$0xff]
    %v5162 = vld [vmem:[#allocation2 + $0xb8] sm:$0xff]
    %v5163 = vadd.f32 %v5160, %v5129
    %v5164 = vadd.f32 %v5161, %v5130
    %v5165 = vxor.u32 %v5163, 2147483648
    %v5166 = vxor.u32 %v5164, 2147483648
    %v5167 = vmul.f32 %v5165, 1.442695
    %v5168 = vpow.pop %v5167
    %v5169 = vmul.f32 %v5166, 1.442695
    %v5170 = vpow.pop %v5169
    %v5171 = vadd.f32 %v5168, 1.0
    %v5172 = vadd.f32 %v5170, 1.0
    %v5173 = vrcp.pop %v5171
    %v5174 = vmul.f32 1.0, %v5173
    %v5175 = vrcp.pop %v5172
    %v5176 = vmul.f32 1.0, %v5175
    %v5177 = vmul.f32 %v5174, %v5131
    %v5178 = vadd.f32 %v5162, %v5177
    %v5179 = vtanh.pop %v5178
    %v5180 = vsub.f32 1.0, %v5176
    %v5181 = vmul.f32 %v5159, %v5180
    %v5182 = vsub.f32 %v5179, %v4472
    %v5183 = vmul.f32 %v5181, %v5182
    %v5184 = vadd.f32 %v4472, %v5183
    %v5185 = vpack.c.bf16 %v5156, %v5184
    %v5186 = vld [vmem:[%s4] sm:$0xff]
    %v5187 = vld [vmem:[%s4 + $0x8] sm:$0xff]
    %v5188 = vld [vmem:[%s4 + $0x18] sm:$0xff]
    %v5189 = vld [vmem:[%s4 + $0x20] sm:$0xf]
    %v5190 = vld [vmem:[%s4 + $0x24] sm:$0xff]
    %v5191 = vld [vmem:[%s4 + $0x2c] sm:$0xff]
    %v5192 = vld [vmem:[%s4 + $0x3c] sm:$0xff]
    %v5193 = vld [vmem:[%s4 + $0x44] sm:$0xf]
    %v5194 = vld [vmem:[%s4 + $0x48] sm:$0xff]
    %v5195 = vld [vmem:[%s4 + $0x50] sm:$0xff]
    %v5196 = vld [vmem:[%s4 + $0x60] sm:$0xff]
    %v5197 = vld [vmem:[%s4 + $0x68] sm:$0xf]
    %v5198 = vld [vmem:[%s4 + $0x6c] sm:$0xff]
    %v5199 = vld [vmem:[%s4 + $0x74] sm:$0xff]
    %v5200 = vld [vmem:[%s4 + $0x84] sm:$0xff]
    %v5201 = vld [vmem:[%s4 + $0x8c] sm:$0xf]
    %v5202 = vld [vmem:[%s4 + $0x90] sm:$0xff]
    %v5203 = vld [vmem:[%s4 + $0x98] sm:$0xff]
    %v5204 = vld [vmem:[%s4 + $0xa8] sm:$0xff]
    %v5205 = vld [vmem:[%s4 + $0xb0] sm:$0xf]
    %v5206 = vld [vmem:[%s4 + $0xb4] sm:$0xff]
    %v5207 = vld [vmem:[%s4 + $0xbc] sm:$0xff]
    %v5208 = vld [vmem:[%s4 + $0xcc] sm:$0xff]
    %v5209 = vld [vmem:[%s4 + $0xd4] sm:$0xf]
    %v5210 = vld [vmem:[%s4 + $0xd8] sm:$0xff]
    %v5211 = vld [vmem:[%s4 + $0xe0] sm:$0xff]
    %v5212 = vld [vmem:[%s4 + $0xf0] sm:$0xff]
    %v5213 = vld [vmem:[%s4 + $0xf8] sm:$0xf]
    %v5214 = vld [vmem:[%s4 + $0xfc] sm:$0xff]
    %v5215 = vld [vmem:[%s4 + $0x104] sm:$0xff]
    %v5216 = vld [vmem:[%s4 + $0x114] sm:$0xff]
    %v5217 = vld [vmem:[%s4 + $0x11c] sm:$0xf]
    %v5218 = vld [vmem:[%s4 + $0x120] sm:$0xff]
    %v5219 = vld [vmem:[%s4 + $0x128] sm:$0xff]
    %v5220 = vld [vmem:[%s4 + $0x138] sm:$0xff]
    %v5221 = vld [vmem:[%s4 + $0x140] sm:$0xf]
    %v5222 = vld [vmem:[%s4 + $0x144] sm:$0xff]
    %v5223 = vld [vmem:[%s4 + $0x14c] sm:$0xff]
    %v5224 = vld [vmem:[%s4 + $0x15c] sm:$0xff]
    %v5225 = vld [vmem:[%s4 + $0x164] sm:$0xf]
    %v5226 = vld [vmem:[%s4 + $0x168] sm:$0xff]
    %v5227 = vld [vmem:[%s4 + $0x170] sm:$0xff]
    %v5228 = vld [vmem:[%s4 + $0x180] sm:$0xff]
    %v5229 = vld [vmem:[%s4 + $0x188] sm:$0xf]
    %v5230 = vld [vmem:[%s4 + $0x18c] sm:$0xff]
    %v5231 = vld [vmem:[%s4 + $0x194] sm:$0xff]
    %v5232 = vld [vmem:[%s4 + $0x1a4] sm:$0xff]
    %v5233 = vld [vmem:[%s4 + $0x1ac] sm:$0xf]
    %v5234 = vld [vmem:[%s4 + $0x1b0] sm:$0xff]
    %v5235 = vld [vmem:[%s4 + $0x1b8] sm:$0xff]
    %v5236 = vld [vmem:[%s4 + $0x1c8] sm:$0xff]
    %v5237 = vld [vmem:[%s4 + $0x1d0] sm:$0xf]
    %v5238 = vld [vmem:[%s4 + $0x1d4] sm:$0xff]
    %v5239 = vld [vmem:[%s4 + $0x1dc] sm:$0xff]
    %v5240 = vld [vmem:[%s4 + $0x1ec] sm:$0xff]
    %v5241 = vld [vmem:[%s4 + $0x1f4] sm:$0xf]
    %v5242 = vld [vmem:[%s4 + $0x1f8] sm:$0xff]
    %v5243 = vld [vmem:[%s4 + $0x200] sm:$0xff]
    %v5244 = vld [vmem:[%s4 + $0x210] sm:$0xff]
    %v5245 = vld [vmem:[%s4 + $0x218] sm:$0xf]
    %v5246 = vld [vmem:[%s4 + $0x21c] sm:$0xff]
    %v5247 = vld [vmem:[%s4 + $0x224] sm:$0xff]
    %v5248 = vld [vmem:[%s4 + $0x234] sm:$0xff]
    %v5249 = vld [vmem:[%s4 + $0x23c] sm:$0xf]
    %v5314 = vunpack.c.l.b16 %v5186
    %v5315 = vunpack.c.h.b16 %v5186
    %v5316 = vunpack.c.l.b16 %v5187
    %v5317 = vunpack.c.h.b16 %v5187
    %v5318 = vunpack.c.l.b16 %v5188
    %v5319 = vunpack.c.h.b16 %v5188
    %v5320 = vunpack.c.l.b16 %v5189
    %v5321 = vunpack.c.l.b16 %v5190
    %v5322 = vunpack.c.h.b16 %v5190
    %v5323 = vunpack.c.l.b16 %v5191
    %v5324 = vunpack.c.h.b16 %v5191
    %v5325 = vunpack.c.l.b16 %v5192
    %v5326 = vunpack.c.h.b16 %v5192
    %v5327 = vunpack.c.l.b16 %v5193
    %v5328 = vunpack.c.l.b16 %v5194
    %v5329 = vunpack.c.h.b16 %v5194
    %v5330 = vunpack.c.l.b16 %v5195
    %v5331 = vunpack.c.h.b16 %v5195
    %v5332 = vunpack.c.l.b16 %v5196
    %v5333 = vunpack.c.h.b16 %v5196
    %v5334 = vunpack.c.l.b16 %v5197
    %v5335 = vunpack.c.l.b16 %v5198
    %v5336 = vunpack.c.h.b16 %v5198
    %v5337 = vunpack.c.l.b16 %v5199
    %v5338 = vunpack.c.h.b16 %v5199
    %v5339 = vunpack.c.l.b16 %v5200
    %v5340 = vunpack.c.h.b16 %v5200
    %v5341 = vunpack.c.l.b16 %v5201
    %v5342 = vunpack.c.l.b16 %v5202
    %v5343 = vunpack.c.h.b16 %v5202
    %v5344 = vunpack.c.l.b16 %v5203
    %v5345 = vunpack.c.h.b16 %v5203
    %v5346 = vunpack.c.l.b16 %v5204
    %v5347 = vunpack.c.h.b16 %v5204
    %v5348 = vunpack.c.l.b16 %v5205
    %v5349 = vunpack.c.l.b16 %v5206
    %v5350 = vunpack.c.h.b16 %v5206
    %v5351 = vunpack.c.l.b16 %v5207
    %v5352 = vunpack.c.h.b16 %v5207
    %v5353 = vunpack.c.l.b16 %v5208
    %v5354 = vunpack.c.h.b16 %v5208
    %v5355 = vunpack.c.l.b16 %v5209
    %v5356 = vunpack.c.l.b16 %v5210
    %v5357 = vunpack.c.h.b16 %v5210
    %v5358 = vunpack.c.l.b16 %v5211
    %v5359 = vunpack.c.h.b16 %v5211
    %v5360 = vunpack.c.l.b16 %v5212
    %v5361 = vunpack.c.h.b16 %v5212
    %v5362 = vunpack.c.l.b16 %v5213
    %v5363 = vunpack.c.l.b16 %v5214
    %v5364 = vunpack.c.h.b16 %v5214
    %v5365 = vunpack.c.l.b16 %v5215
    %v5366 = vunpack.c.h.b16 %v5215
    %v5367 = vunpack.c.l.b16 %v5216
    %v5368 = vunpack.c.h.b16 %v5216
    %v5369 = vunpack.c.l.b16 %v5217
    %v5370 = vunpack.c.l.b16 %v5218
    %v5371 = vunpack.c.h.b16 %v5218
    %v5372 = vunpack.c.l.b16 %v5219
    %v5373 = vunpack.c.h.b16 %v5219
    %v5374 = vunpack.c.l.b16 %v5220
    %v5375 = vunpack.c.h.b16 %v5220
    %v5376 = vunpack.c.l.b16 %v5221
    %v5377 = vunpack.c.l.b16 %v5222
    %v5378 = vunpack.c.h.b16 %v5222
    %v5379 = vunpack.c.l.b16 %v5223
    %v5380 = vunpack.c.h.b16 %v5223
    %v5381 = vunpack.c.l.b16 %v5224
    %v5382 = vunpack.c.h.b16 %v5224
    %v5383 = vunpack.c.l.b16 %v5225
    %v5384 = vunpack.c.l.b16 %v5226
    %v5385 = vunpack.c.h.b16 %v5226
    %v5386 = vunpack.c.l.b16 %v5227
    %v5387 = vunpack.c.h.b16 %v5227
    %v5388 = vunpack.c.l.b16 %v5228
    %v5389 = vunpack.c.h.b16 %v5228
    %v5390 = vunpack.c.l.b16 %v5229
    %v5391 = vunpack.c.l.b16 %v5230
    %v5392 = vunpack.c.h.b16 %v5230
    %v5393 = vunpack.c.l.b16 %v5231
    %v5394 = vunpack.c.h.b16 %v5231
    %v5395 = vunpack.c.l.b16 %v5232
    %v5396 = vunpack.c.h.b16 %v5232
    %v5397 = vunpack.c.l.b16 %v5233
    %v5398 = vunpack.c.l.b16 %v5234
    %v5399 = vunpack.c.h.b16 %v5234
    %v5400 = vunpack.c.l.b16 %v5235
    %v5401 = vunpack.c.h.b16 %v5235
    %v5402 = vunpack.c.l.b16 %v5236
    %v5403 = vunpack.c.h.b16 %v5236
    %v5404 = vunpack.c.l.b16 %v5237
    %v5405 = vunpack.c.l.b16 %v5238
    %v5406 = vunpack.c.h.b16 %v5238
    %v5407 = vunpack.c.l.b16 %v5239
    %v5408 = vunpack.c.h.b16 %v5239
    %v5409 = vunpack.c.l.b16 %v5240
    %v5410 = vunpack.c.h.b16 %v5240
    %v5411 = vunpack.c.l.b16 %v5241
    %v5412 = vunpack.c.l.b16 %v5242
    %v5413 = vunpack.c.h.b16 %v5242
    %v5414 = vunpack.c.l.b16 %v5243
    %v5415 = vunpack.c.h.b16 %v5243
    %v5416 = vunpack.c.l.b16 %v5244
    %v5417 = vunpack.c.h.b16 %v5244
    %v5418 = vunpack.c.l.b16 %v5245
    %v5419 = vunpack.c.l.b16 %v5246
    %v5420 = vunpack.c.h.b16 %v5246
    %v5421 = vunpack.c.l.b16 %v5247
    %v5422 = vunpack.c.h.b16 %v5247
    %v5423 = vunpack.c.l.b16 %v5248
    %v5424 = vunpack.c.h.b16 %v5248
    %v5425 = vunpack.c.l.b16 %v5249
    %v5426 = vpack.c.b16 %v5321, %v5314
    %v5427 = vpack.c.b16 %v5322, %v5315
    %v5428 = vpack.c.b16 %v5323, %v5316
    %v5429 = vpack.c.b16 %v5324, %v5317
    %v5430 = vpack.c.b16 %v5325, %v5318
    %v5431 = vpack.c.b16 %v5326, %v5319
    %v5432 = vpack.c.b16 %v5327, %v5320
    %v5433 = vpack.c.b16 %v5335, %v5328
    %v5434 = vpack.c.b16 %v5336, %v5329
    %v5435 = vpack.c.b16 %v5337, %v5330
    %v5436 = vpack.c.b16 %v5338, %v5331
    %v5437 = vpack.c.b16 %v5339, %v5332
    %v5438 = vpack.c.b16 %v5340, %v5333
    %v5439 = vpack.c.b16 %v5341, %v5334
    %v5440 = vpack.c.b16 %v5349, %v5342
    %v5441 = vpack.c.b16 %v5350, %v5343
    %v5442 = vpack.c.b16 %v5351, %v5344
    %v5443 = vpack.c.b16 %v5352, %v5345
    %v5444 = vpack.c.b16 %v5353, %v5346
    %v5445 = vpack.c.b16 %v5354, %v5347
    %v5446 = vpack.c.b16 %v5355, %v5348
    %v5447 = vpack.c.b16 %v5363, %v5356
    %v5448 = vpack.c.b16 %v5364, %v5357
    %v5449 = vpack.c.b16 %v5365, %v5358
    %v5450 = vpack.c.b16 %v5366, %v5359
    %v5451 = vpack.c.b16 %v5367, %v5360
    %v5452 = vpack.c.b16 %v5368, %v5361
    %v5453 = vpack.c.b16 %v5369, %v5362
    %v5454 = vpack.c.b16 %v5377, %v5370
    %v5455 = vpack.c.b16 %v5378, %v5371
    %v5456 = vpack.c.b16 %v5379, %v5372
    %v5457 = vpack.c.b16 %v5380, %v5373
    %v5458 = vpack.c.b16 %v5381, %v5374
    %v5459 = vpack.c.b16 %v5382, %v5375
    %v5460 = vpack.c.b16 %v5383, %v5376
    %v5461 = vpack.c.b16 %v5391, %v5384
    %v5462 = vpack.c.b16 %v5392, %v5385
    %v5463 = vpack.c.b16 %v5393, %v5386
    %v5464 = vpack.c.b16 %v5394, %v5387
    %v5465 = vpack.c.b16 %v5395, %v5388
    %v5466 = vpack.c.b16 %v5396, %v5389
    %v5467 = vpack.c.b16 %v5397, %v5390
    %v5468 = vpack.c.b16 %v5405, %v5398
    %v5469 = vpack.c.b16 %v5406, %v5399
    %v5470 = vpack.c.b16 %v5407, %v5400
    %v5471 = vpack.c.b16 %v5408, %v5401
    %v5472 = vpack.c.b16 %v5409, %v5402
    %v5473 = vpack.c.b16 %v5410, %v5403
    %v5474 = vpack.c.b16 %v5411, %v5404
    %v5475 = vpack.c.b16 %v5419, %v5412
    %v5476 = vpack.c.b16 %v5420, %v5413
    %v5477 = vpack.c.b16 %v5421, %v5414
    %v5478 = vpack.c.b16 %v5422, %v5415
    %v5479 = vpack.c.b16 %v5423, %v5416
    %v5480 = vpack.c.b16 %v5424, %v5417
    %v5481 = vpack.c.b16 %v5425, %v5418
    %5538 = vmatprep.subr.bf16.mxu0 %v5476
    %5539 = vmatpush1.bf16.msra.mxu0 %v5475
    %5540 = vmatprep.subr.bf16.mxu0 %v5469
    %5541 = vmatpush1.bf16.msra.mxu0 %v5468
    %5542 = vmatprep.subr.bf16.mxu0 %v5462
    %5543 = vmatpush1.bf16.msra.mxu0 %v5461
    %5544 = vmatprep.subr.bf16.mxu0 %v5455
    %5545 = vmatpush1.bf16.msra.mxu0 %v5454
    %5546 = vmatprep.subr.bf16.mxu0 %v5448
    %5547 = vmatpush1.bf16.msra.mxu0 %v5447
    %5548 = vmatprep.subr.bf16.mxu0 %v5441
    %5549 = vmatpush1.bf16.msra.mxu0 %v5440
    %5550 = vmatprep.subr.bf16.mxu0 %v5434
    %5551 = vmatpush1.bf16.msra.mxu0 %v5433
    %5552 = vmatprep.subr.bf16.mxu0 %v5427
    %5553 = vmatpush1.bf16.msra.mxu0 %v5426
    %5554 = vmatprep.subr.bf16.mxu0 0
    %5555 = vmatpush2.bf16.msra.mxu0 0
    %5556 = vmatprep.subr.bf16.mxu0 0
    %5557 = vmatpush2.bf16.msra.mxu0 0
    %5558 = vmatprep.subr.bf16.mxu0 0
    %5559 = vmatpush2.bf16.msra.mxu0 0
    %5560 = vmatprep.subr.bf16.mxu0 0
    %5561 = vmatpush2.bf16.msra.mxu0 0
    %5562 = vmatprep.subr.bf16.mxu0 0
    %5563 = vmatpush2.bf16.msra.mxu0 0
    %5564 = vmatprep.subr.bf16.mxu0 0
    %5565 = vmatpush2.bf16.msra.mxu0 0
    %5566 = vmatprep.subr.bf16.mxu0 0
    %5567 = vmatpush2.bf16.msra.mxu0 0
    %5568 = vmatprep.subr.bf16.mxu0 0
    %5569 = vmatpush2.bf16.msra.mxu0 0
    %5570 = vmatprep.mubr.bf16.mxu0 0
    %5571 = vmatmul.mubr.bf16.gmra.mxu0 %v5185
    %v5572 = vpop.f32.mrf.mxu0
    %v5573 = vadd.f32 0.0, %v5572
    %v5574 = vpop.f32.mrf.mxu0
    %v5575 = vadd.f32 0.0, %v5574
    %v5576 = vpop.f32.mrf.mxu0
    %v5577 = vpop.f32.mrf.mxu0
    %5578 = vdwg.mxu0
    %5579 = vmatprep.subr.bf16.mxu0 %v5478
    %5580 = vmatpush1.bf16.msra.mxu0 %v5477
    %5581 = vmatprep.subr.bf16.mxu0 %v5471
    %5582 = vmatpush1.bf16.msra.mxu0 %v5470
    %5583 = vmatprep.subr.bf16.mxu0 %v5464
    %5584 = vmatpush1.bf16.msra.mxu0 %v5463
    %5585 = vmatprep.subr.bf16.mxu0 %v5457
    %5586 = vmatpush1.bf16.msra.mxu0 %v5456
    %5587 = vmatprep.subr.bf16.mxu0 %v5450
    %5588 = vmatpush1.bf16.msra.mxu0 %v5449
    %5589 = vmatprep.subr.bf16.mxu0 %v5443
    %5590 = vmatpush1.bf16.msra.mxu0 %v5442
    %5591 = vmatprep.subr.bf16.mxu0 %v5436
    %5592 = vmatpush1.bf16.msra.mxu0 %v5435
    %5593 = vmatprep.subr.bf16.mxu0 %v5429
    %5594 = vmatpush1.bf16.msra.mxu0 %v5428
    %5595 = vmatprep.subr.bf16.mxu0 0
    %5596 = vmatpush2.bf16.msra.mxu0 0
    %5597 = vmatprep.subr.bf16.mxu0 0
    %5598 = vmatpush2.bf16.msra.mxu0 0
    %5599 = vmatprep.subr.bf16.mxu0 0
    %5600 = vmatpush2.bf16.msra.mxu0 0
    %5601 = vmatprep.subr.bf16.mxu0 0
    %5602 = vmatpush2.bf16.msra.mxu0 0
    %5603 = vmatprep.subr.bf16.mxu0 0
    %5604 = vmatpush2.bf16.msra.mxu0 0
    %5605 = vmatprep.subr.bf16.mxu0 0
    %5606 = vmatpush2.bf16.msra.mxu0 0
    %5607 = vmatprep.subr.bf16.mxu0 0
    %5608 = vmatpush2.bf16.msra.mxu0 0
    %5609 = vmatprep.subr.bf16.mxu0 0
    %5610 = vmatpush2.bf16.msra.mxu0 0
    %5611 = vmatprep.mubr.bf16.mxu0 0
    %5612 = vmatmul.mubr.bf16.gmra.mxu0 %v5185
    %v5613 = vpop.f32.mrf.mxu0
    %v5614 = vadd.f32 0.0, %v5613
    %v5615 = vpop.f32.mrf.mxu0
    %v5616 = vpop.f32.mrf.mxu0
    %v5617 = vpop.f32.mrf.mxu0
    %5618 = vdwg.mxu0
    %5619 = vmatprep.subr.bf16.mxu0 %v5480
    %5620 = vmatpush1.bf16.msra.mxu0 %v5479
    %5621 = vmatprep.subr.bf16.mxu0 %v5473
    %5622 = vmatpush1.bf16.msra.mxu0 %v5472
    %5623 = vmatprep.subr.bf16.mxu0 %v5466
    %5624 = vmatpush1.bf16.msra.mxu0 %v5465
    %5625 = vmatprep.subr.bf16.mxu0 %v5459
    %5626 = vmatpush1.bf16.msra.mxu0 %v5458
    %5627 = vmatprep.subr.bf16.mxu0 %v5452
    %5628 = vmatpush1.bf16.msra.mxu0 %v5451
    %5629 = vmatprep.subr.bf16.mxu0 %v5445
    %5630 = vmatpush1.bf16.msra.mxu0 %v5444
    %5631 = vmatprep.subr.bf16.mxu0 %v5438
    %5632 = vmatpush1.bf16.msra.mxu0 %v5437
    %5633 = vmatprep.subr.bf16.mxu0 %v5431
    %5634 = vmatpush1.bf16.msra.mxu0 %v5430
    %5635 = vmatprep.subr.bf16.mxu0 0
    %5636 = vmatpush2.bf16.msra.mxu0 0
    %5637 = vmatprep.subr.bf16.mxu0 0
    %5638 = vmatpush2.bf16.msra.mxu0 0
    %5639 = vmatprep.subr.bf16.mxu0 0
    %5640 = vmatpush2.bf16.msra.mxu0 0
    %5641 = vmatprep.subr.bf16.mxu0 0
    %5642 = vmatpush2.bf16.msra.mxu0 0
    %5643 = vmatprep.subr.bf16.mxu0 0
    %5644 = vmatpush2.bf16.msra.mxu0 0
    %5645 = vmatprep.subr.bf16.mxu0 0
    %5646 = vmatpush2.bf16.msra.mxu0 0
    %5647 = vmatprep.subr.bf16.mxu0 0
    %5648 = vmatpush2.bf16.msra.mxu0 0
    %5649 = vmatprep.subr.bf16.mxu0 0
    %5650 = vmatpush2.bf16.msra.mxu0 0
    %5651 = vmatprep.mubr.bf16.mxu0 0
    %5652 = vmatmul.mubr.bf16.gmra.mxu0 %v5185
    %v5653 = vpop.f32.mrf.mxu0
    %v5654 = vpop.f32.mrf.mxu0
    %v5655 = vpop.f32.mrf.mxu0
    %v5656 = vadd.f32 0.0, %v5655
    %v5657 = vpop.f32.mrf.mxu0
    %v5658 = vadd.f32 0.0, %v5657
    %5659 = vdwg.mxu0
    %5660 = vmatprep.subr.bf16.mxu0 0
    %5661 = vmatpush1.bf16.msra.mxu0 %v5481
    %5662 = vmatprep.subr.bf16.mxu0 0
    %5663 = vmatpush1.bf16.msra.mxu0 %v5474
    %5664 = vmatprep.subr.bf16.mxu0 0
    %5665 = vmatpush1.bf16.msra.mxu0 %v5467
    %5666 = vmatprep.subr.bf16.mxu0 0
    %5667 = vmatpush1.bf16.msra.mxu0 %v5460
    %5668 = vmatprep.subr.bf16.mxu0 0
    %5669 = vmatpush1.bf16.msra.mxu0 %v5453
    %5670 = vmatprep.subr.bf16.mxu0 0
    %5671 = vmatpush1.bf16.msra.mxu0 %v5446
    %5672 = vmatprep.subr.bf16.mxu0 0
    %5673 = vmatpush1.bf16.msra.mxu0 %v5439
    %5674 = vmatprep.subr.bf16.mxu0 0
    %5675 = vmatpush1.bf16.msra.mxu0 %v5432
    %5676 = vmatprep.subr.bf16.mxu0 0
    %5677 = vmatpush2.bf16.msra.mxu0 0
    %5678 = vmatprep.subr.bf16.mxu0 0
    %5679 = vmatpush2.bf16.msra.mxu0 0
    %5680 = vmatprep.subr.bf16.mxu0 0
    %5681 = vmatpush2.bf16.msra.mxu0 0
    %5682 = vmatprep.subr.bf16.mxu0 0
    %5683 = vmatpush2.bf16.msra.mxu0 0
    %5684 = vmatprep.subr.bf16.mxu0 0
    %5685 = vmatpush2.bf16.msra.mxu0 0
    %5686 = vmatprep.subr.bf16.mxu0 0
    %5687 = vmatpush2.bf16.msra.mxu0 0
    %5688 = vmatprep.subr.bf16.mxu0 0
    %5689 = vmatpush2.bf16.msra.mxu0 0
    %5690 = vmatprep.subr.bf16.mxu0 0
    %5691 = vmatpush2.bf16.msra.mxu0 0
    %5692 = vmatprep.mubr.bf16.mxu0 0
    %5693 = vmatmul.mubr.bf16.gmra.mxu0 %v5185
    %v5694 = vpop.f32.mrf.mxu0
    %v5695 = vpop.f32.mrf.mxu0
    %v5696 = vpop.f32.mrf.mxu0
    %v5697 = vadd.f32 0.0, %v5696
    %v5698 = vpop.f32.mrf.mxu0
    %5699 = vdwg.mxu0
    %v5700 = vadd.f32 %v5573, %v418
    %v5701 = vadd.f32 %v5575, %v419
    %v5702 = vadd.f32 %v5614, %v420
    %v5703 = vadd.f32 %v5656, %v424
    %v5704 = vadd.f32 %v5658, %v425
    %v5705 = vadd.f32 %v5697, %v426
    %v5706 = vadd.f32 %v5700, %v5703
    %v5707 = vadd.f32 %v5701, %v5704
    %v5708 = vxor.u32 %v5706, 2147483648
    %v5709 = vxor.u32 %v5707, 2147483648
    %v5710 = vmul.f32 %v5708, 1.442695
    %v5711 = vpow.pop %v5710
    %v5712 = vmul.f32 %v5709, 1.442695
    %v5713 = vpow.pop %v5712
    %v5714 = vadd.f32 %v5711, 1.0
    %v5715 = vadd.f32 %v5713, 1.0
    %v5716 = vrcp.pop %v5714
    %v5717 = vmul.f32 1.0, %v5716
    %v5718 = vrcp.pop %v5715
    %v5719 = vmul.f32 1.0, %v5718
    %v5720 = vmul.f32 %v5717, %v5705
    %v5721 = vadd.f32 %v5702, %v5720
    %v5722 = vtanh.pop %v5721
    %v5723 = vsub.f32 1.0, %v5719
    %v5724 = vmul.f32 %v5159, %v5723
    %v5725 = vsub.f32 %v5722, %v5156
    %v5726 = vmul.f32 %v5724, %v5725
    %v5727 = vadd.f32 %v5156, %v5726
    %v5728 = vmul.f32 %v5159, %v5727
    %5729 = vst [vmem:[#allocation3 + $0x38] sm:$0xff] %v5728
    %v5730 = vld [vmem:[#allocation3] sm:$0xff]
    %v5731 = vld [vmem:[#allocation3 + $0x8] sm:$0xff]
    %v5732 = vld [vmem:[#allocation3 + $0x10] sm:$0xff]
    %v5733 = vld [vmem:[#allocation3 + $0x18] sm:$0xff]
    %v5734 = vld [vmem:[#allocation3 + $0x20] sm:$0xff]
    %v5735 = vld [vmem:[#allocation3 + $0x28] sm:$0xff]
    %v5736 = vld [vmem:[#allocation3 + $0x30] sm:$0xff]
    %v5737 = vld [vmem:[#allocation3 + $0x38] sm:$0xff]
    %v5738 = vpack.c.bf16 %v5731, %v5730
    %v5739 = vpack.c.bf16 %v5733, %v5732
    %v5740 = vpack.c.bf16 %v5735, %v5734
    %v5741 = vpack.c.bf16 %v5737, %v5736
    %v5742 = vld [vmem:[%s7] sm:$0xf]
    %v5743 = vld [vmem:[%s7 + $0x4] sm:$0xf]
    %v5744 = vld [vmem:[%s7 + $0x8] sm:$0xf]
    %v5745 = vld [vmem:[%s7 + $0xc] sm:$0xf]
    %v5746 = vld [vmem:[%s7 + $0x10] sm:$0xf]
    %v5747 = vld [vmem:[%s7 + $0x14] sm:$0xf]
    %v5748 = vld [vmem:[%s7 + $0x18] sm:$0xf]
    %v5749 = vld [vmem:[%s7 + $0x1c] sm:$0xf]
    %v5750 = vld [vmem:[%s7 + $0x20] sm:$0xf]
    %v5751 = vld [vmem:[%s7 + $0x24] sm:$0xf]
    %v5752 = vld [vmem:[%s7 + $0x28] sm:$0xf]
    %v5753 = vld [vmem:[%s7 + $0x2c] sm:$0xf]
    %v5754 = vld [vmem:[%s7 + $0x30] sm:$0xf]
    %v5755 = vld [vmem:[%s7 + $0x34] sm:$0xf]
    %v5756 = vld [vmem:[%s7 + $0x38] sm:$0xf]
    %v5757 = vld [vmem:[%s7 + $0x3c] sm:$0xf]
    %v5758 = vld [vmem:[%s8] sm:$0x1]
    %v5760 = vlaneseq
    %v5761 = vshrl.u32 %v5760, 7
    %v5762 = vsub.s32 0, %v5761
    %v5763 = vrot.slane %v5758, %v5762
    %v5781 = vunpack.c.l.b16 %v5742
    %v5782 = vunpack.c.l.b16 %v5743
    %v5783 = vunpack.c.l.b16 %v5744
    %v5784 = vunpack.c.l.b16 %v5745
    %v5785 = vunpack.c.l.b16 %v5746
    %v5786 = vunpack.c.l.b16 %v5747
    %v5787 = vunpack.c.l.b16 %v5748
    %v5788 = vunpack.c.l.b16 %v5749
    %v5789 = vunpack.c.l.b16 %v5750
    %v5790 = vunpack.c.l.b16 %v5751
    %v5791 = vunpack.c.l.b16 %v5752
    %v5792 = vunpack.c.l.b16 %v5753
    %v5793 = vunpack.c.l.b16 %v5754
    %v5794 = vunpack.c.l.b16 %v5755
    %v5795 = vunpack.c.l.b16 %v5756
    %v5796 = vunpack.c.l.b16 %v5757
    %v5797 = vpack.c.b16 %v5782, %v5781
    %v5798 = vpack.c.b16 %v5784, %v5783
    %v5799 = vpack.c.b16 %v5786, %v5785
    %v5800 = vpack.c.b16 %v5788, %v5787
    %v5801 = vpack.c.b16 %v5790, %v5789
    %v5802 = vpack.c.b16 %v5792, %v5791
    %v5803 = vpack.c.b16 %v5794, %v5793
    %v5804 = vpack.c.b16 %v5796, %v5795
    %5813 = vmatprep.subr.bf16.mxu0 0
    %5814 = vmatpush1.bf16.msra.mxu0 %v5804
    %5815 = vmatprep.subr.bf16.mxu0 0
    %5816 = vmatpush1.bf16.msra.mxu0 %v5803
    %5817 = vmatprep.subr.bf16.mxu0 0
    %5818 = vmatpush1.bf16.msra.mxu0 %v5802
    %5819 = vmatprep.subr.bf16.mxu0 0
    %5820 = vmatpush1.bf16.msra.mxu0 %v5801
    %5821 = vmatprep.subr.bf16.mxu0 0
    %5822 = vmatpush1.bf16.msra.mxu0 %v5800
    %5823 = vmatprep.subr.bf16.mxu0 0
    %5824 = vmatpush1.bf16.msra.mxu0 %v5799
    %5825 = vmatprep.subr.bf16.mxu0 0
    %5826 = vmatpush1.bf16.msra.mxu0 %v5798
    %5827 = vmatprep.subr.bf16.mxu0 0
    %5828 = vmatpush1.bf16.msra.mxu0 %v5797
    %5829 = vmatprep.subr.bf16.mxu0 0
    %5830 = vmatpush2.bf16.msra.mxu0 0
    %5831 = vmatprep.subr.bf16.mxu0 0
    %5832 = vmatpush2.bf16.msra.mxu0 0
    %5833 = vmatprep.subr.bf16.mxu0 0
    %5834 = vmatpush2.bf16.msra.mxu0 0
    %5835 = vmatprep.subr.bf16.mxu0 0
    %5836 = vmatpush2.bf16.msra.mxu0 0
    %5837 = vmatprep.subr.bf16.mxu0 0
    %5838 = vmatpush2.bf16.msra.mxu0 0
    %5839 = vmatprep.subr.bf16.mxu0 0
    %5840 = vmatpush2.bf16.msra.mxu0 0
    %5841 = vmatprep.subr.bf16.mxu0 0
    %5842 = vmatpush2.bf16.msra.mxu0 0
    %5843 = vmatprep.subr.bf16.mxu0 0
    %5844 = vmatpush2.bf16.msra.mxu0 0
    %5845 = vmatprep.mubr.bf16.mxu0 0
    %5846 = vmatmul.mubr.bf16.gmra.mxu0 %v5738
    %v5847 = vpop.f32.mrf.mxu0
    %v5848 = vadd.f32 %v5763, %v5847
    %v5849 = vpop.f32.mrf.mxu0
    %v5850 = vpop.f32.mrf.mxu0
    %v5851 = vadd.f32 %v5763, %v5850
    %v5852 = vpop.f32.mrf.mxu0
    %5853 = vmatprep.mubr.bf16.mxu0 0
    %5854 = vmatmul.mubr.bf16.gmra.mxu0 %v5739
    %v5855 = vpop.f32.mrf.mxu0
    %v5856 = vadd.f32 %v5763, %v5855
    %v5857 = vpop.f32.mrf.mxu0
    %v5858 = vpop.f32.mrf.mxu0
    %v5859 = vadd.f32 %v5763, %v5858
    %v5860 = vpop.f32.mrf.mxu0
    %5861 = vmatprep.mubr.bf16.mxu0 0
    %5862 = vmatmul.mubr.bf16.gmra.mxu0 %v5740
    %v5863 = vpop.f32.mrf.mxu0
    %v5864 = vadd.f32 %v5763, %v5863
    %v5865 = vpop.f32.mrf.mxu0
    %v5866 = vpop.f32.mrf.mxu0
    %v5867 = vadd.f32 %v5763, %v5866
    %v5868 = vpop.f32.mrf.mxu0
    %5869 = vmatprep.mubr.bf16.mxu0 0
    %5870 = vmatmul.mubr.bf16.gmra.mxu0 %v5741
    %v5871 = vpop.f32.mrf.mxu0
    %v5872 = vadd.f32 %v5763, %v5871
    %v5873 = vpop.f32.mrf.mxu0
    %v5874 = vpop.f32.mrf.mxu0
    %v5875 = vadd.f32 %v5763, %v5874
    %v5876 = vpop.f32.mrf.mxu0
    %5877 = vdwg.mxu0
    %v5878 = vtanh.pop %v5848
    %v5879 = vtanh.pop %v5851
    %v5880 = vtanh.pop %v5856
    %v5881 = vtanh.pop %v5859
    %v5882 = vtanh.pop %v5864
    %v5883 = vtanh.pop %v5867
    %v5884 = vtanh.pop %v5872
    %v5885 = vtanh.pop %v5875
    %5886 = vst [vmem:[%s9] sm:$0xff] %v5878
    %5887 = vst [vmem:[%s9 + $0x8] sm:$0xff] %v5879
    %5888 = vst [vmem:[%s9 + $0x10] sm:$0xff] %v5880
    %5889 = vst [vmem:[%s9 + $0x18] sm:$0xff] %v5881
    %5890 = vst [vmem:[%s9 + $0x20] sm:$0xff] %v5882
    %5891 = vst [vmem:[%s9 + $0x28] sm:$0xff] %v5883
    %5892 = vst [vmem:[%s9 + $0x30] sm:$0xff] %v5884
    %5893 = vst [vmem:[%s9 + $0x38] sm:$0xff] %v5885
    // Predicated region
    $region42: #{_lambda_.1} parent=1 // pred_check
      _
    $region43: #{_lambda_.1} parent=1 // pred_check_branch
      %5895 = sbr.rel (0) target = $region45
    $region44: #{_lambda_.1} parent=1 // pred_region
      _
    $region45: #{_lambda_.1} parent=1 // pred_fallthru
      _
    // Predicated region
    $region46: #{_lambda_.1} parent=1 // pred_check
      _
    $region47: #{_lambda_.1} parent=1 // pred_check_branch
      %5897 = sbr.rel (0) target = $region49
    $region48: #{_lambda_.1} parent=1 // pred_region
      _
    $region49: #{_lambda_.1} parent=1 // pred_fallthru
      _
    %5898 = vsyncpa [#allocation5], 1

</llo_original>
